<compile_context>
chip_gen: v7x
topology: tpu7x:2x2x1
jax: 0.10.0
libtpu: 0.0.40
codegen_flags: <defaults>
</compile_context>

<pallas_src>
import math
import functools

import jax
import jax.numpy as jnp
from jax import lax
from jax.experimental import pallas as pl
from jax.experimental.pallas import tpu as pltpu

# ---------------- configuration (small synthetic shapes) ----------------
B = 2            # batch
L_IMG = 8        # image tokens (img_features_proj length; also "learned_positions")
L_TXT = 8        # text tokens
S = L_IMG + L_TXT
D_MODEL = 32     # opt.embed_dim
N_HEADS = 4      # opt.number_attention_heads
D_FF = 64        # opt.width_per_attention_block
N_LAYERS = 2     # opt.number_attention_blocks
MAX_LEN = 64
EPS = 1e-6


def _layer_norm(x, gamma, beta):
    # Annotated-Transformer LayerNorm: a_2 * (x - mean) / (std + eps) + b_2,
    # torch .std() is unbiased -> divide by (D - 1).
    d = x.shape[-1]
    mean = jnp.mean(x, axis=-1, keepdims=True)
    var = jnp.sum((x - mean) ** 2, axis=-1, keepdims=True) / (d - 1)
    std = jnp.sqrt(var)
    return gamma * (x - mean) / (std + EPS) + beta


# ---------------- fused kernel: pos-encode + N encoder layers + final LN ----------------
def fused_encoder_kernel(img_ref, txt_ref, mask_ref, pe_ref,
                         wq_ref, bq_ref, wk_ref, bk_ref, wv_ref, bv_ref,
                         wo_ref, bo_ref, g1_ref, b1_ref,
                         w1_ref, fb1_ref, w2_ref, fb2_ref, g2_ref, be2_ref,
                         gf_ref, bf_ref, o_ref, *, num_heads):
    # One batch element per grid step; the whole encoder stack runs with activations
    # and all layer weights resident in VMEM.
    x = jnp.concatenate([img_ref[0], txt_ref[0]], axis=0) + pe_ref[...]   # (S, D)
    seq, d_model = x.shape
    dk = d_model // num_heads
    num_layers = wq_ref.shape[0]

    # Key-padding mask -> additive bias, computed ONCE per batch element.
    bias = jnp.where(mask_ref[0] > 0.0, 0.0, -1e9)                        # (1, S)

    for l in range(num_layers):            # static unroll over layers (N_LAYERS=2)
        # ---- self-attention sublayer: x + W_o(MHA(LayerNorm(x))) ----
        xn = _layer_norm(x, g1_ref[l], b1_ref[l])
        # 1/sqrt(dk) is pre-folded into wq/bq at stacking time.
        q = jnp.dot(xn, wq_ref[l], preferred_element_type=jnp.float32) + bq_ref[l]
        k = jnp.dot(xn, wk_ref[l], preferred_element_type=jnp.float32) + bk_ref[l]
        v = jnp.dot(xn, wv_ref[l], preferred_element_type=jnp.float32) + bv_ref[l]

        head_outs = []
        for h in range(num_heads):         # static unroll over heads
            qs = q[:, h * dk:(h + 1) * dk]
            ks = k[:, h * dk:(h + 1) * dk]
            vs = v[:, h * dk:(h + 1) * dk]
            # qs @ ks.T without an explicit transpose op.
            s = lax.dot_general(qs, ks, (((1,), (1,)), ((), ())),
                                preferred_element_type=jnp.float32)       # (S, S)
            s = s + bias
            s = s - jnp.max(s, axis=-1, keepdims=True)
            e = jnp.exp(s)
            p = e / jnp.sum(e, axis=-1, keepdims=True)
            head_outs.append(jnp.dot(p, vs, preferred_element_type=jnp.float32))
        attn = jnp.concatenate(head_outs, axis=-1)                        # (S, D)
        x = x + jnp.dot(attn, wo_ref[l], preferred_element_type=jnp.float32) + bo_ref[l]

        # ---- feed-forward sublayer: x + W2(relu(W1(LayerNorm(x)))) ----
        xn2 = _layer_norm(x, g2_ref[l], be2_ref[l])
        hid = jnp.maximum(
            jnp.dot(xn2, w1_ref[l], preferred_element_type=jnp.float32) + fb1_ref[l], 0.0)
        x = x + jnp.dot(hid, w2_ref[l], preferred_element_type=jnp.float32) + fb2_ref[l]

    # final Encoder LayerNorm
    o_ref[0] = _layer_norm(x, gf_ref[...], bf_ref[...])


def _const_spec(shape):
    n = len(shape)
    return pl.BlockSpec(shape, lambda i, _n=n: (0,) * _n)


# ---------------- composer forward (glue in JAX, whole hot path in one Pallas call) ----
def sequence_concat_composer(img_features_proj, text_features, text_mask, params):
    b, l_img, d = img_features_proj.shape
    l_txt = text_features.shape[1]
    s = l_img + l_txt
    dk = d // N_HEADS
    scale = 1.0 / math.sqrt(dk)

    # Stack per-layer weights -> leading (N_LAYERS, ...) axis; fold the attention
    # score scale into wq/bq (constant weight transform, done once at trace time).
    layers = params["layers"]
    nl = len(layers)
    st = lambda name: jnp.stack([lp[name] for lp in layers], axis=0)
    wq = jnp.stack([lp["wq"] * scale for lp in layers], axis=0)
    bq = jnp.stack([lp["bq"] * scale for lp in layers], axis=0)
    wk, bk = st("wk"), st("bk")
    wv, bv = st("wv"), st("bv")
    wo, bo = st("wo"), st("bo")
    g1, b1 = st("ln1_g"), st("ln1_b")
    w1, fb1 = st("w1"), st("fb1")
    w2, fb2 = st("w2"), st("fb2")
    g2, be2 = st("ln2_g"), st("ln2_b")
    d_ff = w1.shape[-1]

    # Mixed positional encodings for exactly S tokens (learned for img, sinusoidal after).
    pe = params["pos_embed"][0, :s]                                        # (S, D)
    # concat_mask = cat([ones(img), text_mask], 1), as float key-padding mask (B,1,S).
    mask = jnp.concatenate(
        [jnp.ones((b, l_img), jnp.float32), text_mask.astype(jnp.float32)],
        axis=1)[:, None, :]

    in_specs = [
        pl.BlockSpec((1, l_img, d), lambda i: (i, 0, 0)),   # img tokens
        pl.BlockSpec((1, l_txt, d), lambda i: (i, 0, 0)),   # text tokens
        pl.BlockSpec((1, 1, s), lambda i: (i, 0, 0)),       # key-padding mask
        _const_spec((s, d)),                                # positional encodings
        _const_spec((nl, d, d)), _const_spec((nl, 1, d)),   # wq, bq (scale folded)
        _const_spec((nl, d, d)), _const_spec((nl, 1, d)),   # wk, bk
        _const_spec((nl, d, d)), _const_spec((nl, 1, d)),   # wv, bv
        _const_spec((nl, d, d)), _const_spec((nl, 1, d)),   # wo, bo
        _const_spec((nl, 1, d)), _const_spec((nl, 1, d)),   # ln1 gamma, beta
        _const_spec((nl, d, d_ff)), _const_spec((nl, 1, d_ff)),  # w1, b1
        _const_spec((nl, d_ff, d)), _const_spec((nl, 1, d)),     # w2, b2
        _const_spec((nl, 1, d)), _const_spec((nl, 1, d)),   # ln2 gamma, beta
        _const_spec((1, d)), _const_spec((1, d)),           # final LN gamma, beta
    ]

    operands = (img_features_proj, text_features, mask, pe,
                wq, bq, wk, bk, wv, bv, wo, bo, g1, b1,
                w1, fb1, w2, fb2, g2, be2, params["lnf_g"], params["lnf_b"])

    # Advisory cost estimate (helps XLA schedule surrounding glue ops).
    per_layer_flops = 8 * s * d * d + 4 * s * s * d + 4 * s * d * d_ff
    flops = int(b * nl * per_layer_flops)
    transcendentals = int(b * nl * N_HEADS * s * s)          # exp in softmax
    bytes_accessed = int(sum(int(a.size) * 4 for a in operands) + b * s * d * 4)

    return pl.pallas_call(
        functools.partial(fused_encoder_kernel, num_heads=N_HEADS),
        out_shape=jax.ShapeDtypeStruct((b, s, d), jnp.float32),
        grid=(b,),
        in_specs=in_specs,
        out_specs=pl.BlockSpec((1, s, d), lambda i: (i, 0, 0)),
        compiler_params=pltpu.CompilerParams(
            # Batch elements are independent -> shard across v7x's two TensorCores.
            dimension_semantics=("parallel",)),
        cost_estimate=pl.CostEstimate(flops=flops,
                                      transcendentals=transcendentals,
                                      bytes_accessed=bytes_accessed),
    )(*operands)


# ---------------- parameter setup (deterministic, in-script) ----------------
def xavier_uniform(key, shape):
    fan_in, fan_out = shape
    limit = math.sqrt(6.0 / (fan_in + fan_out))
    return jax.random.uniform(key, shape, jnp.float32, -limit, limit)


def make_params(key):
    # sinusoidal positional encoding table (PositionalEncoding buffer)
    position = jnp.arange(MAX_LEN, dtype=jnp.float32)[:, None]
    div_term = jnp.exp(jnp.arange(0, D_MODEL, 2, dtype=jnp.float32)
                       * -(math.log(10000.0) / D_MODEL))
    pe = jnp.zeros((MAX_LEN, D_MODEL), jnp.float32)
    pe = pe.at[:, 0::2].set(jnp.sin(position * div_term))
    pe = pe.at[:, 1::2].set(jnp.cos(position * div_term))

    # learned encodings for the first L_IMG tokens (kaiming_uniform(a=sqrt(5)) style bound)
    key, k_le = jax.random.split(key)
    bound = 1.0 / math.sqrt(D_MODEL)
    learned = jax.random.uniform(k_le, (L_IMG, D_MODEL), jnp.float32, -bound, bound)
    pos_embed = jnp.concatenate([learned, pe], axis=0)[None, :, :]   # (1, L_IMG+MAX_LEN, D)

    layers = []
    for _ in range(N_LAYERS):
        key, *ks = jax.random.split(key, 7)
        layers.append(dict(
            wq=xavier_uniform(ks[0], (D_MODEL, D_MODEL)), bq=jnp.zeros((1, D_MODEL), jnp.float32),
            wk=xavier_uniform(ks[1], (D_MODEL, D_MODEL)), bk=jnp.zeros((1, D_MODEL), jnp.float32),
            wv=xavier_uniform(ks[2], (D_MODEL, D_MODEL)), bv=jnp.zeros((1, D_MODEL), jnp.float32),
            wo=xavier_uniform(ks[3], (D_MODEL, D_MODEL)), bo=jnp.zeros((1, D_MODEL), jnp.float32),
            ln1_g=jnp.ones((1, D_MODEL), jnp.float32), ln1_b=jnp.zeros((1, D_MODEL), jnp.float32),
            w1=xavier_uniform(ks[4], (D_MODEL, D_FF)), fb1=jnp.zeros((1, D_FF), jnp.float32),
            w2=xavier_uniform(ks[5], (D_FF, D_MODEL)), fb2=jnp.zeros((1, D_MODEL), jnp.float32),
            ln2_g=jnp.ones((1, D_MODEL), jnp.float32), ln2_b=jnp.zeros((1, D_MODEL), jnp.float32),
        ))
    return dict(pos_embed=pos_embed, layers=layers,
                lnf_g=jnp.ones((1, D_MODEL), jnp.float32),
                lnf_b=jnp.zeros((1, D_MODEL), jnp.float32))


# ---------------- pure-JAX reference for correctness check ----------------
def ref_forward(img, txt, tmask, params):
    x = jnp.concatenate([img, txt], axis=1)
    mask = jnp.concatenate([jnp.ones(img.shape[:2], jnp.float32),
                            tmask.astype(jnp.float32)], axis=1)
    b, s, d = x.shape
    dk = d // N_HEADS
    x = x + params["pos_embed"][:, :s]
    maskb = mask[:, None, None, :]
    for lp in params["layers"]:
        xn = _layer_norm(x, lp["ln1_g"], lp["ln1_b"])
        q = xn @ lp["wq"] + lp["bq"]
        k = xn @ lp["wk"] + lp["bk"]
        v = xn @ lp["wv"] + lp["bv"]
        split = lambda t: t.reshape(b, s, N_HEADS, dk).transpose(0, 2, 1, 3)
        qh, kh, vh = split(q), split(k), split(v)
        sc = jnp.einsum("bhqd,bhkd->bhqk", qh, kh) / math.sqrt(dk)
        sc = jnp.where(maskb > 0.0, sc, -1e9)
        p = jax.nn.softmax(sc, axis=-1)
        a = jnp.einsum("bhqk,bhkd->bhqd", p, vh).transpose(0, 2, 1, 3).reshape(b, s, d)
        x = x + (a @ lp["wo"] + lp["bo"])
        xn2 = _layer_norm(x, lp["ln2_g"], lp["ln2_b"])
        x = x + (jnp.maximum(xn2 @ lp["w1"] + lp["fb1"], 0.0) @ lp["w2"] + lp["fb2"])
    return _layer_norm(x, params["lnf_g"], params["lnf_b"])


if __name__ == "__main__":
    key = jax.random.PRNGKey(0)
    k_img, k_txt, k_par = jax.random.split(key, 3)
    img_features_proj = jax.random.normal(k_img, (B, L_IMG, D_MODEL), jnp.float32)
    text_features = jax.random.normal(k_txt, (B, L_TXT, D_MODEL), jnp.float32)
    # second example has 3 padded text tokens
    text_mask = jnp.array([[1] * L_TXT,
                           [1, 1, 1, 1, 1, 0, 0, 0]], dtype=jnp.int32)
    params = make_params(k_par)

    out = sequence_concat_composer(img_features_proj, text_features, text_mask, params)
    out = jax.block_until_ready(out)

    ref = ref_forward(img_features_proj, text_features, text_mask, params)
    assert out.shape == (B, S, D_MODEL)
    assert jnp.allclose(out, ref, atol=1e-3, rtol=1e-3), "Pallas output mismatch vs JAX reference"

    print("KERNEL_OK")
</pallas_src>

<mosaic_0001>
module attributes {stable_mosaic.version = 11 : i64} {
  func.func @fused_encoder_kernel(%arg0: i32, %arg1: memref<1x8x32xf32, #tpu.memory_space<vmem>>, %arg2: memref<1x8x32xf32, #tpu.memory_space<vmem>>, %arg3: memref<1x1x16xf32, #tpu.memory_space<vmem>>, %arg4: memref<16x32xf32, #tpu.memory_space<vmem>>, %arg5: memref<2x32x32xf32, #tpu.memory_space<vmem>>, %arg6: memref<2x1x32xf32, #tpu.memory_space<vmem>>, %arg7: memref<2x32x32xf32, #tpu.memory_space<vmem>>, %arg8: memref<2x1x32xf32, #tpu.memory_space<vmem>>, %arg9: memref<2x32x32xf32, #tpu.memory_space<vmem>>, %arg10: memref<2x1x32xf32, #tpu.memory_space<vmem>>, %arg11: memref<2x32x32xf32, #tpu.memory_space<vmem>>, %arg12: memref<2x1x32xf32, #tpu.memory_space<vmem>>, %arg13: memref<2x1x32xf32, #tpu.memory_space<vmem>>, %arg14: memref<2x1x32xf32, #tpu.memory_space<vmem>>, %arg15: memref<2x32x64xf32, #tpu.memory_space<vmem>>, %arg16: memref<2x1x64xf32, #tpu.memory_space<vmem>>, %arg17: memref<2x64x32xf32, #tpu.memory_space<vmem>>, %arg18: memref<2x1x32xf32, #tpu.memory_space<vmem>>, %arg19: memref<2x1x32xf32, #tpu.memory_space<vmem>>, %arg20: memref<2x1x32xf32, #tpu.memory_space<vmem>>, %arg21: memref<1x32xf32, #tpu.memory_space<vmem>>, %arg22: memref<1x32xf32, #tpu.memory_space<vmem>>, %arg23: memref<1x16x32xf32, #tpu.memory_space<vmem>>) attributes {dimension_semantics = [#tpu.dimension_semantics<parallel>], iteration_bounds = array<i64: 2>, scalar_prefetch = 0 : i64, scratch_operands = 0 : i64, tpu.core_type = #tpu.core_type<tc>, window_params = [{transform_indices = @transform_0, window_bounds = array<i64: 1, 8, 32>}, {transform_indices = @transform_1, window_bounds = array<i64: 1, 8, 32>}, {transform_indices = @transform_2, window_bounds = array<i64: 1, 1, 16>}, {pipeline_mode = #tpu.pipeline_mode<synchronous>, transform_indices = @transform_3, window_bounds = array<i64: 16, 32>}, {pipeline_mode = #tpu.pipeline_mode<synchronous>, transform_indices = @transform_4, window_bounds = array<i64: 2, 32, 32>}, {pipeline_mode = #tpu.pipeline_mode<synchronous>, transform_indices = @transform_5, window_bounds = array<i64: 2, 1, 32>}, {pipeline_mode = #tpu.pipeline_mode<synchronous>, transform_indices = @transform_6, window_bounds = array<i64: 2, 32, 32>}, {pipeline_mode = #tpu.pipeline_mode<synchronous>, transform_indices = @transform_7, window_bounds = array<i64: 2, 1, 32>}, {pipeline_mode = #tpu.pipeline_mode<synchronous>, transform_indices = @transform_8, window_bounds = array<i64: 2, 32, 32>}, {pipeline_mode = #tpu.pipeline_mode<synchronous>, transform_indices = @transform_9, window_bounds = array<i64: 2, 1, 32>}, {pipeline_mode = #tpu.pipeline_mode<synchronous>, transform_indices = @transform_10, window_bounds = array<i64: 2, 32, 32>}, {pipeline_mode = #tpu.pipeline_mode<synchronous>, transform_indices = @transform_11, window_bounds = array<i64: 2, 1, 32>}, {pipeline_mode = #tpu.pipeline_mode<synchronous>, transform_indices = @transform_12, window_bounds = array<i64: 2, 1, 32>}, {pipeline_mode = #tpu.pipeline_mode<synchronous>, transform_indices = @transform_13, window_bounds = array<i64: 2, 1, 32>}, {pipeline_mode = #tpu.pipeline_mode<synchronous>, transform_indices = @transform_14, window_bounds = array<i64: 2, 32, 64>}, {pipeline_mode = #tpu.pipeline_mode<synchronous>, transform_indices = @transform_15, window_bounds = array<i64: 2, 1, 64>}, {pipeline_mode = #tpu.pipeline_mode<synchronous>, transform_indices = @transform_16, window_bounds = array<i64: 2, 64, 32>}, {pipeline_mode = #tpu.pipeline_mode<synchronous>, transform_indices = @transform_17, window_bounds = array<i64: 2, 1, 32>}, {pipeline_mode = #tpu.pipeline_mode<synchronous>, transform_indices = @transform_18, window_bounds = array<i64: 2, 1, 32>}, {pipeline_mode = #tpu.pipeline_mode<synchronous>, transform_indices = @transform_19, window_bounds = array<i64: 2, 1, 32>}, {pipeline_mode = #tpu.pipeline_mode<synchronous>, transform_indices = @transform_20, window_bounds = array<i64: 1, 32>}, {pipeline_mode = #tpu.pipeline_mode<synchronous>, transform_indices = @transform_21, window_bounds = array<i64: 1, 32>}, {transform_indices = @transform_22, window_bounds = array<i64: 1, 16, 32>}]} {
    %c0 = arith.constant 0 : index
    %c0_0 = arith.constant 0 : index
    %c0_1 = arith.constant 0 : index
    %0 = vector.load %arg1[%c0, %c0_0, %c0_1] : memref<1x8x32xf32, #tpu.memory_space<vmem>>, vector<1x8x32xf32>
    %1 = vector.shape_cast %0 : vector<1x8x32xf32> to vector<8x32xf32>
    %c0_2 = arith.constant 0 : index
    %c0_3 = arith.constant 0 : index
    %c0_4 = arith.constant 0 : index
    %2 = vector.load %arg2[%c0_2, %c0_3, %c0_4] : memref<1x8x32xf32, #tpu.memory_space<vmem>>, vector<1x8x32xf32>
    %3 = vector.shape_cast %2 : vector<1x8x32xf32> to vector<8x32xf32>
    %4 = tpu.concatenate %1, %3 in 0 : vector<8x32xf32>, vector<8x32xf32> -> vector<16x32xf32>
    %c0_5 = arith.constant 0 : index
    %c0_6 = arith.constant 0 : index
    %5 = vector.load %arg4[%c0_5, %c0_6] : memref<16x32xf32, #tpu.memory_space<vmem>>, vector<16x32xf32>
    %6 = arith.addf %4, %5 : vector<16x32xf32>
    %c0_7 = arith.constant 0 : index
    %c0_8 = arith.constant 0 : index
    %c0_9 = arith.constant 0 : index
    %7 = vector.load %arg3[%c0_7, %c0_8, %c0_9] : memref<1x1x16xf32, #tpu.memory_space<vmem>>, vector<1x1x16xf32>
    %8 = vector.shape_cast %7 : vector<1x1x16xf32> to vector<1x16xf32>
    %cst = arith.constant 0.000000e+00 : f32
    %9 = vector.broadcast %cst : f32 to vector<1x16xf32>
    %10 = arith.cmpf ogt, %8, %9 : vector<1x16xf32>
    %cst_10 = arith.constant 0.000000e+00 : f32
    %cst_11 = arith.constant -1.000000e+09 : f32
    %11 = vector.broadcast %cst_10 : f32 to vector<1x16xf32>
    %12 = vector.broadcast %cst_11 : f32 to vector<1x16xf32>
    %13 = arith.select %10, %11, %12 : vector<1x16xi1>, vector<1x16xf32>
    %c0_12 = arith.constant 0 : index
    %c0_13 = arith.constant 0 : index
    %c0_14 = arith.constant 0 : index
    %14 = vector.load %arg13[%c0_12, %c0_13, %c0_14] : memref<2x1x32xf32, #tpu.memory_space<vmem>>, vector<1x1x32xf32>
    %15 = vector.shape_cast %14 : vector<1x1x32xf32> to vector<1x32xf32>
    %c0_15 = arith.constant 0 : index
    %c0_16 = arith.constant 0 : index
    %c0_17 = arith.constant 0 : index
    %16 = vector.load %arg14[%c0_15, %c0_16, %c0_17] : memref<2x1x32xf32, #tpu.memory_space<vmem>>, vector<1x1x32xf32>
    %17 = vector.shape_cast %16 : vector<1x1x32xf32> to vector<1x32xf32>
    %cst_18 = arith.constant dense<0.000000e+00> : vector<16xf32>
    %18 = vector.multi_reduction <add>, %6, %cst_18 [1] : vector<16x32xf32> to vector<16xf32>
    %19 = vector.shape_cast %18 : vector<16xf32> to vector<16x1xf32>
    %cst_19 = arith.constant 3.200000e+01 : f32
    %20 = vector.broadcast %cst_19 : f32 to vector<16x1xf32>
    %21 = arith.divf %19, %20 : vector<16x1xf32>
    %22 = vector.broadcast %21 : vector<16x1xf32> to vector<16x32xf32>
    %23 = arith.subf %6, %22 : vector<16x32xf32>
    %24 = arith.mulf %23, %23 : vector<16x32xf32>
    %cst_20 = arith.constant dense<0.000000e+00> : vector<16xf32>
    %25 = vector.multi_reduction <add>, %24, %cst_20 [1] : vector<16x32xf32> to vector<16xf32>
    %26 = vector.shape_cast %25 : vector<16xf32> to vector<16x1xf32>
    %cst_21 = arith.constant 3.100000e+01 : f32
    %27 = vector.broadcast %cst_21 : f32 to vector<16x1xf32>
    %28 = arith.divf %26, %27 : vector<16x1xf32>
    %29 = math.sqrt %28 : vector<16x1xf32>
    %30 = vector.broadcast %21 : vector<16x1xf32> to vector<16x32xf32>
    %31 = arith.subf %6, %30 : vector<16x32xf32>
    %32 = vector.broadcast %15 : vector<1x32xf32> to vector<16x32xf32>
    %33 = arith.mulf %32, %31 : vector<16x32xf32>
    %cst_22 = arith.constant 9.99999997E-7 : f32
    %34 = vector.broadcast %cst_22 : f32 to vector<16x1xf32>
    %35 = arith.addf %29, %34 : vector<16x1xf32>
    %36 = vector.broadcast %35 : vector<16x1xf32> to vector<16x32xf32>
    %37 = arith.divf %33, %36 : vector<16x32xf32>
    %38 = vector.broadcast %17 : vector<1x32xf32> to vector<16x32xf32>
    %39 = arith.addf %37, %38 : vector<16x32xf32>
    %c0_23 = arith.constant 0 : index
    %c0_24 = arith.constant 0 : index
    %c0_25 = arith.constant 0 : index
    %40 = vector.load %arg5[%c0_23, %c0_24, %c0_25] : memref<2x32x32xf32, #tpu.memory_space<vmem>>, vector<1x32x32xf32>
    %41 = vector.shape_cast %40 : vector<1x32x32xf32> to vector<32x32xf32>
    %cst_26 = arith.constant dense<0.000000e+00> : vector<16x32xf32>
    %42 = tpu.matmul %39, %41, %cst_26 {dimension_numbers = #tpu.dot_dimension_numbers<[1], [0], [0], [1], [0, 0, 1, 1], [], []>} : vector<16x32xf32>, vector<32x32xf32>, vector<16x32xf32> -> vector<16x32xf32>
    %c0_27 = arith.constant 0 : index
    %c0_28 = arith.constant 0 : index
    %c0_29 = arith.constant 0 : index
    %43 = vector.load %arg6[%c0_27, %c0_28, %c0_29] : memref<2x1x32xf32, #tpu.memory_space<vmem>>, vector<1x1x32xf32>
    %44 = vector.shape_cast %43 : vector<1x1x32xf32> to vector<1x32xf32>
    %45 = vector.broadcast %44 : vector<1x32xf32> to vector<16x32xf32>
    %46 = arith.addf %42, %45 : vector<16x32xf32>
    %c0_30 = arith.constant 0 : index
    %c0_31 = arith.constant 0 : index
    %c0_32 = arith.constant 0 : index
    %47 = vector.load %arg7[%c0_30, %c0_31, %c0_32] : memref<2x32x32xf32, #tpu.memory_space<vmem>>, vector<1x32x32xf32>
    %48 = vector.shape_cast %47 : vector<1x32x32xf32> to vector<32x32xf32>
    %cst_33 = arith.constant dense<0.000000e+00> : vector<16x32xf32>
    %49 = tpu.matmul %39, %48, %cst_33 {dimension_numbers = #tpu.dot_dimension_numbers<[1], [0], [0], [1], [0, 0, 1, 1], [], []>} : vector<16x32xf32>, vector<32x32xf32>, vector<16x32xf32> -> vector<16x32xf32>
    %c0_34 = arith.constant 0 : index
    %c0_35 = arith.constant 0 : index
    %c0_36 = arith.constant 0 : index
    %50 = vector.load %arg8[%c0_34, %c0_35, %c0_36] : memref<2x1x32xf32, #tpu.memory_space<vmem>>, vector<1x1x32xf32>
    %51 = vector.shape_cast %50 : vector<1x1x32xf32> to vector<1x32xf32>
    %52 = vector.broadcast %51 : vector<1x32xf32> to vector<16x32xf32>
    %53 = arith.addf %49, %52 : vector<16x32xf32>
    %c0_37 = arith.constant 0 : index
    %c0_38 = arith.constant 0 : index
    %c0_39 = arith.constant 0 : index
    %54 = vector.load %arg9[%c0_37, %c0_38, %c0_39] : memref<2x32x32xf32, #tpu.memory_space<vmem>>, vector<1x32x32xf32>
    %55 = vector.shape_cast %54 : vector<1x32x32xf32> to vector<32x32xf32>
    %cst_40 = arith.constant dense<0.000000e+00> : vector<16x32xf32>
    %56 = tpu.matmul %39, %55, %cst_40 {dimension_numbers = #tpu.dot_dimension_numbers<[1], [0], [0], [1], [0, 0, 1, 1], [], []>} : vector<16x32xf32>, vector<32x32xf32>, vector<16x32xf32> -> vector<16x32xf32>
    %c0_41 = arith.constant 0 : index
    %c0_42 = arith.constant 0 : index
    %c0_43 = arith.constant 0 : index
    %57 = vector.load %arg10[%c0_41, %c0_42, %c0_43] : memref<2x1x32xf32, #tpu.memory_space<vmem>>, vector<1x1x32xf32>
    %58 = vector.shape_cast %57 : vector<1x1x32xf32> to vector<1x32xf32>
    %59 = vector.broadcast %58 : vector<1x32xf32> to vector<16x32xf32>
    %60 = arith.addf %56, %59 : vector<16x32xf32>
    %61 = vector.extract_strided_slice %46 {offsets = [0, 0], sizes = [16, 8], strides = [1, 1]} : vector<16x32xf32> to vector<16x8xf32>
    %62 = vector.extract_strided_slice %53 {offsets = [0, 0], sizes = [16, 8], strides = [1, 1]} : vector<16x32xf32> to vector<16x8xf32>
    %63 = vector.extract_strided_slice %60 {offsets = [0, 0], sizes = [16, 8], strides = [1, 1]} : vector<16x32xf32> to vector<16x8xf32>
    %cst_44 = arith.constant dense<0.000000e+00> : vector<16x16xf32>
    %64 = tpu.matmul %61, %62, %cst_44 {dimension_numbers = #tpu.dot_dimension_numbers<[1], [1], [0], [0], [0, 0, 1, 0], [], []>} : vector<16x8xf32>, vector<16x8xf32>, vector<16x16xf32> -> vector<16x16xf32>
    %65 = vector.broadcast %13 : vector<1x16xf32> to vector<16x16xf32>
    %66 = arith.addf %64, %65 : vector<16x16xf32>
    %cst_45 = arith.constant dense<0xFF800000> : vector<16xf32>
    %67 = vector.multi_reduction <maximumf>, %66, %cst_45 [1] : vector<16x16xf32> to vector<16xf32>
    %68 = vector.shape_cast %67 : vector<16xf32> to vector<16x1xf32>
    %69 = vector.broadcast %68 : vector<16x1xf32> to vector<16x16xf32>
    %70 = arith.subf %66, %69 : vector<16x16xf32>
    %71 = math.exp %70 : vector<16x16xf32>
    %cst_46 = arith.constant dense<0.000000e+00> : vector<16xf32>
    %72 = vector.multi_reduction <add>, %71, %cst_46 [1] : vector<16x16xf32> to vector<16xf32>
    %73 = vector.shape_cast %72 : vector<16xf32> to vector<16x1xf32>
    %74 = vector.broadcast %73 : vector<16x1xf32> to vector<16x16xf32>
    %75 = arith.divf %71, %74 : vector<16x16xf32>
    %cst_47 = arith.constant dense<0.000000e+00> : vector<16x8xf32>
    %76 = tpu.matmul %75, %63, %cst_47 {dimension_numbers = #tpu.dot_dimension_numbers<[1], [0], [0], [1], [0, 0, 1, 1], [], []>} : vector<16x16xf32>, vector<16x8xf32>, vector<16x8xf32> -> vector<16x8xf32>
    %77 = vector.extract_strided_slice %46 {offsets = [0, 8], sizes = [16, 8], strides = [1, 1]} : vector<16x32xf32> to vector<16x8xf32>
    %78 = vector.extract_strided_slice %53 {offsets = [0, 8], sizes = [16, 8], strides = [1, 1]} : vector<16x32xf32> to vector<16x8xf32>
    %79 = vector.extract_strided_slice %60 {offsets = [0, 8], sizes = [16, 8], strides = [1, 1]} : vector<16x32xf32> to vector<16x8xf32>
    %cst_48 = arith.constant dense<0.000000e+00> : vector<16x16xf32>
    %80 = tpu.matmul %77, %78, %cst_48 {dimension_numbers = #tpu.dot_dimension_numbers<[1], [1], [0], [0], [0, 0, 1, 0], [], []>} : vector<16x8xf32>, vector<16x8xf32>, vector<16x16xf32> -> vector<16x16xf32>
    %81 = vector.broadcast %13 : vector<1x16xf32> to vector<16x16xf32>
    %82 = arith.addf %80, %81 : vector<16x16xf32>
    %cst_49 = arith.constant dense<0xFF800000> : vector<16xf32>
    %83 = vector.multi_reduction <maximumf>, %82, %cst_49 [1] : vector<16x16xf32> to vector<16xf32>
    %84 = vector.shape_cast %83 : vector<16xf32> to vector<16x1xf32>
    %85 = vector.broadcast %84 : vector<16x1xf32> to vector<16x16xf32>
    %86 = arith.subf %82, %85 : vector<16x16xf32>
    %87 = math.exp %86 : vector<16x16xf32>
    %cst_50 = arith.constant dense<0.000000e+00> : vector<16xf32>
    %88 = vector.multi_reduction <add>, %87, %cst_50 [1] : vector<16x16xf32> to vector<16xf32>
    %89 = vector.shape_cast %88 : vector<16xf32> to vector<16x1xf32>
    %90 = vector.broadcast %89 : vector<16x1xf32> to vector<16x16xf32>
    %91 = arith.divf %87, %90 : vector<16x16xf32>
    %cst_51 = arith.constant dense<0.000000e+00> : vector<16x8xf32>
    %92 = tpu.matmul %91, %79, %cst_51 {dimension_numbers = #tpu.dot_dimension_numbers<[1], [0], [0], [1], [0, 0, 1, 1], [], []>} : vector<16x16xf32>, vector<16x8xf32>, vector<16x8xf32> -> vector<16x8xf32>
    %93 = vector.extract_strided_slice %46 {offsets = [0, 16], sizes = [16, 8], strides = [1, 1]} : vector<16x32xf32> to vector<16x8xf32>
    %94 = vector.extract_strided_slice %53 {offsets = [0, 16], sizes = [16, 8], strides = [1, 1]} : vector<16x32xf32> to vector<16x8xf32>
    %95 = vector.extract_strided_slice %60 {offsets = [0, 16], sizes = [16, 8], strides = [1, 1]} : vector<16x32xf32> to vector<16x8xf32>
    %cst_52 = arith.constant dense<0.000000e+00> : vector<16x16xf32>
    %96 = tpu.matmul %93, %94, %cst_52 {dimension_numbers = #tpu.dot_dimension_numbers<[1], [1], [0], [0], [0, 0, 1, 0], [], []>} : vector<16x8xf32>, vector<16x8xf32>, vector<16x16xf32> -> vector<16x16xf32>
    %97 = vector.broadcast %13 : vector<1x16xf32> to vector<16x16xf32>
    %98 = arith.addf %96, %97 : vector<16x16xf32>
    %cst_53 = arith.constant dense<0xFF800000> : vector<16xf32>
    %99 = vector.multi_reduction <maximumf>, %98, %cst_53 [1] : vector<16x16xf32> to vector<16xf32>
    %100 = vector.shape_cast %99 : vector<16xf32> to vector<16x1xf32>
    %101 = vector.broadcast %100 : vector<16x1xf32> to vector<16x16xf32>
    %102 = arith.subf %98, %101 : vector<16x16xf32>
    %103 = math.exp %102 : vector<16x16xf32>
    %cst_54 = arith.constant dense<0.000000e+00> : vector<16xf32>
    %104 = vector.multi_reduction <add>, %103, %cst_54 [1] : vector<16x16xf32> to vector<16xf32>
    %105 = vector.shape_cast %104 : vector<16xf32> to vector<16x1xf32>
    %106 = vector.broadcast %105 : vector<16x1xf32> to vector<16x16xf32>
    %107 = arith.divf %103, %106 : vector<16x16xf32>
    %cst_55 = arith.constant dense<0.000000e+00> : vector<16x8xf32>
    %108 = tpu.matmul %107, %95, %cst_55 {dimension_numbers = #tpu.dot_dimension_numbers<[1], [0], [0], [1], [0, 0, 1, 1], [], []>} : vector<16x16xf32>, vector<16x8xf32>, vector<16x8xf32> -> vector<16x8xf32>
    %109 = vector.extract_strided_slice %46 {offsets = [0, 24], sizes = [16, 8], strides = [1, 1]} : vector<16x32xf32> to vector<16x8xf32>
    %110 = vector.extract_strided_slice %53 {offsets = [0, 24], sizes = [16, 8], strides = [1, 1]} : vector<16x32xf32> to vector<16x8xf32>
    %111 = vector.extract_strided_slice %60 {offsets = [0, 24], sizes = [16, 8], strides = [1, 1]} : vector<16x32xf32> to vector<16x8xf32>
    %cst_56 = arith.constant dense<0.000000e+00> : vector<16x16xf32>
    %112 = tpu.matmul %109, %110, %cst_56 {dimension_numbers = #tpu.dot_dimension_numbers<[1], [1], [0], [0], [0, 0, 1, 0], [], []>} : vector<16x8xf32>, vector<16x8xf32>, vector<16x16xf32> -> vector<16x16xf32>
    %113 = vector.broadcast %13 : vector<1x16xf32> to vector<16x16xf32>
    %114 = arith.addf %112, %113 : vector<16x16xf32>
    %cst_57 = arith.constant dense<0xFF800000> : vector<16xf32>
    %115 = vector.multi_reduction <maximumf>, %114, %cst_57 [1] : vector<16x16xf32> to vector<16xf32>
    %116 = vector.shape_cast %115 : vector<16xf32> to vector<16x1xf32>
    %117 = vector.broadcast %116 : vector<16x1xf32> to vector<16x16xf32>
    %118 = arith.subf %114, %117 : vector<16x16xf32>
    %119 = math.exp %118 : vector<16x16xf32>
    %cst_58 = arith.constant dense<0.000000e+00> : vector<16xf32>
    %120 = vector.multi_reduction <add>, %119, %cst_58 [1] : vector<16x16xf32> to vector<16xf32>
    %121 = vector.shape_cast %120 : vector<16xf32> to vector<16x1xf32>
    %122 = vector.broadcast %121 : vector<16x1xf32> to vector<16x16xf32>
    %123 = arith.divf %119, %122 : vector<16x16xf32>
    %cst_59 = arith.constant dense<0.000000e+00> : vector<16x8xf32>
    %124 = tpu.matmul %123, %111, %cst_59 {dimension_numbers = #tpu.dot_dimension_numbers<[1], [0], [0], [1], [0, 0, 1, 1], [], []>} : vector<16x16xf32>, vector<16x8xf32>, vector<16x8xf32> -> vector<16x8xf32>
    %125 = tpu.concatenate %76, %92, %108, %124 in 1 : vector<16x8xf32>, vector<16x8xf32>, vector<16x8xf32>, vector<16x8xf32> -> vector<16x32xf32>
    %c0_60 = arith.constant 0 : index
    %c0_61 = arith.constant 0 : index
    %c0_62 = arith.constant 0 : index
    %126 = vector.load %arg11[%c0_60, %c0_61, %c0_62] : memref<2x32x32xf32, #tpu.memory_space<vmem>>, vector<1x32x32xf32>
    %127 = vector.shape_cast %126 : vector<1x32x32xf32> to vector<32x32xf32>
    %cst_63 = arith.constant dense<0.000000e+00> : vector<16x32xf32>
    %128 = tpu.matmul %125, %127, %cst_63 {dimension_numbers = #tpu.dot_dimension_numbers<[1], [0], [0], [1], [0, 0, 1, 1], [], []>} : vector<16x32xf32>, vector<32x32xf32>, vector<16x32xf32> -> vector<16x32xf32>
    %129 = arith.addf %6, %128 : vector<16x32xf32>
    %c0_64 = arith.constant 0 : index
    %c0_65 = arith.constant 0 : index
    %c0_66 = arith.constant 0 : index
    %130 = vector.load %arg12[%c0_64, %c0_65, %c0_66] : memref<2x1x32xf32, #tpu.memory_space<vmem>>, vector<1x1x32xf32>
    %131 = vector.shape_cast %130 : vector<1x1x32xf32> to vector<1x32xf32>
    %132 = vector.broadcast %131 : vector<1x32xf32> to vector<16x32xf32>
    %133 = arith.addf %129, %132 : vector<16x32xf32>
    %c0_67 = arith.constant 0 : index
    %c0_68 = arith.constant 0 : index
    %c0_69 = arith.constant 0 : index
    %134 = vector.load %arg19[%c0_67, %c0_68, %c0_69] : memref<2x1x32xf32, #tpu.memory_space<vmem>>, vector<1x1x32xf32>
    %135 = vector.shape_cast %134 : vector<1x1x32xf32> to vector<1x32xf32>
    %c0_70 = arith.constant 0 : index
    %c0_71 = arith.constant 0 : index
    %c0_72 = arith.constant 0 : index
    %136 = vector.load %arg20[%c0_70, %c0_71, %c0_72] : memref<2x1x32xf32, #tpu.memory_space<vmem>>, vector<1x1x32xf32>
    %137 = vector.shape_cast %136 : vector<1x1x32xf32> to vector<1x32xf32>
    %cst_73 = arith.constant dense<0.000000e+00> : vector<16xf32>
    %138 = vector.multi_reduction <add>, %133, %cst_73 [1] : vector<16x32xf32> to vector<16xf32>
    %139 = vector.shape_cast %138 : vector<16xf32> to vector<16x1xf32>
    %cst_74 = arith.constant 3.200000e+01 : f32
    %140 = vector.broadcast %cst_74 : f32 to vector<16x1xf32>
    %141 = arith.divf %139, %140 : vector<16x1xf32>
    %142 = vector.broadcast %141 : vector<16x1xf32> to vector<16x32xf32>
    %143 = arith.subf %133, %142 : vector<16x32xf32>
    %144 = arith.mulf %143, %143 : vector<16x32xf32>
    %cst_75 = arith.constant dense<0.000000e+00> : vector<16xf32>
    %145 = vector.multi_reduction <add>, %144, %cst_75 [1] : vector<16x32xf32> to vector<16xf32>
    %146 = vector.shape_cast %145 : vector<16xf32> to vector<16x1xf32>
    %cst_76 = arith.constant 3.100000e+01 : f32
    %147 = vector.broadcast %cst_76 : f32 to vector<16x1xf32>
    %148 = arith.divf %146, %147 : vector<16x1xf32>
    %149 = math.sqrt %148 : vector<16x1xf32>
    %150 = vector.broadcast %141 : vector<16x1xf32> to vector<16x32xf32>
    %151 = arith.subf %133, %150 : vector<16x32xf32>
    %152 = vector.broadcast %135 : vector<1x32xf32> to vector<16x32xf32>
    %153 = arith.mulf %152, %151 : vector<16x32xf32>
    %cst_77 = arith.constant 9.99999997E-7 : f32
    %154 = vector.broadcast %cst_77 : f32 to vector<16x1xf32>
    %155 = arith.addf %149, %154 : vector<16x1xf32>
    %156 = vector.broadcast %155 : vector<16x1xf32> to vector<16x32xf32>
    %157 = arith.divf %153, %156 : vector<16x32xf32>
    %158 = vector.broadcast %137 : vector<1x32xf32> to vector<16x32xf32>
    %159 = arith.addf %157, %158 : vector<16x32xf32>
    %c0_78 = arith.constant 0 : index
    %c0_79 = arith.constant 0 : index
    %c0_80 = arith.constant 0 : index
    %160 = vector.load %arg15[%c0_78, %c0_79, %c0_80] : memref<2x32x64xf32, #tpu.memory_space<vmem>>, vector<1x32x64xf32>
    %161 = vector.shape_cast %160 : vector<1x32x64xf32> to vector<32x64xf32>
    %cst_81 = arith.constant dense<0.000000e+00> : vector<16x64xf32>
    %162 = tpu.matmul %159, %161, %cst_81 {dimension_numbers = #tpu.dot_dimension_numbers<[1], [0], [0], [1], [0, 0, 1, 1], [], []>} : vector<16x32xf32>, vector<32x64xf32>, vector<16x64xf32> -> vector<16x64xf32>
    %c0_82 = arith.constant 0 : index
    %c0_83 = arith.constant 0 : index
    %c0_84 = arith.constant 0 : index
    %163 = vector.load %arg16[%c0_82, %c0_83, %c0_84] : memref<2x1x64xf32, #tpu.memory_space<vmem>>, vector<1x1x64xf32>
    %164 = vector.shape_cast %163 : vector<1x1x64xf32> to vector<1x64xf32>
    %165 = vector.broadcast %164 : vector<1x64xf32> to vector<16x64xf32>
    %166 = arith.addf %162, %165 : vector<16x64xf32>
    %cst_85 = arith.constant 0.000000e+00 : f32
    %167 = vector.broadcast %cst_85 : f32 to vector<16x64xf32>
    %168 = arith.maximumf %166, %167 : vector<16x64xf32>
    %c0_86 = arith.constant 0 : index
    %c0_87 = arith.constant 0 : index
    %c0_88 = arith.constant 0 : index
    %169 = vector.load %arg17[%c0_86, %c0_87, %c0_88] : memref<2x64x32xf32, #tpu.memory_space<vmem>>, vector<1x64x32xf32>
    %170 = vector.shape_cast %169 : vector<1x64x32xf32> to vector<64x32xf32>
    %cst_89 = arith.constant dense<0.000000e+00> : vector<16x32xf32>
    %171 = tpu.matmul %168, %170, %cst_89 {dimension_numbers = #tpu.dot_dimension_numbers<[1], [0], [0], [1], [0, 0, 1, 1], [], []>} : vector<16x64xf32>, vector<64x32xf32>, vector<16x32xf32> -> vector<16x32xf32>
    %172 = arith.addf %133, %171 : vector<16x32xf32>
    %c0_90 = arith.constant 0 : index
    %c0_91 = arith.constant 0 : index
    %c0_92 = arith.constant 0 : index
    %173 = vector.load %arg18[%c0_90, %c0_91, %c0_92] : memref<2x1x32xf32, #tpu.memory_space<vmem>>, vector<1x1x32xf32>
    %174 = vector.shape_cast %173 : vector<1x1x32xf32> to vector<1x32xf32>
    %175 = vector.broadcast %174 : vector<1x32xf32> to vector<16x32xf32>
    %176 = arith.addf %172, %175 : vector<16x32xf32>
    %c1 = arith.constant 1 : index
    %c0_93 = arith.constant 0 : index
    %c0_94 = arith.constant 0 : index
    %177 = vector.load %arg13[%c1, %c0_93, %c0_94] : memref<2x1x32xf32, #tpu.memory_space<vmem>>, vector<1x1x32xf32>
    %178 = vector.shape_cast %177 : vector<1x1x32xf32> to vector<1x32xf32>
    %c1_95 = arith.constant 1 : index
    %c0_96 = arith.constant 0 : index
    %c0_97 = arith.constant 0 : index
    %179 = vector.load %arg14[%c1_95, %c0_96, %c0_97] : memref<2x1x32xf32, #tpu.memory_space<vmem>>, vector<1x1x32xf32>
    %180 = vector.shape_cast %179 : vector<1x1x32xf32> to vector<1x32xf32>
    %cst_98 = arith.constant dense<0.000000e+00> : vector<16xf32>
    %181 = vector.multi_reduction <add>, %176, %cst_98 [1] : vector<16x32xf32> to vector<16xf32>
    %182 = vector.shape_cast %181 : vector<16xf32> to vector<16x1xf32>
    %cst_99 = arith.constant 3.200000e+01 : f32
    %183 = vector.broadcast %cst_99 : f32 to vector<16x1xf32>
    %184 = arith.divf %182, %183 : vector<16x1xf32>
    %185 = vector.broadcast %184 : vector<16x1xf32> to vector<16x32xf32>
    %186 = arith.subf %176, %185 : vector<16x32xf32>
    %187 = arith.mulf %186, %186 : vector<16x32xf32>
    %cst_100 = arith.constant dense<0.000000e+00> : vector<16xf32>
    %188 = vector.multi_reduction <add>, %187, %cst_100 [1] : vector<16x32xf32> to vector<16xf32>
    %189 = vector.shape_cast %188 : vector<16xf32> to vector<16x1xf32>
    %cst_101 = arith.constant 3.100000e+01 : f32
    %190 = vector.broadcast %cst_101 : f32 to vector<16x1xf32>
    %191 = arith.divf %189, %190 : vector<16x1xf32>
    %192 = math.sqrt %191 : vector<16x1xf32>
    %193 = vector.broadcast %184 : vector<16x1xf32> to vector<16x32xf32>
    %194 = arith.subf %176, %193 : vector<16x32xf32>
    %195 = vector.broadcast %178 : vector<1x32xf32> to vector<16x32xf32>
    %196 = arith.mulf %195, %194 : vector<16x32xf32>
    %cst_102 = arith.constant 9.99999997E-7 : f32
    %197 = vector.broadcast %cst_102 : f32 to vector<16x1xf32>
    %198 = arith.addf %192, %197 : vector<16x1xf32>
    %199 = vector.broadcast %198 : vector<16x1xf32> to vector<16x32xf32>
    %200 = arith.divf %196, %199 : vector<16x32xf32>
    %201 = vector.broadcast %180 : vector<1x32xf32> to vector<16x32xf32>
    %202 = arith.addf %200, %201 : vector<16x32xf32>
    %c1_103 = arith.constant 1 : index
    %c0_104 = arith.constant 0 : index
    %c0_105 = arith.constant 0 : index
    %203 = vector.load %arg5[%c1_103, %c0_104, %c0_105] : memref<2x32x32xf32, #tpu.memory_space<vmem>>, vector<1x32x32xf32>
    %204 = vector.shape_cast %203 : vector<1x32x32xf32> to vector<32x32xf32>
    %cst_106 = arith.constant dense<0.000000e+00> : vector<16x32xf32>
    %205 = tpu.matmul %202, %204, %cst_106 {dimension_numbers = #tpu.dot_dimension_numbers<[1], [0], [0], [1], [0, 0, 1, 1], [], []>} : vector<16x32xf32>, vector<32x32xf32>, vector<16x32xf32> -> vector<16x32xf32>
    %c1_107 = arith.constant 1 : index
    %c0_108 = arith.constant 0 : index
    %c0_109 = arith.constant 0 : index
    %206 = vector.load %arg6[%c1_107, %c0_108, %c0_109] : memref<2x1x32xf32, #tpu.memory_space<vmem>>, vector<1x1x32xf32>
    %207 = vector.shape_cast %206 : vector<1x1x32xf32> to vector<1x32xf32>
    %208 = vector.broadcast %207 : vector<1x32xf32> to vector<16x32xf32>
    %209 = arith.addf %205, %208 : vector<16x32xf32>
    %c1_110 = arith.constant 1 : index
    %c0_111 = arith.constant 0 : index
    %c0_112 = arith.constant 0 : index
    %210 = vector.load %arg7[%c1_110, %c0_111, %c0_112] : memref<2x32x32xf32, #tpu.memory_space<vmem>>, vector<1x32x32xf32>
    %211 = vector.shape_cast %210 : vector<1x32x32xf32> to vector<32x32xf32>
    %cst_113 = arith.constant dense<0.000000e+00> : vector<16x32xf32>
    %212 = tpu.matmul %202, %211, %cst_113 {dimension_numbers = #tpu.dot_dimension_numbers<[1], [0], [0], [1], [0, 0, 1, 1], [], []>} : vector<16x32xf32>, vector<32x32xf32>, vector<16x32xf32> -> vector<16x32xf32>
    %c1_114 = arith.constant 1 : index
    %c0_115 = arith.constant 0 : index
    %c0_116 = arith.constant 0 : index
    %213 = vector.load %arg8[%c1_114, %c0_115, %c0_116] : memref<2x1x32xf32, #tpu.memory_space<vmem>>, vector<1x1x32xf32>
    %214 = vector.shape_cast %213 : vector<1x1x32xf32> to vector<1x32xf32>
    %215 = vector.broadcast %214 : vector<1x32xf32> to vector<16x32xf32>
    %216 = arith.addf %212, %215 : vector<16x32xf32>
    %c1_117 = arith.constant 1 : index
    %c0_118 = arith.constant 0 : index
    %c0_119 = arith.constant 0 : index
    %217 = vector.load %arg9[%c1_117, %c0_118, %c0_119] : memref<2x32x32xf32, #tpu.memory_space<vmem>>, vector<1x32x32xf32>
    %218 = vector.shape_cast %217 : vector<1x32x32xf32> to vector<32x32xf32>
    %cst_120 = arith.constant dense<0.000000e+00> : vector<16x32xf32>
    %219 = tpu.matmul %202, %218, %cst_120 {dimension_numbers = #tpu.dot_dimension_numbers<[1], [0], [0], [1], [0, 0, 1, 1], [], []>} : vector<16x32xf32>, vector<32x32xf32>, vector<16x32xf32> -> vector<16x32xf32>
    %c1_121 = arith.constant 1 : index
    %c0_122 = arith.constant 0 : index
    %c0_123 = arith.constant 0 : index
    %220 = vector.load %arg10[%c1_121, %c0_122, %c0_123] : memref<2x1x32xf32, #tpu.memory_space<vmem>>, vector<1x1x32xf32>
    %221 = vector.shape_cast %220 : vector<1x1x32xf32> to vector<1x32xf32>
    %222 = vector.broadcast %221 : vector<1x32xf32> to vector<16x32xf32>
    %223 = arith.addf %219, %222 : vector<16x32xf32>
    %224 = vector.extract_strided_slice %209 {offsets = [0, 0], sizes = [16, 8], strides = [1, 1]} : vector<16x32xf32> to vector<16x8xf32>
    %225 = vector.extract_strided_slice %216 {offsets = [0, 0], sizes = [16, 8], strides = [1, 1]} : vector<16x32xf32> to vector<16x8xf32>
    %226 = vector.extract_strided_slice %223 {offsets = [0, 0], sizes = [16, 8], strides = [1, 1]} : vector<16x32xf32> to vector<16x8xf32>
    %cst_124 = arith.constant dense<0.000000e+00> : vector<16x16xf32>
    %227 = tpu.matmul %224, %225, %cst_124 {dimension_numbers = #tpu.dot_dimension_numbers<[1], [1], [0], [0], [0, 0, 1, 0], [], []>} : vector<16x8xf32>, vector<16x8xf32>, vector<16x16xf32> -> vector<16x16xf32>
    %228 = vector.broadcast %13 : vector<1x16xf32> to vector<16x16xf32>
    %229 = arith.addf %227, %228 : vector<16x16xf32>
    %cst_125 = arith.constant dense<0xFF800000> : vector<16xf32>
    %230 = vector.multi_reduction <maximumf>, %229, %cst_125 [1] : vector<16x16xf32> to vector<16xf32>
    %231 = vector.shape_cast %230 : vector<16xf32> to vector<16x1xf32>
    %232 = vector.broadcast %231 : vector<16x1xf32> to vector<16x16xf32>
    %233 = arith.subf %229, %232 : vector<16x16xf32>
    %234 = math.exp %233 : vector<16x16xf32>
    %cst_126 = arith.constant dense<0.000000e+00> : vector<16xf32>
    %235 = vector.multi_reduction <add>, %234, %cst_126 [1] : vector<16x16xf32> to vector<16xf32>
    %236 = vector.shape_cast %235 : vector<16xf32> to vector<16x1xf32>
    %237 = vector.broadcast %236 : vector<16x1xf32> to vector<16x16xf32>
    %238 = arith.divf %234, %237 : vector<16x16xf32>
    %cst_127 = arith.constant dense<0.000000e+00> : vector<16x8xf32>
    %239 = tpu.matmul %238, %226, %cst_127 {dimension_numbers = #tpu.dot_dimension_numbers<[1], [0], [0], [1], [0, 0, 1, 1], [], []>} : vector<16x16xf32>, vector<16x8xf32>, vector<16x8xf32> -> vector<16x8xf32>
    %240 = vector.extract_strided_slice %209 {offsets = [0, 8], sizes = [16, 8], strides = [1, 1]} : vector<16x32xf32> to vector<16x8xf32>
    %241 = vector.extract_strided_slice %216 {offsets = [0, 8], sizes = [16, 8], strides = [1, 1]} : vector<16x32xf32> to vector<16x8xf32>
    %242 = vector.extract_strided_slice %223 {offsets = [0, 8], sizes = [16, 8], strides = [1, 1]} : vector<16x32xf32> to vector<16x8xf32>
    %cst_128 = arith.constant dense<0.000000e+00> : vector<16x16xf32>
    %243 = tpu.matmul %240, %241, %cst_128 {dimension_numbers = #tpu.dot_dimension_numbers<[1], [1], [0], [0], [0, 0, 1, 0], [], []>} : vector<16x8xf32>, vector<16x8xf32>, vector<16x16xf32> -> vector<16x16xf32>
    %244 = vector.broadcast %13 : vector<1x16xf32> to vector<16x16xf32>
    %245 = arith.addf %243, %244 : vector<16x16xf32>
    %cst_129 = arith.constant dense<0xFF800000> : vector<16xf32>
    %246 = vector.multi_reduction <maximumf>, %245, %cst_129 [1] : vector<16x16xf32> to vector<16xf32>
    %247 = vector.shape_cast %246 : vector<16xf32> to vector<16x1xf32>
    %248 = vector.broadcast %247 : vector<16x1xf32> to vector<16x16xf32>
    %249 = arith.subf %245, %248 : vector<16x16xf32>
    %250 = math.exp %249 : vector<16x16xf32>
    %cst_130 = arith.constant dense<0.000000e+00> : vector<16xf32>
    %251 = vector.multi_reduction <add>, %250, %cst_130 [1] : vector<16x16xf32> to vector<16xf32>
    %252 = vector.shape_cast %251 : vector<16xf32> to vector<16x1xf32>
    %253 = vector.broadcast %252 : vector<16x1xf32> to vector<16x16xf32>
    %254 = arith.divf %250, %253 : vector<16x16xf32>
    %cst_131 = arith.constant dense<0.000000e+00> : vector<16x8xf32>
    %255 = tpu.matmul %254, %242, %cst_131 {dimension_numbers = #tpu.dot_dimension_numbers<[1], [0], [0], [1], [0, 0, 1, 1], [], []>} : vector<16x16xf32>, vector<16x8xf32>, vector<16x8xf32> -> vector<16x8xf32>
    %256 = vector.extract_strided_slice %209 {offsets = [0, 16], sizes = [16, 8], strides = [1, 1]} : vector<16x32xf32> to vector<16x8xf32>
    %257 = vector.extract_strided_slice %216 {offsets = [0, 16], sizes = [16, 8], strides = [1, 1]} : vector<16x32xf32> to vector<16x8xf32>
    %258 = vector.extract_strided_slice %223 {offsets = [0, 16], sizes = [16, 8], strides = [1, 1]} : vector<16x32xf32> to vector<16x8xf32>
    %cst_132 = arith.constant dense<0.000000e+00> : vector<16x16xf32>
    %259 = tpu.matmul %256, %257, %cst_132 {dimension_numbers = #tpu.dot_dimension_numbers<[1], [1], [0], [0], [0, 0, 1, 0], [], []>} : vector<16x8xf32>, vector<16x8xf32>, vector<16x16xf32> -> vector<16x16xf32>
    %260 = vector.broadcast %13 : vector<1x16xf32> to vector<16x16xf32>
    %261 = arith.addf %259, %260 : vector<16x16xf32>
    %cst_133 = arith.constant dense<0xFF800000> : vector<16xf32>
    %262 = vector.multi_reduction <maximumf>, %261, %cst_133 [1] : vector<16x16xf32> to vector<16xf32>
    %263 = vector.shape_cast %262 : vector<16xf32> to vector<16x1xf32>
    %264 = vector.broadcast %263 : vector<16x1xf32> to vector<16x16xf32>
    %265 = arith.subf %261, %264 : vector<16x16xf32>
    %266 = math.exp %265 : vector<16x16xf32>
    %cst_134 = arith.constant dense<0.000000e+00> : vector<16xf32>
    %267 = vector.multi_reduction <add>, %266, %cst_134 [1] : vector<16x16xf32> to vector<16xf32>
    %268 = vector.shape_cast %267 : vector<16xf32> to vector<16x1xf32>
    %269 = vector.broadcast %268 : vector<16x1xf32> to vector<16x16xf32>
    %270 = arith.divf %266, %269 : vector<16x16xf32>
    %cst_135 = arith.constant dense<0.000000e+00> : vector<16x8xf32>
    %271 = tpu.matmul %270, %258, %cst_135 {dimension_numbers = #tpu.dot_dimension_numbers<[1], [0], [0], [1], [0, 0, 1, 1], [], []>} : vector<16x16xf32>, vector<16x8xf32>, vector<16x8xf32> -> vector<16x8xf32>
    %272 = vector.extract_strided_slice %209 {offsets = [0, 24], sizes = [16, 8], strides = [1, 1]} : vector<16x32xf32> to vector<16x8xf32>
    %273 = vector.extract_strided_slice %216 {offsets = [0, 24], sizes = [16, 8], strides = [1, 1]} : vector<16x32xf32> to vector<16x8xf32>
    %274 = vector.extract_strided_slice %223 {offsets = [0, 24], sizes = [16, 8], strides = [1, 1]} : vector<16x32xf32> to vector<16x8xf32>
    %cst_136 = arith.constant dense<0.000000e+00> : vector<16x16xf32>
    %275 = tpu.matmul %272, %273, %cst_136 {dimension_numbers = #tpu.dot_dimension_numbers<[1], [1], [0], [0], [0, 0, 1, 0], [], []>} : vector<16x8xf32>, vector<16x8xf32>, vector<16x16xf32> -> vector<16x16xf32>
    %276 = vector.broadcast %13 : vector<1x16xf32> to vector<16x16xf32>
    %277 = arith.addf %275, %276 : vector<16x16xf32>
    %cst_137 = arith.constant dense<0xFF800000> : vector<16xf32>
    %278 = vector.multi_reduction <maximumf>, %277, %cst_137 [1] : vector<16x16xf32> to vector<16xf32>
    %279 = vector.shape_cast %278 : vector<16xf32> to vector<16x1xf32>
    %280 = vector.broadcast %279 : vector<16x1xf32> to vector<16x16xf32>
    %281 = arith.subf %277, %280 : vector<16x16xf32>
    %282 = math.exp %281 : vector<16x16xf32>
    %cst_138 = arith.constant dense<0.000000e+00> : vector<16xf32>
    %283 = vector.multi_reduction <add>, %282, %cst_138 [1] : vector<16x16xf32> to vector<16xf32>
    %284 = vector.shape_cast %283 : vector<16xf32> to vector<16x1xf32>
    %285 = vector.broadcast %284 : vector<16x1xf32> to vector<16x16xf32>
    %286 = arith.divf %282, %285 : vector<16x16xf32>
    %cst_139 = arith.constant dense<0.000000e+00> : vector<16x8xf32>
    %287 = tpu.matmul %286, %274, %cst_139 {dimension_numbers = #tpu.dot_dimension_numbers<[1], [0], [0], [1], [0, 0, 1, 1], [], []>} : vector<16x16xf32>, vector<16x8xf32>, vector<16x8xf32> -> vector<16x8xf32>
    %288 = tpu.concatenate %239, %255, %271, %287 in 1 : vector<16x8xf32>, vector<16x8xf32>, vector<16x8xf32>, vector<16x8xf32> -> vector<16x32xf32>
    %c1_140 = arith.constant 1 : index
    %c0_141 = arith.constant 0 : index
    %c0_142 = arith.constant 0 : index
    %289 = vector.load %arg11[%c1_140, %c0_141, %c0_142] : memref<2x32x32xf32, #tpu.memory_space<vmem>>, vector<1x32x32xf32>
    %290 = vector.shape_cast %289 : vector<1x32x32xf32> to vector<32x32xf32>
    %cst_143 = arith.constant dense<0.000000e+00> : vector<16x32xf32>
    %291 = tpu.matmul %288, %290, %cst_143 {dimension_numbers = #tpu.dot_dimension_numbers<[1], [0], [0], [1], [0, 0, 1, 1], [], []>} : vector<16x32xf32>, vector<32x32xf32>, vector<16x32xf32> -> vector<16x32xf32>
    %292 = arith.addf %176, %291 : vector<16x32xf32>
    %c1_144 = arith.constant 1 : index
    %c0_145 = arith.constant 0 : index
    %c0_146 = arith.constant 0 : index
    %293 = vector.load %arg12[%c1_144, %c0_145, %c0_146] : memref<2x1x32xf32, #tpu.memory_space<vmem>>, vector<1x1x32xf32>
    %294 = vector.shape_cast %293 : vector<1x1x32xf32> to vector<1x32xf32>
    %295 = vector.broadcast %294 : vector<1x32xf32> to vector<16x32xf32>
    %296 = arith.addf %292, %295 : vector<16x32xf32>
    %c1_147 = arith.constant 1 : index
    %c0_148 = arith.constant 0 : index
    %c0_149 = arith.constant 0 : index
    %297 = vector.load %arg19[%c1_147, %c0_148, %c0_149] : memref<2x1x32xf32, #tpu.memory_space<vmem>>, vector<1x1x32xf32>
    %298 = vector.shape_cast %297 : vector<1x1x32xf32> to vector<1x32xf32>
    %c1_150 = arith.constant 1 : index
    %c0_151 = arith.constant 0 : index
    %c0_152 = arith.constant 0 : index
    %299 = vector.load %arg20[%c1_150, %c0_151, %c0_152] : memref<2x1x32xf32, #tpu.memory_space<vmem>>, vector<1x1x32xf32>
    %300 = vector.shape_cast %299 : vector<1x1x32xf32> to vector<1x32xf32>
    %cst_153 = arith.constant dense<0.000000e+00> : vector<16xf32>
    %301 = vector.multi_reduction <add>, %296, %cst_153 [1] : vector<16x32xf32> to vector<16xf32>
    %302 = vector.shape_cast %301 : vector<16xf32> to vector<16x1xf32>
    %cst_154 = arith.constant 3.200000e+01 : f32
    %303 = vector.broadcast %cst_154 : f32 to vector<16x1xf32>
    %304 = arith.divf %302, %303 : vector<16x1xf32>
    %305 = vector.broadcast %304 : vector<16x1xf32> to vector<16x32xf32>
    %306 = arith.subf %296, %305 : vector<16x32xf32>
    %307 = arith.mulf %306, %306 : vector<16x32xf32>
    %cst_155 = arith.constant dense<0.000000e+00> : vector<16xf32>
    %308 = vector.multi_reduction <add>, %307, %cst_155 [1] : vector<16x32xf32> to vector<16xf32>
    %309 = vector.shape_cast %308 : vector<16xf32> to vector<16x1xf32>
    %cst_156 = arith.constant 3.100000e+01 : f32
    %310 = vector.broadcast %cst_156 : f32 to vector<16x1xf32>
    %311 = arith.divf %309, %310 : vector<16x1xf32>
    %312 = math.sqrt %311 : vector<16x1xf32>
    %313 = vector.broadcast %304 : vector<16x1xf32> to vector<16x32xf32>
    %314 = arith.subf %296, %313 : vector<16x32xf32>
    %315 = vector.broadcast %298 : vector<1x32xf32> to vector<16x32xf32>
    %316 = arith.mulf %315, %314 : vector<16x32xf32>
    %cst_157 = arith.constant 9.99999997E-7 : f32
    %317 = vector.broadcast %cst_157 : f32 to vector<16x1xf32>
    %318 = arith.addf %312, %317 : vector<16x1xf32>
    %319 = vector.broadcast %318 : vector<16x1xf32> to vector<16x32xf32>
    %320 = arith.divf %316, %319 : vector<16x32xf32>
    %321 = vector.broadcast %300 : vector<1x32xf32> to vector<16x32xf32>
    %322 = arith.addf %320, %321 : vector<16x32xf32>
    %c1_158 = arith.constant 1 : index
    %c0_159 = arith.constant 0 : index
    %c0_160 = arith.constant 0 : index
    %323 = vector.load %arg15[%c1_158, %c0_159, %c0_160] : memref<2x32x64xf32, #tpu.memory_space<vmem>>, vector<1x32x64xf32>
    %324 = vector.shape_cast %323 : vector<1x32x64xf32> to vector<32x64xf32>
    %cst_161 = arith.constant dense<0.000000e+00> : vector<16x64xf32>
    %325 = tpu.matmul %322, %324, %cst_161 {dimension_numbers = #tpu.dot_dimension_numbers<[1], [0], [0], [1], [0, 0, 1, 1], [], []>} : vector<16x32xf32>, vector<32x64xf32>, vector<16x64xf32> -> vector<16x64xf32>
    %c1_162 = arith.constant 1 : index
    %c0_163 = arith.constant 0 : index
    %c0_164 = arith.constant 0 : index
    %326 = vector.load %arg16[%c1_162, %c0_163, %c0_164] : memref<2x1x64xf32, #tpu.memory_space<vmem>>, vector<1x1x64xf32>
    %327 = vector.shape_cast %326 : vector<1x1x64xf32> to vector<1x64xf32>
    %328 = vector.broadcast %327 : vector<1x64xf32> to vector<16x64xf32>
    %329 = arith.addf %325, %328 : vector<16x64xf32>
    %cst_165 = arith.constant 0.000000e+00 : f32
    %330 = vector.broadcast %cst_165 : f32 to vector<16x64xf32>
    %331 = arith.maximumf %329, %330 : vector<16x64xf32>
    %c1_166 = arith.constant 1 : index
    %c0_167 = arith.constant 0 : index
    %c0_168 = arith.constant 0 : index
    %332 = vector.load %arg17[%c1_166, %c0_167, %c0_168] : memref<2x64x32xf32, #tpu.memory_space<vmem>>, vector<1x64x32xf32>
    %333 = vector.shape_cast %332 : vector<1x64x32xf32> to vector<64x32xf32>
    %cst_169 = arith.constant dense<0.000000e+00> : vector<16x32xf32>
    %334 = tpu.matmul %331, %333, %cst_169 {dimension_numbers = #tpu.dot_dimension_numbers<[1], [0], [0], [1], [0, 0, 1, 1], [], []>} : vector<16x64xf32>, vector<64x32xf32>, vector<16x32xf32> -> vector<16x32xf32>
    %335 = arith.addf %296, %334 : vector<16x32xf32>
    %c1_170 = arith.constant 1 : index
    %c0_171 = arith.constant 0 : index
    %c0_172 = arith.constant 0 : index
    %336 = vector.load %arg18[%c1_170, %c0_171, %c0_172] : memref<2x1x32xf32, #tpu.memory_space<vmem>>, vector<1x1x32xf32>
    %337 = vector.shape_cast %336 : vector<1x1x32xf32> to vector<1x32xf32>
    %338 = vector.broadcast %337 : vector<1x32xf32> to vector<16x32xf32>
    %339 = arith.addf %335, %338 : vector<16x32xf32>
    %c0_173 = arith.constant 0 : index
    %c0_174 = arith.constant 0 : index
    %340 = vector.load %arg21[%c0_173, %c0_174] : memref<1x32xf32, #tpu.memory_space<vmem>>, vector<1x32xf32>
    %c0_175 = arith.constant 0 : index
    %c0_176 = arith.constant 0 : index
    %341 = vector.load %arg22[%c0_175, %c0_176] : memref<1x32xf32, #tpu.memory_space<vmem>>, vector<1x32xf32>
    %cst_177 = arith.constant dense<0.000000e+00> : vector<16xf32>
    %342 = vector.multi_reduction <add>, %339, %cst_177 [1] : vector<16x32xf32> to vector<16xf32>
    %343 = vector.shape_cast %342 : vector<16xf32> to vector<16x1xf32>
    %cst_178 = arith.constant 3.200000e+01 : f32
    %344 = vector.broadcast %cst_178 : f32 to vector<16x1xf32>
    %345 = arith.divf %343, %344 : vector<16x1xf32>
    %346 = vector.broadcast %345 : vector<16x1xf32> to vector<16x32xf32>
    %347 = arith.subf %339, %346 : vector<16x32xf32>
    %348 = arith.mulf %347, %347 : vector<16x32xf32>
    %cst_179 = arith.constant dense<0.000000e+00> : vector<16xf32>
    %349 = vector.multi_reduction <add>, %348, %cst_179 [1] : vector<16x32xf32> to vector<16xf32>
    %350 = vector.shape_cast %349 : vector<16xf32> to vector<16x1xf32>
    %cst_180 = arith.constant 3.100000e+01 : f32
    %351 = vector.broadcast %cst_180 : f32 to vector<16x1xf32>
    %352 = arith.divf %350, %351 : vector<16x1xf32>
    %353 = math.sqrt %352 : vector<16x1xf32>
    %354 = vector.broadcast %345 : vector<16x1xf32> to vector<16x32xf32>
    %355 = arith.subf %339, %354 : vector<16x32xf32>
    %356 = vector.broadcast %340 : vector<1x32xf32> to vector<16x32xf32>
    %357 = arith.mulf %356, %355 : vector<16x32xf32>
    %cst_181 = arith.constant 9.99999997E-7 : f32
    %358 = vector.broadcast %cst_181 : f32 to vector<16x1xf32>
    %359 = arith.addf %353, %358 : vector<16x1xf32>
    %360 = vector.broadcast %359 : vector<16x1xf32> to vector<16x32xf32>
    %361 = arith.divf %357, %360 : vector<16x32xf32>
    %362 = vector.broadcast %341 : vector<1x32xf32> to vector<16x32xf32>
    %363 = arith.addf %361, %362 : vector<16x32xf32>
    %c0_182 = arith.constant 0 : index
    %c0_183 = arith.constant 0 : index
    %c0_184 = arith.constant 0 : index
    %364 = vector.load %arg23[%c0_182, %c0_183, %c0_184] : memref<1x16x32xf32, #tpu.memory_space<vmem>>, vector<1x16x32xf32>
    %365 = vector.shape_cast %364 : vector<1x16x32xf32> to vector<16x32xf32>
    %366 = vector.shape_cast %363 : vector<16x32xf32> to vector<1x16x32xf32>
    tpu.vector_store %arg23[%c0_182, %c0_183, %c0_184], %366 {strides = array<i32>} : memref<1x16x32xf32, #tpu.memory_space<vmem>>, vector<1x16x32xf32>,
    return
  }
  func.func @transform_0(%arg0: i32) -> (i32, i32, i32) {
    %c0_i32 = arith.constant 0 : i32
    %c0_i32_0 = arith.constant 0 : i32
    %c0_i32_1 = arith.constant 0 : i32
    return %arg0, %c0_i32, %c0_i32_0 : i32, i32, i32
  }
  func.func @transform_1(%arg0: i32) -> (i32, i32, i32) {
    %c0_i32 = arith.constant 0 : i32
    %c0_i32_0 = arith.constant 0 : i32
    %c0_i32_1 = arith.constant 0 : i32
    return %arg0, %c0_i32, %c0_i32_0 : i32, i32, i32
  }
  func.func @transform_2(%arg0: i32) -> (i32, i32, i32) {
    %c0_i32 = arith.constant 0 : i32
    %c0_i32_0 = arith.constant 0 : i32
    %c0_i32_1 = arith.constant 0 : i32
    return %arg0, %c0_i32, %c0_i32_0 : i32, i32, i32
  }
  func.func @transform_3(%arg0: i32) -> (i32, i32) {
    %c0_i32 = arith.constant 0 : i32
    %c0_i32_0 = arith.constant 0 : i32
    %c0_i32_1 = arith.constant 0 : i32
    return %c0_i32, %c0_i32_0 : i32, i32
  }
  func.func @transform_4(%arg0: i32) -> (i32, i32, i32) {
    %c0_i32 = arith.constant 0 : i32
    %c0_i32_0 = arith.constant 0 : i32
    %c0_i32_1 = arith.constant 0 : i32
    %c0_i32_2 = arith.constant 0 : i32
    return %c0_i32, %c0_i32_0, %c0_i32_1 : i32, i32, i32
  }
  func.func @transform_5(%arg0: i32) -> (i32, i32, i32) {
    %c0_i32 = arith.constant 0 : i32
    %c0_i32_0 = arith.constant 0 : i32
    %c0_i32_1 = arith.constant 0 : i32
    %c0_i32_2 = arith.constant 0 : i32
    return %c0_i32, %c0_i32_0, %c0_i32_1 : i32, i32, i32
  }
  func.func @transform_6(%arg0: i32) -> (i32, i32, i32) {
    %c0_i32 = arith.constant 0 : i32
    %c0_i32_0 = arith.constant 0 : i32
    %c0_i32_1 = arith.constant 0 : i32
    %c0_i32_2 = arith.constant 0 : i32
    return %c0_i32, %c0_i32_0, %c0_i32_1 : i32, i32, i32
  }
  func.func @transform_7(%arg0: i32) -> (i32, i32, i32) {
    %c0_i32 = arith.constant 0 : i32
    %c0_i32_0 = arith.constant 0 : i32
    %c0_i32_1 = arith.constant 0 : i32
    %c0_i32_2 = arith.constant 0 : i32
    return %c0_i32, %c0_i32_0, %c0_i32_1 : i32, i32, i32
  }
  func.func @transform_8(%arg0: i32) -> (i32, i32, i32) {
    %c0_i32 = arith.constant 0 : i32
    %c0_i32_0 = arith.constant 0 : i32
    %c0_i32_1 = arith.constant 0 : i32
    %c0_i32_2 = arith.constant 0 : i32
    return %c0_i32, %c0_i32_0, %c0_i32_1 : i32, i32, i32
  }
  func.func @transform_9(%arg0: i32) -> (i32, i32, i32) {
    %c0_i32 = arith.constant 0 : i32
    %c0_i32_0 = arith.constant 0 : i32
    %c0_i32_1 = arith.constant 0 : i32
    %c0_i32_2 = arith.constant 0 : i32
    return %c0_i32, %c0_i32_0, %c0_i32_1 : i32, i32, i32
  }
  func.func @transform_10(%arg0: i32) -> (i32, i32, i32) {
    %c0_i32 = arith.constant 0 : i32
    %c0_i32_0 = arith.constant 0 : i32
    %c0_i32_1 = arith.constant 0 : i32
    %c0_i32_2 = arith.constant 0 : i32
    return %c0_i32, %c0_i32_0, %c0_i32_1 : i32, i32, i32
  }
  func.func @transform_11(%arg0: i32) -> (i32, i32, i32) {
    %c0_i32 = arith.constant 0 : i32
    %c0_i32_0 = arith.constant 0 : i32
    %c0_i32_1 = arith.constant 0 : i32
    %c0_i32_2 = arith.constant 0 : i32
    return %c0_i32, %c0_i32_0, %c0_i32_1 : i32, i32, i32
  }
  func.func @transform_12(%arg0: i32) -> (i32, i32, i32) {
    %c0_i32 = arith.constant 0 : i32
    %c0_i32_0 = arith.constant 0 : i32
    %c0_i32_1 = arith.constant 0 : i32
    %c0_i32_2 = arith.constant 0 : i32
    return %c0_i32, %c0_i32_0, %c0_i32_1 : i32, i32, i32
  }
  func.func @transform_13(%arg0: i32) -> (i32, i32, i32) {
    %c0_i32 = arith.constant 0 : i32
    %c0_i32_0 = arith.constant 0 : i32
    %c0_i32_1 = arith.constant 0 : i32
    %c0_i32_2 = arith.constant 0 : i32
    return %c0_i32, %c0_i32_0, %c0_i32_1 : i32, i32, i32
  }
  func.func @transform_14(%arg0: i32) -> (i32, i32, i32) {
    %c0_i32 = arith.constant 0 : i32
    %c0_i32_0 = arith.constant 0 : i32
    %c0_i32_1 = arith.constant 0 : i32
    %c0_i32_2 = arith.constant 0 : i32
    return %c0_i32, %c0_i32_0, %c0_i32_1 : i32, i32, i32
  }
  func.func @transform_15(%arg0: i32) -> (i32, i32, i32) {
    %c0_i32 = arith.constant 0 : i32
    %c0_i32_0 = arith.constant 0 : i32
    %c0_i32_1 = arith.constant 0 : i32
    %c0_i32_2 = arith.constant 0 : i32
    return %c0_i32, %c0_i32_0, %c0_i32_1 : i32, i32, i32
  }
  func.func @transform_16(%arg0: i32) -> (i32, i32, i32) {
    %c0_i32 = arith.constant 0 : i32
    %c0_i32_0 = arith.constant 0 : i32
    %c0_i32_1 = arith.constant 0 : i32
    %c0_i32_2 = arith.constant 0 : i32
    return %c0_i32, %c0_i32_0, %c0_i32_1 : i32, i32, i32
  }
  func.func @transform_17(%arg0: i32) -> (i32, i32, i32) {
    %c0_i32 = arith.constant 0 : i32
    %c0_i32_0 = arith.constant 0 : i32
    %c0_i32_1 = arith.constant 0 : i32
    %c0_i32_2 = arith.constant 0 : i32
    return %c0_i32, %c0_i32_0, %c0_i32_1 : i32, i32, i32
  }
  func.func @transform_18(%arg0: i32) -> (i32, i32, i32) {
    %c0_i32 = arith.constant 0 : i32
    %c0_i32_0 = arith.constant 0 : i32
    %c0_i32_1 = arith.constant 0 : i32
    %c0_i32_2 = arith.constant 0 : i32
    return %c0_i32, %c0_i32_0, %c0_i32_1 : i32, i32, i32
  }
  func.func @transform_19(%arg0: i32) -> (i32, i32, i32) {
    %c0_i32 = arith.constant 0 : i32
    %c0_i32_0 = arith.constant 0 : i32
    %c0_i32_1 = arith.constant 0 : i32
    %c0_i32_2 = arith.constant 0 : i32
    return %c0_i32, %c0_i32_0, %c0_i32_1 : i32, i32, i32
  }
  func.func @transform_20(%arg0: i32) -> (i32, i32) {
    %c0_i32 = arith.constant 0 : i32
    %c0_i32_0 = arith.constant 0 : i32
    %c0_i32_1 = arith.constant 0 : i32
    return %c0_i32, %c0_i32_0 : i32, i32
  }
  func.func @transform_21(%arg0: i32) -> (i32, i32) {
    %c0_i32 = arith.constant 0 : i32
    %c0_i32_0 = arith.constant 0 : i32
    %c0_i32_1 = arith.constant 0 : i32
    return %c0_i32, %c0_i32_0 : i32, i32
  }
  func.func @transform_22(%arg0: i32) -> (i32, i32, i32) {
    %c0_i32 = arith.constant 0 : i32
    %c0_i32_0 = arith.constant 0 : i32
    %c0_i32_1 = arith.constant 0 : i32
    return %arg0, %c0_i32, %c0_i32_0 : i32, i32, i32
  }
}

</mosaic_0001>

<llo_original>
// kernel: tpu_custom_call.1
$region0: #{tpu_custom_call.1}
  #allocation0 [shape = 'u32[]', space=smem, size = 0x4, offset = 0x4, fixed_abs, tag = 'smem constant byte address 0x4 - core index']
  #allocation1 [shape = 'u32[144,128]{1,0:T(1,128)}', space=vmem, size = 0x12000, scoped, tag = 'internal scratch']
  %s0 = inlined_call_operand.hbm [shape: f32[2,8,32], index: 0, kind: input, shape index: {}]
  %s1 = inlined_call_operand.hbm [shape: f32[2,8,32], index: 1, kind: input, shape index: {}]
  %s2 = inlined_call_operand.vmem [shape: f32[2,1,16], index: 2, kind: input, shape index: {}]
  %s3 = inlined_call_operand.hbm [shape: f32[16,32], index: 3, kind: input, shape index: {}]
  %s4 = inlined_call_operand.vmem [shape: f32[2,32,32], index: 4, kind: input, shape index: {}]
  %s5 = inlined_call_operand.vmem [shape: f32[2,1,32], index: 5, kind: input, shape index: {}]
  %s6 = inlined_call_operand.vmem [shape: f32[2,32,32], index: 6, kind: input, shape index: {}]
  %s7 = inlined_call_operand.vmem [shape: f32[2,1,32], index: 7, kind: input, shape index: {}]
  %s8 = inlined_call_operand.vmem [shape: f32[2,32,32], index: 8, kind: input, shape index: {}]
  %s9 = inlined_call_operand.vmem [shape: f32[2,1,32], index: 9, kind: input, shape index: {}]
  %s10 = inlined_call_operand.hbm [shape: f32[2,32,32], index: 10, kind: input, shape index: {}]
  %s11 = inlined_call_operand.vmem [shape: f32[2,1,32], index: 11, kind: input, shape index: {}]
  %s12 = inlined_call_operand.vmem [shape: f32[2,1,32], index: 12, kind: input, shape index: {}]
  %s13 = inlined_call_operand.vmem [shape: f32[2,1,32], index: 13, kind: input, shape index: {}]
  %s14 = inlined_call_operand.hbm [shape: f32[2,32,64], index: 14, kind: input, shape index: {}]
  %s15 = inlined_call_operand.vmem [shape: f32[2,1,64], index: 15, kind: input, shape index: {}]
  %s16 = inlined_call_operand.vmem [shape: f32[2,64,32], index: 16, kind: input, shape index: {}]
  %s17 = inlined_call_operand.vmem [shape: f32[2,1,32], index: 17, kind: input, shape index: {}]
  %s18 = inlined_call_operand.vmem [shape: f32[2,1,32], index: 18, kind: input, shape index: {}]
  %s19 = inlined_call_operand.vmem [shape: f32[2,1,32], index: 19, kind: input, shape index: {}]
  %s20 = inlined_call_operand.vmem [shape: f32[1,32], index: 20, kind: input, shape index: {}]
  %s21 = inlined_call_operand.vmem [shape: f32[1,32], index: 21, kind: input, shape index: {}]
  %s22 = inlined_call_operand.hbm [shape: f32[2,16,32], index: 22, kind: output, shape index: {}]
  %s23 = sld [smem:[#allocation0]]
  $region141: #{tpu_custom_call.1} parent=0
    _
  %s25 = ssub.s32 1, %s23
  %s26 = scalar_select 0, %s25, %s23
  $region1: #{tpu_custom_call.1} parent=0
    #allocation2 [shape = 'u8[8192]{0}', space=vmem, size = 0x2000, scoped, tag = 'input window, operand 0']
    #allocation3 [shape = 's32[2]{0}', space=sflag, size = 0x8, scoped, tag = 'scoped memory for tpu_custom_call.1']
    #allocation4 [shape = 's32[2]{0}', space=sflag, size = 0x8, scoped, tag = 'scoped memory for tpu_custom_call.1']
    #allocation5 [shape = 'u8[8192]{0}', space=vmem, size = 0x2000, scoped, tag = 'input window, operand 1']
    #allocation6 [shape = 's32[2]{0}', space=sflag, size = 0x8, scoped, tag = 'scoped memory for tpu_custom_call.1']
    #allocation7 [shape = 'u8[8192]{0}', space=vmem, size = 0x2000, scoped, tag = 'input window, operand 3, single buffered']
    #allocation8 [shape = 'u8[32768]{0}', space=vmem, size = 0x8000, scoped, tag = 'input window, operand 10, single buffered']
    #allocation9 [shape = 's32[1]{0}', space=sflag, size = 0x4, scoped, tag = 'scoped memory for tpu_custom_call.1']
    #allocation10 [shape = 'u8[32768]{0}', space=vmem, size = 0x8000, scoped, tag = 'input window, operand 14, single buffered']
    #allocation11 [shape = 'u8[16384]{0}', space=vmem, size = 0x4000, scoped, tag = 'output window, operand 0']
    %27 = vsyncpa [#allocation3], 0
    %s28 = scalar_lea.sflag [#allocation3], 1
    %29 = vsyncpa %s28, 0
    %30 = vsyncpa [#allocation6], 0
    %s31 = scalar_lea.sflag [#allocation6], 1
    %32 = vsyncpa %s31, 0
    %33 = vsyncpa [#allocation9], 0
    %34 = vsyncpa [#allocation4], 0
    %s35 = scalar_lea.sflag [#allocation4], 1
    %36 = vsyncpa %s35, 0
    loop: start=0, step=1, limit=4
    $region2: #{tpu_custom_call.1} parent=1 // loop_pre_header
      _
    $region3: #{tpu_custom_call.1} parent=1 // loop_header
      %s38 = sphi 0, %s42
      %p39 = scmp.ge.s32.totalorder %s38, 4
      %s48 = sphi 0, %s50
      %s51 = sphi 0, %s48
      %s52 = sphi 0, %s51
      %s68 = sphi 0, %s52
      %s74 = sphi 0, %s76
      %s77 = sphi 0, %s74
      %s78 = sphi 0, %s77
      %s94 = sphi 0, %s78
      %s100 = sphi 0, %s102
      %s103 = sphi 0, %s100
      %s104 = sphi 0, %s103
      %s120 = sphi 0, %s104
      %s124 = sphi 0, %s124
      %s126 = sphi 0, %s124
      %s127 = sphi 0, %s126
      %s141 = sphi 0, %s127
      %s145 = sphi 0, %s145
      %s147 = sphi 0, %s145
      %s148 = sphi 0, %s147
      %s162 = sphi 0, %s148
      %s166 = sphi 0, %s166
      %s168 = sphi 0, %s166
      %s169 = sphi 0, %s168
      %s183 = sphi 0, %s169
      %s187 = sphi 0, %s187
      %s189 = sphi 0, %s187
      %s190 = sphi 0, %s189
      %s204 = sphi 0, %s190
      %s208 = sphi 0, %s208
      %s210 = sphi 0, %s208
      %s211 = sphi 0, %s210
      %s225 = sphi 0, %s211
      %s229 = sphi 0, %s229
      %s231 = sphi 0, %s229
      %s232 = sphi 0, %s231
      %s246 = sphi 0, %s232
      %s250 = sphi 0, %s250
      %s252 = sphi 0, %s250
      %s253 = sphi 0, %s252
      %s267 = sphi 0, %s253
      %s271 = sphi 0, %s271
      %s273 = sphi 0, %s271
      %s274 = sphi 0, %s273
      %s288 = sphi 0, %s274
      %s292 = sphi 0, %s292
      %s294 = sphi 0, %s292
      %s295 = sphi 0, %s294
      %s309 = sphi 0, %s295
      %s313 = sphi 0, %s313
      %s315 = sphi 0, %s313
      %s316 = sphi 0, %s315
      %s330 = sphi 0, %s316
      %s334 = sphi 0, %s334
      %s336 = sphi 0, %s334
      %s337 = sphi 0, %s336
      %s351 = sphi 0, %s337
      %s355 = sphi 0, %s355
      %s357 = sphi 0, %s355
      %s358 = sphi 0, %s357
      %s372 = sphi 0, %s358
      %s376 = sphi 0, %s376
      %s378 = sphi 0, %s376
      %s379 = sphi 0, %s378
      %s393 = sphi 0, %s379
      %s397 = sphi 0, %s397
      %s399 = sphi 0, %s397
      %s400 = sphi 0, %s399
      %s414 = sphi 0, %s400
      %s418 = sphi 0, %s418
      %s420 = sphi 0, %s418
      %s421 = sphi 0, %s420
      %s435 = sphi 0, %s421
      %s439 = sphi 0, %s439
      %s441 = sphi 0, %s439
      %s442 = sphi 0, %s441
      %s456 = sphi 0, %s442
      %s460 = sphi 0, %s460
      %s462 = sphi 0, %s460
      %s463 = sphi 0, %s462
      %s477 = sphi 0, %s463
      %s481 = sphi 0, %s481
      %s483 = sphi 0, %s481
      %s484 = sphi 0, %s483
      %s498 = sphi 0, %s484
      %s502 = sphi 0, %s502
      %s504 = sphi 0, %s502
      %s505 = sphi 0, %s504
      %s519 = sphi 0, %s505
      %s525 = sphi 0, %s527
      %s528 = sphi 0, %s525
      %s529 = sphi 0, %s528
      %s545 = sphi 0, %s529
    $region4: #{tpu_custom_call.1} parent=1 // loop_header_branch
      %41 = sbr.rel (%p39) target = $region8
    $region5: #{tpu_custom_call.1} parent=1 // loop_body
      %s43 = ssub.s32 %s38, 1
      %s44 = ssub.s32 %s38, 2
      %s45 = sadd.s32 %s38, 1
      %s46 = ssub.s32 %s38, %s45
      %p47 = scmp.eq.s32.totalorder %s46, 0
      %s49 = sadd.s32 %s48, 1
      %s50 = scalar_select %p47, %s48, %s49
      %p53 = pneg %p47
      %p54 = scmp.eq.s32.totalorder %s38, 1
      %p55 = por %p53, %p54
      %p56 = scmp.ne.s32.totalorder %s48, %s51
      %p57 = scmp.eq.s32.totalorder %s38, 0
      %p58 = por %p56, %p57
      %p59 = scmp.ne.s32.totalorder %s48, %s51
      %p60 = scmp.eq.s32.totalorder %s43, 1
      %p61 = por %p59, %p60
      %p62 = scmp.ne.s32.totalorder %s51, %s52
      %p63 = scmp.eq.s32.totalorder %s43, 0
      %p64 = por %p62, %p63
      %p65 = scmp.ne.s32.totalorder %s51, %s52
      %p66 = scmp.eq.s32.totalorder %s44, 1
      %p67 = por %p65, %p66
      %p69 = scmp.ne.s32.totalorder %s52, %s68
      %p70 = scmp.eq.s32.totalorder %s44, 0
      %p71 = por %p69, %p70
      %s72 = ssub.s32 %s38, %s45
      %p73 = scmp.eq.s32.totalorder %s72, 0
      %s75 = sadd.s32 %s74, 1
      %s76 = scalar_select %p73, %s74, %s75
      %p79 = pneg %p73
      %p80 = scmp.eq.s32.totalorder %s38, 1
      %p81 = por %p79, %p80
      %p82 = scmp.ne.s32.totalorder %s74, %s77
      %p83 = scmp.eq.s32.totalorder %s38, 0
      %p84 = por %p82, %p83
      %p85 = scmp.ne.s32.totalorder %s74, %s77
      %p86 = scmp.eq.s32.totalorder %s43, 1
      %p87 = por %p85, %p86
      %p88 = scmp.ne.s32.totalorder %s77, %s78
      %p89 = scmp.eq.s32.totalorder %s43, 0
      %p90 = por %p88, %p89
      %p91 = scmp.ne.s32.totalorder %s77, %s78
      %p92 = scmp.eq.s32.totalorder %s44, 1
      %p93 = por %p91, %p92
      %p95 = scmp.ne.s32.totalorder %s78, %s94
      %p96 = scmp.eq.s32.totalorder %s44, 0
      %p97 = por %p95, %p96
      %s98 = ssub.s32 %s38, %s45
      %p99 = scmp.eq.s32.totalorder %s98, 0
      %s101 = sadd.s32 %s100, 1
      %s102 = scalar_select %p99, %s100, %s101
      %p105 = pneg %p99
      %p106 = scmp.eq.s32.totalorder %s38, 1
      %p107 = por %p105, %p106
      %p108 = scmp.ne.s32.totalorder %s100, %s103
      %p109 = scmp.eq.s32.totalorder %s38, 0
      %p110 = por %p108, %p109
      %p111 = scmp.ne.s32.totalorder %s100, %s103
      %p112 = scmp.eq.s32.totalorder %s43, 1
      %p113 = por %p111, %p112
      %p114 = scmp.ne.s32.totalorder %s103, %s104
      %p115 = scmp.eq.s32.totalorder %s43, 0
      %p116 = por %p114, %p115
      %p117 = scmp.ne.s32.totalorder %s103, %s104
      %p118 = scmp.eq.s32.totalorder %s44, 1
      %p119 = por %p117, %p118
      %p121 = scmp.ne.s32.totalorder %s104, %s120
      %p122 = scmp.eq.s32.totalorder %s44, 0
      %p123 = por %p121, %p122
      %s125 = sadd.s32 %s124, 1
      %p128 = scmp.eq.s32.totalorder %s38, 1
      %p129 = scmp.ne.s32.totalorder %s124, %s126
      %p130 = scmp.eq.s32.totalorder %s38, 0
      %p131 = por %p129, %p130
      %p132 = scmp.ne.s32.totalorder %s124, %s126
      %p133 = scmp.eq.s32.totalorder %s43, 1
      %p134 = por %p132, %p133
      %p135 = scmp.ne.s32.totalorder %s126, %s127
      %p136 = scmp.eq.s32.totalorder %s43, 0
      %p137 = por %p135, %p136
      %p138 = scmp.ne.s32.totalorder %s126, %s127
      %p139 = scmp.eq.s32.totalorder %s44, 1
      %p140 = por %p138, %p139
      %p142 = scmp.ne.s32.totalorder %s127, %s141
      %p143 = scmp.eq.s32.totalorder %s44, 0
      %p144 = por %p142, %p143
      %s146 = sadd.s32 %s145, 1
      %p149 = scmp.eq.s32.totalorder %s38, 1
      %p150 = scmp.ne.s32.totalorder %s145, %s147
      %p151 = scmp.eq.s32.totalorder %s38, 0
      %p152 = por %p150, %p151
      %p153 = scmp.ne.s32.totalorder %s145, %s147
      %p154 = scmp.eq.s32.totalorder %s43, 1
      %p155 = por %p153, %p154
      %p156 = scmp.ne.s32.totalorder %s147, %s148
      %p157 = scmp.eq.s32.totalorder %s43, 0
      %p158 = por %p156, %p157
      %p159 = scmp.ne.s32.totalorder %s147, %s148
      %p160 = scmp.eq.s32.totalorder %s44, 1
      %p161 = por %p159, %p160
      %p163 = scmp.ne.s32.totalorder %s148, %s162
      %p164 = scmp.eq.s32.totalorder %s44, 0
      %p165 = por %p163, %p164
      %s167 = sadd.s32 %s166, 1
      %p170 = scmp.eq.s32.totalorder %s38, 1
      %p171 = scmp.ne.s32.totalorder %s166, %s168
      %p172 = scmp.eq.s32.totalorder %s38, 0
      %p173 = por %p171, %p172
      %p174 = scmp.ne.s32.totalorder %s166, %s168
      %p175 = scmp.eq.s32.totalorder %s43, 1
      %p176 = por %p174, %p175
      %p177 = scmp.ne.s32.totalorder %s168, %s169
      %p178 = scmp.eq.s32.totalorder %s43, 0
      %p179 = por %p177, %p178
      %p180 = scmp.ne.s32.totalorder %s168, %s169
      %p181 = scmp.eq.s32.totalorder %s44, 1
      %p182 = por %p180, %p181
      %p184 = scmp.ne.s32.totalorder %s169, %s183
      %p185 = scmp.eq.s32.totalorder %s44, 0
      %p186 = por %p184, %p185
      %s188 = sadd.s32 %s187, 1
      %p191 = scmp.eq.s32.totalorder %s38, 1
      %p192 = scmp.ne.s32.totalorder %s187, %s189
      %p193 = scmp.eq.s32.totalorder %s38, 0
      %p194 = por %p192, %p193
      %p195 = scmp.ne.s32.totalorder %s187, %s189
      %p196 = scmp.eq.s32.totalorder %s43, 1
      %p197 = por %p195, %p196
      %p198 = scmp.ne.s32.totalorder %s189, %s190
      %p199 = scmp.eq.s32.totalorder %s43, 0
      %p200 = por %p198, %p199
      %p201 = scmp.ne.s32.totalorder %s189, %s190
      %p202 = scmp.eq.s32.totalorder %s44, 1
      %p203 = por %p201, %p202
      %p205 = scmp.ne.s32.totalorder %s190, %s204
      %p206 = scmp.eq.s32.totalorder %s44, 0
      %p207 = por %p205, %p206
      %s209 = sadd.s32 %s208, 1
      %p212 = scmp.eq.s32.totalorder %s38, 1
      %p213 = scmp.ne.s32.totalorder %s208, %s210
      %p214 = scmp.eq.s32.totalorder %s38, 0
      %p215 = por %p213, %p214
      %p216 = scmp.ne.s32.totalorder %s208, %s210
      %p217 = scmp.eq.s32.totalorder %s43, 1
      %p218 = por %p216, %p217
      %p219 = scmp.ne.s32.totalorder %s210, %s211
      %p220 = scmp.eq.s32.totalorder %s43, 0
      %p221 = por %p219, %p220
      %p222 = scmp.ne.s32.totalorder %s210, %s211
      %p223 = scmp.eq.s32.totalorder %s44, 1
      %p224 = por %p222, %p223
      %p226 = scmp.ne.s32.totalorder %s211, %s225
      %p227 = scmp.eq.s32.totalorder %s44, 0
      %p228 = por %p226, %p227
      %s230 = sadd.s32 %s229, 1
      %p233 = scmp.eq.s32.totalorder %s38, 1
      %p234 = scmp.ne.s32.totalorder %s229, %s231
      %p235 = scmp.eq.s32.totalorder %s38, 0
      %p236 = por %p234, %p235
      %p237 = scmp.ne.s32.totalorder %s229, %s231
      %p238 = scmp.eq.s32.totalorder %s43, 1
      %p239 = por %p237, %p238
      %p240 = scmp.ne.s32.totalorder %s231, %s232
      %p241 = scmp.eq.s32.totalorder %s43, 0
      %p242 = por %p240, %p241
      %p243 = scmp.ne.s32.totalorder %s231, %s232
      %p244 = scmp.eq.s32.totalorder %s44, 1
      %p245 = por %p243, %p244
      %p247 = scmp.ne.s32.totalorder %s232, %s246
      %p248 = scmp.eq.s32.totalorder %s44, 0
      %p249 = por %p247, %p248
      %s251 = sadd.s32 %s250, 1
      %p254 = scmp.eq.s32.totalorder %s38, 1
      %p255 = scmp.ne.s32.totalorder %s250, %s252
      %p256 = scmp.eq.s32.totalorder %s38, 0
      %p257 = por %p255, %p256
      %p258 = scmp.ne.s32.totalorder %s250, %s252
      %p259 = scmp.eq.s32.totalorder %s43, 1
      %p260 = por %p258, %p259
      %p261 = scmp.ne.s32.totalorder %s252, %s253
      %p262 = scmp.eq.s32.totalorder %s43, 0
      %p263 = por %p261, %p262
      %p264 = scmp.ne.s32.totalorder %s252, %s253
      %p265 = scmp.eq.s32.totalorder %s44, 1
      %p266 = por %p264, %p265
      %p268 = scmp.ne.s32.totalorder %s253, %s267
      %p269 = scmp.eq.s32.totalorder %s44, 0
      %p270 = por %p268, %p269
      %s272 = sadd.s32 %s271, 1
      %p275 = scmp.eq.s32.totalorder %s38, 1
      %p276 = scmp.ne.s32.totalorder %s271, %s273
      %p277 = scmp.eq.s32.totalorder %s38, 0
      %p278 = por %p276, %p277
      %p279 = scmp.ne.s32.totalorder %s271, %s273
      %p280 = scmp.eq.s32.totalorder %s43, 1
      %p281 = por %p279, %p280
      %p282 = scmp.ne.s32.totalorder %s273, %s274
      %p283 = scmp.eq.s32.totalorder %s43, 0
      %p284 = por %p282, %p283
      %p285 = scmp.ne.s32.totalorder %s273, %s274
      %p286 = scmp.eq.s32.totalorder %s44, 1
      %p287 = por %p285, %p286
      %p289 = scmp.ne.s32.totalorder %s274, %s288
      %p290 = scmp.eq.s32.totalorder %s44, 0
      %p291 = por %p289, %p290
      %s293 = sadd.s32 %s292, 1
      %p296 = scmp.eq.s32.totalorder %s38, 1
      %p297 = scmp.ne.s32.totalorder %s292, %s294
      %p298 = scmp.eq.s32.totalorder %s38, 0
      %p299 = por %p297, %p298
      %p300 = scmp.ne.s32.totalorder %s292, %s294
      %p301 = scmp.eq.s32.totalorder %s43, 1
      %p302 = por %p300, %p301
      %p303 = scmp.ne.s32.totalorder %s294, %s295
      %p304 = scmp.eq.s32.totalorder %s43, 0
      %p305 = por %p303, %p304
      %p306 = scmp.ne.s32.totalorder %s294, %s295
      %p307 = scmp.eq.s32.totalorder %s44, 1
      %p308 = por %p306, %p307
      %p310 = scmp.ne.s32.totalorder %s295, %s309
      %p311 = scmp.eq.s32.totalorder %s44, 0
      %p312 = por %p310, %p311
      %s314 = sadd.s32 %s313, 1
      %p317 = scmp.eq.s32.totalorder %s38, 1
      %p318 = scmp.ne.s32.totalorder %s313, %s315
      %p319 = scmp.eq.s32.totalorder %s38, 0
      %p320 = por %p318, %p319
      %p321 = scmp.ne.s32.totalorder %s313, %s315
      %p322 = scmp.eq.s32.totalorder %s43, 1
      %p323 = por %p321, %p322
      %p324 = scmp.ne.s32.totalorder %s315, %s316
      %p325 = scmp.eq.s32.totalorder %s43, 0
      %p326 = por %p324, %p325
      %p327 = scmp.ne.s32.totalorder %s315, %s316
      %p328 = scmp.eq.s32.totalorder %s44, 1
      %p329 = por %p327, %p328
      %p331 = scmp.ne.s32.totalorder %s316, %s330
      %p332 = scmp.eq.s32.totalorder %s44, 0
      %p333 = por %p331, %p332
      %s335 = sadd.s32 %s334, 1
      %p338 = scmp.eq.s32.totalorder %s38, 1
      %p339 = scmp.ne.s32.totalorder %s334, %s336
      %p340 = scmp.eq.s32.totalorder %s38, 0
      %p341 = por %p339, %p340
      %p342 = scmp.ne.s32.totalorder %s334, %s336
      %p343 = scmp.eq.s32.totalorder %s43, 1
      %p344 = por %p342, %p343
      %p345 = scmp.ne.s32.totalorder %s336, %s337
      %p346 = scmp.eq.s32.totalorder %s43, 0
      %p347 = por %p345, %p346
      %p348 = scmp.ne.s32.totalorder %s336, %s337
      %p349 = scmp.eq.s32.totalorder %s44, 1
      %p350 = por %p348, %p349
      %p352 = scmp.ne.s32.totalorder %s337, %s351
      %p353 = scmp.eq.s32.totalorder %s44, 0
      %p354 = por %p352, %p353
      %s356 = sadd.s32 %s355, 1
      %p359 = scmp.eq.s32.totalorder %s38, 1
      %p360 = scmp.ne.s32.totalorder %s355, %s357
      %p361 = scmp.eq.s32.totalorder %s38, 0
      %p362 = por %p360, %p361
      %p363 = scmp.ne.s32.totalorder %s355, %s357
      %p364 = scmp.eq.s32.totalorder %s43, 1
      %p365 = por %p363, %p364
      %p366 = scmp.ne.s32.totalorder %s357, %s358
      %p367 = scmp.eq.s32.totalorder %s43, 0
      %p368 = por %p366, %p367
      %p369 = scmp.ne.s32.totalorder %s357, %s358
      %p370 = scmp.eq.s32.totalorder %s44, 1
      %p371 = por %p369, %p370
      %p373 = scmp.ne.s32.totalorder %s358, %s372
      %p374 = scmp.eq.s32.totalorder %s44, 0
      %p375 = por %p373, %p374
      %s377 = sadd.s32 %s376, 1
      %p380 = scmp.eq.s32.totalorder %s38, 1
      %p381 = scmp.ne.s32.totalorder %s376, %s378
      %p382 = scmp.eq.s32.totalorder %s38, 0
      %p383 = por %p381, %p382
      %p384 = scmp.ne.s32.totalorder %s376, %s378
      %p385 = scmp.eq.s32.totalorder %s43, 1
      %p386 = por %p384, %p385
      %p387 = scmp.ne.s32.totalorder %s378, %s379
      %p388 = scmp.eq.s32.totalorder %s43, 0
      %p389 = por %p387, %p388
      %p390 = scmp.ne.s32.totalorder %s378, %s379
      %p391 = scmp.eq.s32.totalorder %s44, 1
      %p392 = por %p390, %p391
      %p394 = scmp.ne.s32.totalorder %s379, %s393
      %p395 = scmp.eq.s32.totalorder %s44, 0
      %p396 = por %p394, %p395
      %s398 = sadd.s32 %s397, 1
      %p401 = scmp.eq.s32.totalorder %s38, 1
      %p402 = scmp.ne.s32.totalorder %s397, %s399
      %p403 = scmp.eq.s32.totalorder %s38, 0
      %p404 = por %p402, %p403
      %p405 = scmp.ne.s32.totalorder %s397, %s399
      %p406 = scmp.eq.s32.totalorder %s43, 1
      %p407 = por %p405, %p406
      %p408 = scmp.ne.s32.totalorder %s399, %s400
      %p409 = scmp.eq.s32.totalorder %s43, 0
      %p410 = por %p408, %p409
      %p411 = scmp.ne.s32.totalorder %s399, %s400
      %p412 = scmp.eq.s32.totalorder %s44, 1
      %p413 = por %p411, %p412
      %p415 = scmp.ne.s32.totalorder %s400, %s414
      %p416 = scmp.eq.s32.totalorder %s44, 0
      %p417 = por %p415, %p416
      %s419 = sadd.s32 %s418, 1
      %p422 = scmp.eq.s32.totalorder %s38, 1
      %p423 = scmp.ne.s32.totalorder %s418, %s420
      %p424 = scmp.eq.s32.totalorder %s38, 0
      %p425 = por %p423, %p424
      %p426 = scmp.ne.s32.totalorder %s418, %s420
      %p427 = scmp.eq.s32.totalorder %s43, 1
      %p428 = por %p426, %p427
      %p429 = scmp.ne.s32.totalorder %s420, %s421
      %p430 = scmp.eq.s32.totalorder %s43, 0
      %p431 = por %p429, %p430
      %p432 = scmp.ne.s32.totalorder %s420, %s421
      %p433 = scmp.eq.s32.totalorder %s44, 1
      %p434 = por %p432, %p433
      %p436 = scmp.ne.s32.totalorder %s421, %s435
      %p437 = scmp.eq.s32.totalorder %s44, 0
      %p438 = por %p436, %p437
      %s440 = sadd.s32 %s439, 1
      %p443 = scmp.eq.s32.totalorder %s38, 1
      %p444 = scmp.ne.s32.totalorder %s439, %s441
      %p445 = scmp.eq.s32.totalorder %s38, 0
      %p446 = por %p444, %p445
      %p447 = scmp.ne.s32.totalorder %s439, %s441
      %p448 = scmp.eq.s32.totalorder %s43, 1
      %p449 = por %p447, %p448
      %p450 = scmp.ne.s32.totalorder %s441, %s442
      %p451 = scmp.eq.s32.totalorder %s43, 0
      %p452 = por %p450, %p451
      %p453 = scmp.ne.s32.totalorder %s441, %s442
      %p454 = scmp.eq.s32.totalorder %s44, 1
      %p455 = por %p453, %p454
      %p457 = scmp.ne.s32.totalorder %s442, %s456
      %p458 = scmp.eq.s32.totalorder %s44, 0
      %p459 = por %p457, %p458
      %s461 = sadd.s32 %s460, 1
      %p464 = scmp.eq.s32.totalorder %s38, 1
      %p465 = scmp.ne.s32.totalorder %s460, %s462
      %p466 = scmp.eq.s32.totalorder %s38, 0
      %p467 = por %p465, %p466
      %p468 = scmp.ne.s32.totalorder %s460, %s462
      %p469 = scmp.eq.s32.totalorder %s43, 1
      %p470 = por %p468, %p469
      %p471 = scmp.ne.s32.totalorder %s462, %s463
      %p472 = scmp.eq.s32.totalorder %s43, 0
      %p473 = por %p471, %p472
      %p474 = scmp.ne.s32.totalorder %s462, %s463
      %p475 = scmp.eq.s32.totalorder %s44, 1
      %p476 = por %p474, %p475
      %p478 = scmp.ne.s32.totalorder %s463, %s477
      %p479 = scmp.eq.s32.totalorder %s44, 0
      %p480 = por %p478, %p479
      %s482 = sadd.s32 %s481, 1
      %p485 = scmp.eq.s32.totalorder %s38, 1
      %p486 = scmp.ne.s32.totalorder %s481, %s483
      %p487 = scmp.eq.s32.totalorder %s38, 0
      %p488 = por %p486, %p487
      %p489 = scmp.ne.s32.totalorder %s481, %s483
      %p490 = scmp.eq.s32.totalorder %s43, 1
      %p491 = por %p489, %p490
      %p492 = scmp.ne.s32.totalorder %s483, %s484
      %p493 = scmp.eq.s32.totalorder %s43, 0
      %p494 = por %p492, %p493
      %p495 = scmp.ne.s32.totalorder %s483, %s484
      %p496 = scmp.eq.s32.totalorder %s44, 1
      %p497 = por %p495, %p496
      %p499 = scmp.ne.s32.totalorder %s484, %s498
      %p500 = scmp.eq.s32.totalorder %s44, 0
      %p501 = por %p499, %p500
      %s503 = sadd.s32 %s502, 1
      %p506 = scmp.eq.s32.totalorder %s38, 1
      %p507 = scmp.ne.s32.totalorder %s502, %s504
      %p508 = scmp.eq.s32.totalorder %s38, 0
      %p509 = por %p507, %p508
      %p510 = scmp.ne.s32.totalorder %s502, %s504
      %p511 = scmp.eq.s32.totalorder %s43, 1
      %p512 = por %p510, %p511
      %p513 = scmp.ne.s32.totalorder %s504, %s505
      %p514 = scmp.eq.s32.totalorder %s43, 0
      %p515 = por %p513, %p514
      %p516 = scmp.ne.s32.totalorder %s504, %s505
      %p517 = scmp.eq.s32.totalorder %s44, 1
      %p518 = por %p516, %p517
      %p520 = scmp.ne.s32.totalorder %s505, %s519
      %p521 = scmp.eq.s32.totalorder %s44, 0
      %p522 = por %p520, %p521
      %s523 = ssub.s32 %s38, %s45
      %p524 = scmp.eq.s32.totalorder %s523, 0
      %s526 = sadd.s32 %s525, 1
      %s527 = scalar_select %p524, %s525, %s526
      %p530 = pneg %p524
      %p531 = scmp.eq.s32.totalorder %s38, 1
      %p532 = por %p530, %p531
      %p533 = scmp.ne.s32.totalorder %s525, %s528
      %p534 = scmp.eq.s32.totalorder %s38, 0
      %p535 = por %p533, %p534
      %p536 = scmp.ne.s32.totalorder %s525, %s528
      %p537 = scmp.eq.s32.totalorder %s43, 1
      %p538 = por %p536, %p537
      %p539 = scmp.ne.s32.totalorder %s528, %s529
      %p540 = scmp.eq.s32.totalorder %s43, 0
      %p541 = por %p539, %p540
      %p542 = scmp.ne.s32.totalorder %s528, %s529
      %p543 = scmp.eq.s32.totalorder %s44, 1
      %p544 = por %p542, %p543
      %p546 = scmp.ne.s32.totalorder %s529, %s545
      %p547 = scmp.eq.s32.totalorder %s44, 0
      %p548 = por %p546, %p547
      %p549 = scmp.le.s32.totalorder 1, %s38
      %p550 = scmp.lt.s32.totalorder %s38, 3
      %p551 = pnand %p549, %p550
      %p552 = pneg %p551
      // Predicated region
      $region9: #{tpu_custom_call.1} parent=5 // pred_check
        _
      $region10: #{tpu_custom_call.1} parent=5 // pred_check_branch
        %554 = sbr.rel (%p551) target = $region12
      $region11: #{tpu_custom_call.1} parent=5 // pred_region
        %s555 = ssub.s32 %s38, 1
        // Predicated region
        $region13: #{tpu_custom_call.1} parent=11 // pred_check
          %p556 = pneg %p137
        $region14: #{tpu_custom_call.1} parent=11 // pred_check_branch
          %558 = sbr.rel (%p556) target = $region16
        $region15: #{tpu_custom_call.1} parent=11 // pred_region
          %s560 = ssub.s32 256, 256
          %561 = vsyncadd [#allocation6], %s560
          %s562 = sshll.u32 [#allocation7], 4
          %s563 = int_to_ptr.vmem [resolvable:$true] %s562
          %568 = dma.hbm_to_vmem [thread:$0]  %s3, 256, %s563, [#allocation6], 128, 128, 8
        $region16: #{tpu_custom_call.1} parent=11 // pred_fallthru
          _
        // Predicated region
        $region17: #{tpu_custom_call.1} parent=11 // pred_check
          %p569 = pneg %p158
        $region18: #{tpu_custom_call.1} parent=11 // pred_check_branch
          %571 = sbr.rel (%p569) target = $region20
        $region19: #{tpu_custom_call.1} parent=11 // pred_region
          _
        $region20: #{tpu_custom_call.1} parent=11 // pred_fallthru
          _
        // Predicated region
        $region21: #{tpu_custom_call.1} parent=11 // pred_check
          %p572 = pneg %p179
        $region22: #{tpu_custom_call.1} parent=11 // pred_check_branch
          %574 = sbr.rel (%p572) target = $region24
        $region23: #{tpu_custom_call.1} parent=11 // pred_region
          _
        $region24: #{tpu_custom_call.1} parent=11 // pred_fallthru
          _
        // Predicated region
        $region25: #{tpu_custom_call.1} parent=11 // pred_check
          %p575 = pneg %p200
        $region26: #{tpu_custom_call.1} parent=11 // pred_check_branch
          %577 = sbr.rel (%p575) target = $region28
        $region27: #{tpu_custom_call.1} parent=11 // pred_region
          _
        $region28: #{tpu_custom_call.1} parent=11 // pred_fallthru
          _
        // Predicated region
        $region29: #{tpu_custom_call.1} parent=11 // pred_check
          %p578 = pneg %p221
        $region30: #{tpu_custom_call.1} parent=11 // pred_check_branch
          %580 = sbr.rel (%p578) target = $region32
        $region31: #{tpu_custom_call.1} parent=11 // pred_region
          _
        $region32: #{tpu_custom_call.1} parent=11 // pred_fallthru
          _
        // Predicated region
        $region33: #{tpu_custom_call.1} parent=11 // pred_check
          %p581 = pneg %p242
        $region34: #{tpu_custom_call.1} parent=11 // pred_check_branch
          %583 = sbr.rel (%p581) target = $region36
        $region35: #{tpu_custom_call.1} parent=11 // pred_region
          _
        $region36: #{tpu_custom_call.1} parent=11 // pred_fallthru
          _
        // Predicated region
        $region37: #{tpu_custom_call.1} parent=11 // pred_check
          %p584 = pneg %p263
        $region38: #{tpu_custom_call.1} parent=11 // pred_check_branch
          %586 = sbr.rel (%p584) target = $region40
        $region39: #{tpu_custom_call.1} parent=11 // pred_region
          _
        $region40: #{tpu_custom_call.1} parent=11 // pred_fallthru
          _
        // Predicated region
        $region41: #{tpu_custom_call.1} parent=11 // pred_check
          %p587 = pneg %p284
        $region42: #{tpu_custom_call.1} parent=11 // pred_check_branch
          %589 = sbr.rel (%p587) target = $region44
        $region43: #{tpu_custom_call.1} parent=11 // pred_region
          %s591 = ssub.s32 1024, 1024
          %592 = vsyncadd [#allocation9], %s591
          %s593 = sshll.u32 [#allocation8], 4
          %s594 = int_to_ptr.vmem [resolvable:$true] %s593
          %599 = dma.hbm_to_vmem [thread:$0]  %s10, 1024, %s594, [#allocation9], 128, 128, 8
        $region44: #{tpu_custom_call.1} parent=11 // pred_fallthru
          _
        // Predicated region
        $region45: #{tpu_custom_call.1} parent=11 // pred_check
          %p600 = pneg %p305
        $region46: #{tpu_custom_call.1} parent=11 // pred_check_branch
          %602 = sbr.rel (%p600) target = $region48
        $region47: #{tpu_custom_call.1} parent=11 // pred_region
          _
        $region48: #{tpu_custom_call.1} parent=11 // pred_fallthru
          _
        // Predicated region
        $region49: #{tpu_custom_call.1} parent=11 // pred_check
          %p603 = pneg %p326
        $region50: #{tpu_custom_call.1} parent=11 // pred_check_branch
          %605 = sbr.rel (%p603) target = $region52
        $region51: #{tpu_custom_call.1} parent=11 // pred_region
          _
        $region52: #{tpu_custom_call.1} parent=11 // pred_fallthru
          _
        // Predicated region
        $region53: #{tpu_custom_call.1} parent=11 // pred_check
          %p606 = pneg %p347
        $region54: #{tpu_custom_call.1} parent=11 // pred_check_branch
          %608 = sbr.rel (%p606) target = $region56
        $region55: #{tpu_custom_call.1} parent=11 // pred_region
          _
        $region56: #{tpu_custom_call.1} parent=11 // pred_fallthru
          _
        // Predicated region
        $region57: #{tpu_custom_call.1} parent=11 // pred_check
          %p609 = pneg %p368
        $region58: #{tpu_custom_call.1} parent=11 // pred_check_branch
          %611 = sbr.rel (%p609) target = $region60
        $region59: #{tpu_custom_call.1} parent=11 // pred_region
          %s613 = ssub.s32 1024, 1024
          %614 = vsyncadd [#allocation9], %s613
          %s615 = sshll.u32 [#allocation10], 4
          %s616 = int_to_ptr.vmem [resolvable:$true] %s615
          %621 = dma.hbm_to_vmem [thread:$0]  %s14, 1024, %s616, [#allocation9], 128, 128, 8
        $region60: #{tpu_custom_call.1} parent=11 // pred_fallthru
          _
        // Predicated region
        $region61: #{tpu_custom_call.1} parent=11 // pred_check
          %p622 = pneg %p389
        $region62: #{tpu_custom_call.1} parent=11 // pred_check_branch
          %624 = sbr.rel (%p622) target = $region64
        $region63: #{tpu_custom_call.1} parent=11 // pred_region
          _
        $region64: #{tpu_custom_call.1} parent=11 // pred_fallthru
          _
        // Predicated region
        $region65: #{tpu_custom_call.1} parent=11 // pred_check
          %p625 = pneg %p410
        $region66: #{tpu_custom_call.1} parent=11 // pred_check_branch
          %627 = sbr.rel (%p625) target = $region68
        $region67: #{tpu_custom_call.1} parent=11 // pred_region
          _
        $region68: #{tpu_custom_call.1} parent=11 // pred_fallthru
          _
        // Predicated region
        $region69: #{tpu_custom_call.1} parent=11 // pred_check
          %p628 = pneg %p431
        $region70: #{tpu_custom_call.1} parent=11 // pred_check_branch
          %630 = sbr.rel (%p628) target = $region72
        $region71: #{tpu_custom_call.1} parent=11 // pred_region
          _
        $region72: #{tpu_custom_call.1} parent=11 // pred_fallthru
          _
        // Predicated region
        $region73: #{tpu_custom_call.1} parent=11 // pred_check
          %p631 = pneg %p452
        $region74: #{tpu_custom_call.1} parent=11 // pred_check_branch
          %633 = sbr.rel (%p631) target = $region76
        $region75: #{tpu_custom_call.1} parent=11 // pred_region
          _
        $region76: #{tpu_custom_call.1} parent=11 // pred_fallthru
          _
        // Predicated region
        $region77: #{tpu_custom_call.1} parent=11 // pred_check
          %p634 = pneg %p473
        $region78: #{tpu_custom_call.1} parent=11 // pred_check_branch
          %636 = sbr.rel (%p634) target = $region80
        $region79: #{tpu_custom_call.1} parent=11 // pred_region
          _
        $region80: #{tpu_custom_call.1} parent=11 // pred_fallthru
          _
        // Predicated region
        $region81: #{tpu_custom_call.1} parent=11 // pred_check
          %p637 = pneg %p494
        $region82: #{tpu_custom_call.1} parent=11 // pred_check_branch
          %639 = sbr.rel (%p637) target = $region84
        $region83: #{tpu_custom_call.1} parent=11 // pred_region
          _
        $region84: #{tpu_custom_call.1} parent=11 // pred_fallthru
          _
        // Predicated region
        $region85: #{tpu_custom_call.1} parent=11 // pred_check
          %p640 = pneg %p515
        $region86: #{tpu_custom_call.1} parent=11 // pred_check_branch
          %642 = sbr.rel (%p640) target = $region88
        $region87: #{tpu_custom_call.1} parent=11 // pred_region
          _
        $region88: #{tpu_custom_call.1} parent=11 // pred_fallthru
          _
      $region12: #{tpu_custom_call.1} parent=5 // pred_fallthru
        _
      %p643 = scmp.lt.s32.totalorder %s38, 2
      // Predicated region
      $region89: #{tpu_custom_call.1} parent=5 // pred_check
        %p644 = pneg %p643
      $region90: #{tpu_custom_call.1} parent=5 // pred_check_branch
        %646 = sbr.rel (%p644) target = $region92
      $region91: #{tpu_custom_call.1} parent=5 // pred_region
        // Predicated region
        $region93: #{tpu_custom_call.1} parent=91 // pred_check
          %p647 = pneg %p58
        $region94: #{tpu_custom_call.1} parent=91 // pred_check_branch
          %649 = sbr.rel (%p647) target = $region96
        $region95: #{tpu_custom_call.1} parent=91 // pred_region
          %s650 = sand.u32 %s48, 1
          %s651 = scalar_lea.sflag [#allocation3], %s650
          %s652 = sand.u32 %s48, 1
          %s653 = smul.addr %s652, 8
          %s654 = scalar_lea.vmem [#allocation2], %s653
          %s656 = ssub.s32 128, 128
          %657 = vsyncadd %s651, %s656
          %s658 = smul.addr %s38, 128
          %s659 = scalar_lea.hbm %s0, %s658
          %s661 = sshll.u32 %s654, 4
          %s662 = int_to_ptr.vmem [resolvable:$true] %s661
          %664 = dma.hbm_to_vmem [thread:$0]  %s659, 128, %s662, %s651
        $region96: #{tpu_custom_call.1} parent=91 // pred_fallthru
          _
        // Predicated region
        $region97: #{tpu_custom_call.1} parent=91 // pred_check
          %p665 = pneg %p84
        $region98: #{tpu_custom_call.1} parent=91 // pred_check_branch
          %667 = sbr.rel (%p665) target = $region100
        $region99: #{tpu_custom_call.1} parent=91 // pred_region
          %s668 = sand.u32 %s38, 1
          %s669 = scalar_lea.sflag [#allocation6], %s668
          %s670 = sand.u32 %s74, 1
          %s671 = smul.addr %s670, 8
          %s672 = scalar_lea.vmem [#allocation5], %s671
          %s674 = ssub.s32 128, 128
          %675 = vsyncadd %s669, %s674
          %s676 = smul.addr %s38, 128
          %s677 = scalar_lea.hbm %s1, %s676
          %s679 = sshll.u32 %s672, 4
          %s680 = int_to_ptr.vmem [resolvable:$true] %s679
          %682 = dma.hbm_to_vmem [thread:$0]  %s677, 128, %s680, %s669
        $region100: #{tpu_custom_call.1} parent=91 // pred_fallthru
          _
        // Predicated region
        $region101: #{tpu_custom_call.1} parent=91 // pred_check
          %p683 = pneg %p110
        $region102: #{tpu_custom_call.1} parent=91 // pred_check_branch
          %685 = sbr.rel (%p683) target = $region104
        $region103: #{tpu_custom_call.1} parent=91 // pred_region
          %p686 = scmp.lt.s32.totalorder %s38, 1
          %s687 = scalar_select %p686, %s38, 1
          %s688 = scalar_lea.vmem %s2, %s687
        $region104: #{tpu_custom_call.1} parent=91 // pred_fallthru
          _
      $region92: #{tpu_custom_call.1} parent=5 // pred_fallthru
        _
      %p689 = scmp.le.s32.totalorder 1, %s38
      %p690 = scmp.lt.s32.totalorder %s38, 3
      %p691 = pnand %p689, %p690
      %p692 = pneg %p691
      // Predicated region
      $region105: #{tpu_custom_call.1} parent=5 // pred_check
        _
      $region106: #{tpu_custom_call.1} parent=5 // pred_check_branch
        %694 = sbr.rel (%p691) target = $region108
      $region107: #{tpu_custom_call.1} parent=5 // pred_region
        %s695 = ssub.s32 %s38, 1
        %s696 = sand.u32 %s51, 1
        %s697 = scalar_lea.sflag [#allocation3], %s696
        %s698 = sand.u32 %s51, 1
        %s699 = smul.addr %s698, 8
        %s700 = scalar_lea.vmem [#allocation2], %s699
        // Predicated region
        $region109: #{tpu_custom_call.1} parent=107 // pred_check
          %p701 = pneg %p64
        $region110: #{tpu_custom_call.1} parent=107 // pred_check_branch
          %703 = sbr.rel (%p701) target = $region112
        $region111: #{tpu_custom_call.1} parent=107 // pred_region
          %704 = dma.done %s697, 128
        $region112: #{tpu_custom_call.1} parent=107 // pred_fallthru
          _
        %s705 = sand.u32 %s43, 1
        %s706 = scalar_lea.sflag [#allocation6], %s705
        %s707 = sand.u32 %s77, 1
        %s708 = smul.addr %s707, 8
        %s709 = scalar_lea.vmem [#allocation5], %s708
        // Predicated region
        $region113: #{tpu_custom_call.1} parent=107 // pred_check
          %p710 = pneg %p90
        $region114: #{tpu_custom_call.1} parent=107 // pred_check_branch
          %712 = sbr.rel (%p710) target = $region116
        $region115: #{tpu_custom_call.1} parent=107 // pred_region
          %713 = dma.done %s706, 128
        $region116: #{tpu_custom_call.1} parent=107 // pred_fallthru
          _
        // Predicated region
        $region117: #{tpu_custom_call.1} parent=107 // pred_check
          %p714 = pneg %p137
        $region118: #{tpu_custom_call.1} parent=107 // pred_check_branch
          %716 = sbr.rel (%p714) target = $region120
        $region119: #{tpu_custom_call.1} parent=107 // pred_region
          %717 = dma.done [#allocation6], 256
        $region120: #{tpu_custom_call.1} parent=107 // pred_fallthru
          _
        // Predicated region
        $region121: #{tpu_custom_call.1} parent=107 // pred_check
          %p718 = pneg %p284
        $region122: #{tpu_custom_call.1} parent=107 // pred_check_branch
          %720 = sbr.rel (%p718) target = $region124
        $region123: #{tpu_custom_call.1} parent=107 // pred_region
          %721 = dma.done [#allocation9], 1024
        $region124: #{tpu_custom_call.1} parent=107 // pred_fallthru
          _
        // Predicated region
        $region125: #{tpu_custom_call.1} parent=107 // pred_check
          %p722 = pneg %p368
        $region126: #{tpu_custom_call.1} parent=107 // pred_check_branch
          %724 = sbr.rel (%p722) target = $region128
        $region127: #{tpu_custom_call.1} parent=107 // pred_region
          %725 = dma.done [#allocation9], 1024
        $region128: #{tpu_custom_call.1} parent=107 // pred_fallthru
          _
        %s726 = sand.u32 %s51, 1
        %s727 = scalar_lea.sflag [#allocation3], %s726
        %s728 = sand.u32 %s51, 1
        %s729 = smul.addr %s728, 8
        %s730 = scalar_lea.vmem [#allocation2], %s729
        %p731 = pneg %p64
        %p732 = pneg %p61
        %s733 = sand.u32 %s43, 1
        %s734 = scalar_lea.sflag [#allocation6], %s733
        %s735 = sand.u32 %s77, 1
        %s736 = smul.addr %s735, 8
        %s737 = scalar_lea.vmem [#allocation5], %s736
        %p738 = pneg %p90
        %p739 = pneg %p87
        %p740 = scmp.lt.s32.totalorder %s43, 1
        %s741 = scalar_select %p740, %s43, 1
        %s742 = scalar_lea.vmem %s2, %s741
        %p743 = pneg %p116
        %p744 = pneg %p113
        %p745 = pneg %p137
        %p746 = pneg %p134
        %p747 = pneg %p158
        %p748 = pneg %p155
        %p749 = pneg %p179
        %p750 = pneg %p176
        %p751 = pneg %p200
        %p752 = pneg %p197
        %p753 = pneg %p221
        %p754 = pneg %p218
        %p755 = pneg %p242
        %p756 = pneg %p239
        %p757 = pneg %p263
        %p758 = pneg %p260
        %p759 = pneg %p284
        %p760 = pneg %p281
        %p761 = pneg %p305
        %p762 = pneg %p302
        %p763 = pneg %p326
        %p764 = pneg %p323
        %p765 = pneg %p347
        %p766 = pneg %p344
        %p767 = pneg %p368
        %p768 = pneg %p365
        %p769 = pneg %p389
        %p770 = pneg %p386
        %p771 = pneg %p410
        %p772 = pneg %p407
        %p773 = pneg %p431
        %p774 = pneg %p428
        %p775 = pneg %p452
        %p776 = pneg %p449
        %p777 = pneg %p473
        %p778 = pneg %p470
        %p779 = pneg %p494
        %p780 = pneg %p491
        %p781 = pneg %p515
        %p782 = pneg %p512
        %p783 = pneg %p541
        %p784 = pneg %p538
        %s785 = sand.u32 %s528, 1
        %s786 = scalar_lea.sflag [#allocation4], %s785
        %s787 = sand.u32 %s528, 1
        %s788 = smul.addr %s787, 16
        %s789 = scalar_lea.vmem [#allocation11], %s788
        %p790 = scmp.lt.s32.totalorder %s43, 1
        %s791 = scalar_select %p790, %s43, 1
        %s792 = scalar_lea.vmem %s2, %s791
        %v793 = vld [vmem:[%s700] sm:$0xff]
        %v794 = vld [vmem:[%s709] sm:$0xff]
        %v795 = vld [vmem:[#allocation7] sm:$0xff]
        %v796 = vld [vmem:[#allocation7 + $0x8] sm:$0xff]
        %v797 = vadd.f32 %v793, %v795
        %v798 = vadd.f32 %v794, %v796
        %v799 = vld [vmem:[%s792] sm:$0x1]
        %vm800 = vcmp.gt.f32.partialorder %v799, 0.0
        %v801 = vsel %vm800, 0.0, -1e+09
        %v802 = vld [vmem:[%s12] sm:$0x1]
        %v803 = vld [vmem:[%s13] sm:$0x1]
        %vm804 = vcmask 261120
        %v805 = vsel %vm804, %v797, 0.0
        %806 = vadd.xlane.f32.xlu0 %v805
        %v807 = vpop.xlane.xlu0 %806
        %v808 = vsel %vm804, %v798, 0.0
        %809 = vadd.xlane.f32.xlu0 %v808
        %v810 = vpop.xlane.xlu0 %809
        %v811 = vrcp.pop 32.0
        %v812 = vmul.f32 %v807, %v811
        %v813 = vmul.f32 %v810, %v811
        %v814 = vsub.f32 %v797, %v812
        %v815 = vsub.f32 %v798, %v813
        %v816 = vmul.f32 %v814, %v814
        %v817 = vmul.f32 %v815, %v815
        %v818 = vsel %vm804, %v816, 0.0
        %819 = vadd.xlane.f32.xlu0 %v818
        %v820 = vpop.xlane.xlu0 %819
        %v821 = vsel %vm804, %v817, 0.0
        %822 = vadd.xlane.f32.xlu0 %v821
        %v823 = vpop.xlane.xlu0 %822
        %v824 = vrcp.pop 31.0
        %v825 = vmul.f32 %v820, %v824
        %v826 = vmul.f32 %v823, %v824
        %v827 = vrsqrt.pop %v825
        %v828 = vmul.f32 %v825, %v827
        %vm829 = vcmp.eq.f32.partialorder %v825, inf
        %v830 = vsel %vm829, %v825, %v828
        %vm831 = vcmp.eq.f32.partialorder %v825, 0.0
        %v832 = vand.u32 %v825, 2147483648
        %v833 = vsel %vm831, %v832, %v830
        %v834 = vrsqrt.pop %v826
        %v835 = vmul.f32 %v826, %v834
        %vm836 = vcmp.eq.f32.partialorder %v826, inf
        %v837 = vsel %vm836, %v826, %v835
        %vm838 = vcmp.eq.f32.partialorder %v826, 0.0
        %v839 = vand.u32 %v826, 2147483648
        %v840 = vsel %vm838, %v839, %v837
        %v842 = vlaneseq
        %v843 = vshrl.u32 %v842, 7
        %v844 = vsub.s32 0, %v843
        %v845 = vrot.slane %v802, %v844
        %v847 = vmul.f32 %v845, %v814
        %v848 = vmul.f32 %v845, %v815
        %v849 = vadd.f32 %v833, 1e-06
        %v850 = vadd.f32 %v840, 1e-06
        %v851 = vrcp.pop %v849
        %v852 = vmul.f32 %v847, %v851
        %v853 = vrcp.pop %v850
        %v854 = vmul.f32 %v848, %v853
        %v856 = vlaneseq
        %v857 = vshrl.u32 %v856, 7
        %v858 = vsub.s32 0, %v857
        %v859 = vrot.slane %v803, %v858
        %v861 = vadd.f32 %v852, %v859
        %v862 = vadd.f32 %v854, %v859
        %v863 = vld [vmem:[%s4] sm:$0xff]
        %v864 = vld [vmem:[%s4 + $0x8] sm:$0xff]
        %v865 = vld [vmem:[%s4 + $0x10] sm:$0xff]
        %v866 = vld [vmem:[%s4 + $0x18] sm:$0xff]
        %v867 = vld [vmem:[%s5] sm:$0x1]
        %v869 = vlaneseq
        %v870 = vshrl.u32 %v869, 7
        %v871 = vsub.s32 0, %v870
        %v872 = vrot.slane %v867, %v871
        %v875 = vsel %vm804, %v861, 0
        %v878 = vsel %vm804, %v862, 0
        %880 = vmatprep.subr.mxu0 0.0
        %881 = vmatpush1.msra.mxu0 %v863
        %882 = vmatprep.subr.mxu0 0.0
        %883 = vmatpush1.msra.mxu0 %v864
        %884 = vmatprep.subr.mxu0 0.0
        %885 = vmatpush1.msra.mxu0 %v865
        %886 = vmatprep.subr.mxu0 0.0
        %887 = vmatpush1.msra.mxu0 %v866
        %888 = vmatprep.subr.mxu0 0.0
        %889 = vmatpush1.msra.mxu0 0.0
        %890 = vmatprep.subr.mxu0 0.0
        %891 = vmatpush1.msra.mxu0 0.0
        %892 = vmatprep.subr.mxu0 0.0
        %893 = vmatpush1.msra.mxu0 0.0
        %894 = vmatprep.subr.mxu0 0.0
        %895 = vmatpush1.msra.mxu0 0.0
        %896 = vmatprep.subr.mxu0 0.0
        %897 = vmatpush1.msra.mxu0 0.0
        %898 = vmatprep.subr.mxu0 0.0
        %899 = vmatpush1.msra.mxu0 0.0
        %900 = vmatprep.subr.mxu0 0.0
        %901 = vmatpush1.msra.mxu0 0.0
        %902 = vmatprep.subr.mxu0 0.0
        %903 = vmatpush1.msra.mxu0 0.0
        %904 = vmatprep.subr.mxu0 0.0
        %905 = vmatpush1.msra.mxu0 0.0
        %906 = vmatprep.subr.mxu0 0.0
        %907 = vmatpush1.msra.mxu0 0.0
        %908 = vmatprep.subr.mxu0 0.0
        %909 = vmatpush1.msra.mxu0 0.0
        %910 = vmatprep.subr.mxu0 0.0
        %911 = vmatpush1.msra.mxu0 0.0
        %912 = vmatprep.subr.mxu0 0.0
        %913 = vmatpush1.msra.mxu0 0.0
        %914 = vmatprep.subr.mxu0 0.0
        %915 = vmatpush1.msra.mxu0 0.0
        %916 = vmatprep.subr.mxu0 0.0
        %917 = vmatpush1.msra.mxu0 0.0
        %918 = vmatprep.subr.mxu0 0.0
        %919 = vmatpush1.msra.mxu0 0.0
        %920 = vmatprep.subr.mxu0 0.0
        %921 = vmatpush1.msra.mxu0 0.0
        %922 = vmatprep.subr.mxu0 0.0
        %923 = vmatpush1.msra.mxu0 0.0
        %924 = vmatprep.subr.mxu0 0.0
        %925 = vmatpush1.msra.mxu0 0.0
        %926 = vmatprep.subr.mxu0 0.0
        %927 = vmatpush1.msra.mxu0 0.0
        %928 = vmatprep.subr.mxu0 0.0
        %929 = vmatpush1.msra.mxu0 0.0
        %930 = vmatprep.subr.mxu0 0.0
        %931 = vmatpush1.msra.mxu0 0.0
        %932 = vmatprep.subr.mxu0 0.0
        %933 = vmatpush1.msra.mxu0 0.0
        %934 = vmatprep.subr.mxu0 0.0
        %935 = vmatpush1.msra.mxu0 0.0
        %936 = vmatprep.subr.mxu0 0.0
        %937 = vmatpush1.msra.mxu0 0.0
        %938 = vmatprep.subr.mxu0 0.0
        %939 = vmatpush1.msra.mxu0 0.0
        %940 = vmatprep.subr.mxu0 0.0
        %941 = vmatpush1.msra.mxu0 0.0
        %942 = vmatprep.subr.mxu0 0.0
        %943 = vmatpush1.msra.mxu0 0.0
        %944 = vmatprep.mubr.f32.mxu0 0.0
        %945 = vmatmul.mubr.f32.gmra.mrb[0].mxu0 %v875
        %v946 = vpop.f32.mrb[0].mxu0
        %v947 = vadd.f32 %v872, %v946
        %v948 = vpop.f32.mrb[0].mxu0
        %949 = vmatprep.mubr.f32.mxu0 0.0
        %950 = vmatmul.mubr.f32.gmra.mrb[0].mxu0 %v878
        %v951 = vpop.f32.mrb[0].mxu0
        %v952 = vadd.f32 %v872, %v951
        %v953 = vpop.f32.mrb[0].mxu0
        %954 = vdwg.mxu0
        %v955 = vld [vmem:[%s6] sm:$0xff]
        %v956 = vld [vmem:[%s6 + $0x8] sm:$0xff]
        %v957 = vld [vmem:[%s6 + $0x10] sm:$0xff]
        %v958 = vld [vmem:[%s6 + $0x18] sm:$0xff]
        %v959 = vld [vmem:[%s7] sm:$0x1]
        %v961 = vlaneseq
        %v962 = vshrl.u32 %v961, 7
        %v963 = vsub.s32 0, %v962
        %v964 = vrot.slane %v959, %v963
        %966 = vmatprep.subr.mxu0 0.0
        %967 = vmatpush1.msra.mxu0 %v955
        %968 = vmatprep.subr.mxu0 0.0
        %969 = vmatpush1.msra.mxu0 %v956
        %970 = vmatprep.subr.mxu0 0.0
        %971 = vmatpush1.msra.mxu0 %v957
        %972 = vmatprep.subr.mxu0 0.0
        %973 = vmatpush1.msra.mxu0 %v958
        %974 = vmatprep.subr.mxu0 0.0
        %975 = vmatpush1.msra.mxu0 0.0
        %976 = vmatprep.subr.mxu0 0.0
        %977 = vmatpush1.msra.mxu0 0.0
        %978 = vmatprep.subr.mxu0 0.0
        %979 = vmatpush1.msra.mxu0 0.0
        %980 = vmatprep.subr.mxu0 0.0
        %981 = vmatpush1.msra.mxu0 0.0
        %982 = vmatprep.subr.mxu0 0.0
        %983 = vmatpush1.msra.mxu0 0.0
        %984 = vmatprep.subr.mxu0 0.0
        %985 = vmatpush1.msra.mxu0 0.0
        %986 = vmatprep.subr.mxu0 0.0
        %987 = vmatpush1.msra.mxu0 0.0
        %988 = vmatprep.subr.mxu0 0.0
        %989 = vmatpush1.msra.mxu0 0.0
        %990 = vmatprep.subr.mxu0 0.0
        %991 = vmatpush1.msra.mxu0 0.0
        %992 = vmatprep.subr.mxu0 0.0
        %993 = vmatpush1.msra.mxu0 0.0
        %994 = vmatprep.subr.mxu0 0.0
        %995 = vmatpush1.msra.mxu0 0.0
        %996 = vmatprep.subr.mxu0 0.0
        %997 = vmatpush1.msra.mxu0 0.0
        %998 = vmatprep.subr.mxu0 0.0
        %999 = vmatpush1.msra.mxu0 0.0
        %1000 = vmatprep.subr.mxu0 0.0
        %1001 = vmatpush1.msra.mxu0 0.0
        %1002 = vmatprep.subr.mxu0 0.0
        %1003 = vmatpush1.msra.mxu0 0.0
        %1004 = vmatprep.subr.mxu0 0.0
        %1005 = vmatpush1.msra.mxu0 0.0
        %1006 = vmatprep.subr.mxu0 0.0
        %1007 = vmatpush1.msra.mxu0 0.0
        %1008 = vmatprep.subr.mxu0 0.0
        %1009 = vmatpush1.msra.mxu0 0.0
        %1010 = vmatprep.subr.mxu0 0.0
        %1011 = vmatpush1.msra.mxu0 0.0
        %1012 = vmatprep.subr.mxu0 0.0
        %1013 = vmatpush1.msra.mxu0 0.0
        %1014 = vmatprep.subr.mxu0 0.0
        %1015 = vmatpush1.msra.mxu0 0.0
        %1016 = vmatprep.subr.mxu0 0.0
        %1017 = vmatpush1.msra.mxu0 0.0
        %1018 = vmatprep.subr.mxu0 0.0
        %1019 = vmatpush1.msra.mxu0 0.0
        %1020 = vmatprep.subr.mxu0 0.0
        %1021 = vmatpush1.msra.mxu0 0.0
        %1022 = vmatprep.subr.mxu0 0.0
        %1023 = vmatpush1.msra.mxu0 0.0
        %1024 = vmatprep.subr.mxu0 0.0
        %1025 = vmatpush1.msra.mxu0 0.0
        %1026 = vmatprep.subr.mxu0 0.0
        %1027 = vmatpush1.msra.mxu0 0.0
        %1028 = vmatprep.subr.mxu0 0.0
        %1029 = vmatpush1.msra.mxu0 0.0
        %1030 = vmatprep.mubr.f32.mxu0 0.0
        %1031 = vmatmul.mubr.f32.gmra.mrb[0].mxu0 %v875
        %v1032 = vpop.f32.mrb[0].mxu0
        %v1033 = vadd.f32 %v964, %v1032
        %v1034 = vpop.f32.mrb[0].mxu0
        %1035 = vmatprep.mubr.f32.mxu0 0.0
        %1036 = vmatmul.mubr.f32.gmra.mrb[0].mxu0 %v878
        %v1037 = vpop.f32.mrb[0].mxu0
        %v1038 = vadd.f32 %v964, %v1037
        %v1039 = vpop.f32.mrb[0].mxu0
        %1040 = vdwg.mxu0
        %v1041 = vld [vmem:[%s8] sm:$0xff]
        %v1042 = vld [vmem:[%s8 + $0x8] sm:$0xff]
        %v1043 = vld [vmem:[%s8 + $0x10] sm:$0xff]
        %v1044 = vld [vmem:[%s8 + $0x18] sm:$0xff]
        %v1045 = vld [vmem:[%s9] sm:$0x1]
        %v1047 = vlaneseq
        %v1048 = vshrl.u32 %v1047, 7
        %v1049 = vsub.s32 0, %v1048
        %v1050 = vrot.slane %v1045, %v1049
        %1052 = vmatprep.subr.mxu0 0.0
        %1053 = vmatpush1.msra.mxu0 %v1041
        %1054 = vmatprep.subr.mxu0 0.0
        %1055 = vmatpush1.msra.mxu0 %v1042
        %1056 = vmatprep.subr.mxu0 0.0
        %1057 = vmatpush1.msra.mxu0 %v1043
        %1058 = vmatprep.subr.mxu0 0.0
        %1059 = vmatpush1.msra.mxu0 %v1044
        %1060 = vmatprep.subr.mxu0 0.0
        %1061 = vmatpush1.msra.mxu0 0.0
        %1062 = vmatprep.subr.mxu0 0.0
        %1063 = vmatpush1.msra.mxu0 0.0
        %1064 = vmatprep.subr.mxu0 0.0
        %1065 = vmatpush1.msra.mxu0 0.0
        %1066 = vmatprep.subr.mxu0 0.0
        %1067 = vmatpush1.msra.mxu0 0.0
        %1068 = vmatprep.subr.mxu0 0.0
        %1069 = vmatpush1.msra.mxu0 0.0
        %1070 = vmatprep.subr.mxu0 0.0
        %1071 = vmatpush1.msra.mxu0 0.0
        %1072 = vmatprep.subr.mxu0 0.0
        %1073 = vmatpush1.msra.mxu0 0.0
        %1074 = vmatprep.subr.mxu0 0.0
        %1075 = vmatpush1.msra.mxu0 0.0
        %1076 = vmatprep.subr.mxu0 0.0
        %1077 = vmatpush1.msra.mxu0 0.0
        %1078 = vmatprep.subr.mxu0 0.0
        %1079 = vmatpush1.msra.mxu0 0.0
        %1080 = vmatprep.subr.mxu0 0.0
        %1081 = vmatpush1.msra.mxu0 0.0
        %1082 = vmatprep.subr.mxu0 0.0
        %1083 = vmatpush1.msra.mxu0 0.0
        %1084 = vmatprep.subr.mxu0 0.0
        %1085 = vmatpush1.msra.mxu0 0.0
        %1086 = vmatprep.subr.mxu0 0.0
        %1087 = vmatpush1.msra.mxu0 0.0
        %1088 = vmatprep.subr.mxu0 0.0
        %1089 = vmatpush1.msra.mxu0 0.0
        %1090 = vmatprep.subr.mxu0 0.0
        %1091 = vmatpush1.msra.mxu0 0.0
        %1092 = vmatprep.subr.mxu0 0.0
        %1093 = vmatpush1.msra.mxu0 0.0
        %1094 = vmatprep.subr.mxu0 0.0
        %1095 = vmatpush1.msra.mxu0 0.0
        %1096 = vmatprep.subr.mxu0 0.0
        %1097 = vmatpush1.msra.mxu0 0.0
        %1098 = vmatprep.subr.mxu0 0.0
        %1099 = vmatpush1.msra.mxu0 0.0
        %1100 = vmatprep.subr.mxu0 0.0
        %1101 = vmatpush1.msra.mxu0 0.0
        %1102 = vmatprep.subr.mxu0 0.0
        %1103 = vmatpush1.msra.mxu0 0.0
        %1104 = vmatprep.subr.mxu0 0.0
        %1105 = vmatpush1.msra.mxu0 0.0
        %1106 = vmatprep.subr.mxu0 0.0
        %1107 = vmatpush1.msra.mxu0 0.0
        %1108 = vmatprep.subr.mxu0 0.0
        %1109 = vmatpush1.msra.mxu0 0.0
        %1110 = vmatprep.subr.mxu0 0.0
        %1111 = vmatpush1.msra.mxu0 0.0
        %1112 = vmatprep.subr.mxu0 0.0
        %1113 = vmatpush1.msra.mxu0 0.0
        %1114 = vmatprep.subr.mxu0 0.0
        %1115 = vmatpush1.msra.mxu0 0.0
        %1116 = vmatprep.mubr.f32.mxu0 0.0
        %1117 = vmatmul.mubr.f32.gmra.mrb[0].mxu0 %v875
        %v1118 = vpop.f32.mrb[0].mxu0
        %v1119 = vadd.f32 %v1050, %v1118
        %v1120 = vpop.f32.mrb[0].mxu0
        %1121 = vmatprep.mubr.f32.mxu0 0.0
        %1122 = vmatmul.mubr.f32.gmra.mrb[0].mxu0 %v878
        %v1123 = vpop.f32.mrb[0].mxu0
        %v1124 = vadd.f32 %v1050, %v1123
        %v1125 = vpop.f32.mrb[0].mxu0
        %1126 = vdwg.mxu0
        %v1128 = vlaneseq
        %v1129 = vshrl.u32 %v1128, 7
        %v1130 = vsub.s32 0, %v1129
        %v1131 = vrot.slane %v801, %v1130
        %vm1133 = vcmask 64512
        %v1135 = vsel %vm1133, %v947, 0
        %v1138 = vsel %vm1133, %v952, 0
        %v1141 = vsel %vm1133, %v1033, 0
        %v1144 = vsel %vm1133, %v1038, 0
        %1146 = vmatprep.subr.mxu0 0.0
        %1147 = vmatpush1.xpose.msra.mxu0 %v1141
        %1148 = vmatprep.subr.mxu0 0.0
        %1149 = vmatpush1.xpose.msra.mxu0 %v1144
        %1150 = vmatprep.subr.mxu0 0.0
        %1151 = vmatpush1.xpose.msra.mxu0 0.0
        %1152 = vmatprep.subr.mxu0 0.0
        %1153 = vmatpush1.xpose.msra.mxu0 0.0
        %1154 = vmatprep.subr.mxu0 0.0
        %1155 = vmatpush1.xpose.msra.mxu0 0.0
        %1156 = vmatprep.subr.mxu0 0.0
        %1157 = vmatpush1.xpose.msra.mxu0 0.0
        %1158 = vmatprep.subr.mxu0 0.0
        %1159 = vmatpush1.xpose.msra.mxu0 0.0
        %1160 = vmatprep.subr.mxu0 0.0
        %1161 = vmatpush1.xpose.msra.mxu0 0.0
        %1162 = vmatprep.subr.mxu0 0.0
        %1163 = vmatpush1.xpose.msra.mxu0 0.0
        %1164 = vmatprep.subr.mxu0 0.0
        %1165 = vmatpush1.xpose.msra.mxu0 0.0
        %1166 = vmatprep.subr.mxu0 0.0
        %1167 = vmatpush1.xpose.msra.mxu0 0.0
        %1168 = vmatprep.subr.mxu0 0.0
        %1169 = vmatpush1.xpose.msra.mxu0 0.0
        %1170 = vmatprep.subr.mxu0 0.0
        %1171 = vmatpush1.xpose.msra.mxu0 0.0
        %1172 = vmatprep.subr.mxu0 0.0
        %1173 = vmatpush1.xpose.msra.mxu0 0.0
        %1174 = vmatprep.subr.mxu0 0.0
        %1175 = vmatpush1.xpose.msra.mxu0 0.0
        %1176 = vmatprep.subr.mxu0 0.0
        %1177 = vmatpush1.xpose.msra.mxu0 0.0
        %1178 = vmatprep.subr.mxu0 0.0
        %1179 = vmatpush1.xpose.msra.mxu0 0.0
        %1180 = vmatprep.subr.mxu0 0.0
        %1181 = vmatpush1.xpose.msra.mxu0 0.0
        %1182 = vmatprep.subr.mxu0 0.0
        %1183 = vmatpush1.xpose.msra.mxu0 0.0
        %1184 = vmatprep.subr.mxu0 0.0
        %1185 = vmatpush1.xpose.msra.mxu0 0.0
        %1186 = vmatprep.subr.mxu0 0.0
        %1187 = vmatpush1.xpose.msra.mxu0 0.0
        %1188 = vmatprep.subr.mxu0 0.0
        %1189 = vmatpush1.xpose.msra.mxu0 0.0
        %1190 = vmatprep.subr.mxu0 0.0
        %1191 = vmatpush1.xpose.msra.mxu0 0.0
        %1192 = vmatprep.subr.mxu0 0.0
        %1193 = vmatpush1.xpose.msra.mxu0 0.0
        %1194 = vmatprep.subr.mxu0 0.0
        %1195 = vmatpush1.xpose.msra.mxu0 0.0
        %1196 = vmatprep.subr.mxu0 0.0
        %1197 = vmatpush1.xpose.msra.mxu0 0.0
        %1198 = vmatprep.subr.mxu0 0.0
        %1199 = vmatpush1.xpose.msra.mxu0 0.0
        %1200 = vmatprep.subr.mxu0 0.0
        %1201 = vmatpush1.xpose.msra.mxu0 0.0
        %1202 = vmatprep.subr.mxu0 0.0
        %1203 = vmatpush1.xpose.msra.mxu0 0.0
        %1204 = vmatprep.subr.mxu0 0.0
        %1205 = vmatpush1.xpose.msra.mxu0 0.0
        %1206 = vmatprep.subr.mxu0 0.0
        %1207 = vmatpush1.xpose.msra.mxu0 0.0
        %1208 = vmatprep.subr.mxu0 0.0
        %1209 = vmatpush1.xpose.msra.mxu0 0.0
        %1210 = vmatprep.mubr.f32.mxu0 0.0
        %1211 = vmatmul.mubr.f32.gmra.mrb[0].mxu0 %v1135
        %v1212 = vpop.f32.mrb[0].mxu0
        %v1213 = vadd.f32 %v1131, %v1212
        %v1214 = vpop.f32.mrb[0].mxu0
        %1215 = vmatprep.mubr.f32.mxu0 0.0
        %1216 = vmatmul.mubr.f32.gmra.mrb[0].mxu0 %v1138
        %v1217 = vpop.f32.mrb[0].mxu0
        %v1218 = vadd.f32 %v1131, %v1217
        %v1219 = vpop.f32.mrb[0].mxu0
        %1220 = vdwg.mxu0
        %vm1221 = vcmask 130048
        %v1222 = vsel %vm1221, %v1213, -inf
        %1223 = vmax.xlane.f32.xlu0 %v1222
        %v1224 = vpop.xlane.xlu0 %1223
        %v1225 = vsel %vm1221, %v1218, -inf
        %1226 = vmax.xlane.f32.xlu0 %v1225
        %v1227 = vpop.xlane.xlu0 %1226
        %v1228 = vsub.f32 %v1213, %v1224
        %v1229 = vsub.f32 %v1218, %v1227
        %v1230 = vmul.f32 %v1228, 1.442695
        %v1231 = vpow.pop %v1230
        %v1232 = vmul.f32 %v1229, 1.442695
        %v1233 = vpow.pop %v1232
        %v1234 = vsel %vm1221, %v1231, 0.0
        %1235 = vadd.xlane.f32.xlu0 %v1234
        %v1236 = vpop.xlane.xlu0 %1235
        %v1237 = vsel %vm1221, %v1233, 0.0
        %1238 = vadd.xlane.f32.xlu0 %v1237
        %v1239 = vpop.xlane.xlu0 %1238
        %v1240 = vrcp.pop %v1236
        %v1241 = vmul.f32 %v1231, %v1240
        %v1242 = vrcp.pop %v1239
        %v1243 = vmul.f32 %v1233, %v1242
        %v1245 = vsel %vm1221, %v1241, 0
        %v1248 = vsel %vm1221, %v1243, 0
        %1250 = vmatprep.subr.mxu0 0.0
        %1251 = vmatpush1.msra.mxu0 %v1119
        %1252 = vmatprep.subr.mxu0 0.0
        %1253 = vmatpush1.msra.mxu0 %v1124
        %1254 = vmatprep.subr.mxu0 0.0
        %1255 = vmatpush1.msra.mxu0 0.0
        %1256 = vmatprep.subr.mxu0 0.0
        %1257 = vmatpush1.msra.mxu0 0.0
        %1258 = vmatprep.subr.mxu0 0.0
        %1259 = vmatpush1.msra.mxu0 0.0
        %1260 = vmatprep.subr.mxu0 0.0
        %1261 = vmatpush1.msra.mxu0 0.0
        %1262 = vmatprep.subr.mxu0 0.0
        %1263 = vmatpush1.msra.mxu0 0.0
        %1264 = vmatprep.subr.mxu0 0.0
        %1265 = vmatpush1.msra.mxu0 0.0
        %1266 = vmatprep.subr.mxu0 0.0
        %1267 = vmatpush1.msra.mxu0 0.0
        %1268 = vmatprep.subr.mxu0 0.0
        %1269 = vmatpush1.msra.mxu0 0.0
        %1270 = vmatprep.subr.mxu0 0.0
        %1271 = vmatpush1.msra.mxu0 0.0
        %1272 = vmatprep.subr.mxu0 0.0
        %1273 = vmatpush1.msra.mxu0 0.0
        %1274 = vmatprep.subr.mxu0 0.0
        %1275 = vmatpush1.msra.mxu0 0.0
        %1276 = vmatprep.subr.mxu0 0.0
        %1277 = vmatpush1.msra.mxu0 0.0
        %1278 = vmatprep.subr.mxu0 0.0
        %1279 = vmatpush1.msra.mxu0 0.0
        %1280 = vmatprep.subr.mxu0 0.0
        %1281 = vmatpush1.msra.mxu0 0.0
        %1282 = vmatprep.subr.mxu0 0.0
        %1283 = vmatpush1.msra.mxu0 0.0
        %1284 = vmatprep.subr.mxu0 0.0
        %1285 = vmatpush1.msra.mxu0 0.0
        %1286 = vmatprep.subr.mxu0 0.0
        %1287 = vmatpush1.msra.mxu0 0.0
        %1288 = vmatprep.subr.mxu0 0.0
        %1289 = vmatpush1.msra.mxu0 0.0
        %1290 = vmatprep.subr.mxu0 0.0
        %1291 = vmatpush1.msra.mxu0 0.0
        %1292 = vmatprep.subr.mxu0 0.0
        %1293 = vmatpush1.msra.mxu0 0.0
        %1294 = vmatprep.subr.mxu0 0.0
        %1295 = vmatpush1.msra.mxu0 0.0
        %1296 = vmatprep.subr.mxu0 0.0
        %1297 = vmatpush1.msra.mxu0 0.0
        %1298 = vmatprep.subr.mxu0 0.0
        %1299 = vmatpush1.msra.mxu0 0.0
        %1300 = vmatprep.subr.mxu0 0.0
        %1301 = vmatpush1.msra.mxu0 0.0
        %1302 = vmatprep.subr.mxu0 0.0
        %1303 = vmatpush1.msra.mxu0 0.0
        %1304 = vmatprep.subr.mxu0 0.0
        %1305 = vmatpush1.msra.mxu0 0.0
        %1306 = vmatprep.subr.mxu0 0.0
        %1307 = vmatpush1.msra.mxu0 0.0
        %1308 = vmatprep.subr.mxu0 0.0
        %1309 = vmatpush1.msra.mxu0 0.0
        %1310 = vmatprep.subr.mxu0 0.0
        %1311 = vmatpush1.msra.mxu0 0.0
        %1312 = vmatprep.subr.mxu0 0.0
        %1313 = vmatpush1.msra.mxu0 0.0
        %1314 = vmatprep.mubr.f32.mxu0 0.0
        %1315 = vmatmul.mubr.f32.gmra.mrb[0].mxu0 %v1245
        %v1316 = vpop.f32.mrb[0].mxu0
        %v1317 = vadd.f32 0.0, %v1316
        %v1318 = vpop.f32.mrb[0].mxu0
        %1319 = vmatprep.mubr.f32.mxu0 0.0
        %1320 = vmatmul.mubr.f32.gmra.mrb[0].mxu0 %v1248
        %v1321 = vpop.f32.mrb[0].mxu0
        %v1322 = vadd.f32 0.0, %v1321
        %v1323 = vpop.f32.mrb[0].mxu0
        %1324 = vdwg.mxu0
        %1325 = vrot.lane.b32.xlu0 %v947, 120
        %v1326 = vpop.permute.xlu0 %1325
        %1327 = vrot.lane.b32.xlu0 %v952, 120
        %v1328 = vpop.permute.xlu0 %1327
        %1329 = vrot.lane.b32.xlu0 %v1033, 120
        %v1330 = vpop.permute.xlu0 %1329
        %1331 = vrot.lane.b32.xlu0 %v1038, 120
        %v1332 = vpop.permute.xlu0 %1331
        %v1333 = vsel %vm1133, %v1326, 0
        %v1335 = vsel %vm1133, %v1328, 0
        %v1337 = vsel %vm1133, %v1330, 0
        %v1339 = vsel %vm1133, %v1332, 0
        %1341 = vmatprep.subr.mxu0 0.0
        %1342 = vmatpush1.xpose.msra.mxu0 %v1337
        %1343 = vmatprep.subr.mxu0 0.0
        %1344 = vmatpush1.xpose.msra.mxu0 %v1339
        %1345 = vmatprep.subr.mxu0 0.0
        %1346 = vmatpush1.xpose.msra.mxu0 0.0
        %1347 = vmatprep.subr.mxu0 0.0
        %1348 = vmatpush1.xpose.msra.mxu0 0.0
        %1349 = vmatprep.subr.mxu0 0.0
        %1350 = vmatpush1.xpose.msra.mxu0 0.0
        %1351 = vmatprep.subr.mxu0 0.0
        %1352 = vmatpush1.xpose.msra.mxu0 0.0
        %1353 = vmatprep.subr.mxu0 0.0
        %1354 = vmatpush1.xpose.msra.mxu0 0.0
        %1355 = vmatprep.subr.mxu0 0.0
        %1356 = vmatpush1.xpose.msra.mxu0 0.0
        %1357 = vmatprep.subr.mxu0 0.0
        %1358 = vmatpush1.xpose.msra.mxu0 0.0
        %1359 = vmatprep.subr.mxu0 0.0
        %1360 = vmatpush1.xpose.msra.mxu0 0.0
        %1361 = vmatprep.subr.mxu0 0.0
        %1362 = vmatpush1.xpose.msra.mxu0 0.0
        %1363 = vmatprep.subr.mxu0 0.0
        %1364 = vmatpush1.xpose.msra.mxu0 0.0
        %1365 = vmatprep.subr.mxu0 0.0
        %1366 = vmatpush1.xpose.msra.mxu0 0.0
        %1367 = vmatprep.subr.mxu0 0.0
        %1368 = vmatpush1.xpose.msra.mxu0 0.0
        %1369 = vmatprep.subr.mxu0 0.0
        %1370 = vmatpush1.xpose.msra.mxu0 0.0
        %1371 = vmatprep.subr.mxu0 0.0
        %1372 = vmatpush1.xpose.msra.mxu0 0.0
        %1373 = vmatprep.subr.mxu0 0.0
        %1374 = vmatpush1.xpose.msra.mxu0 0.0
        %1375 = vmatprep.subr.mxu0 0.0
        %1376 = vmatpush1.xpose.msra.mxu0 0.0
        %1377 = vmatprep.subr.mxu0 0.0
        %1378 = vmatpush1.xpose.msra.mxu0 0.0
        %1379 = vmatprep.subr.mxu0 0.0
        %1380 = vmatpush1.xpose.msra.mxu0 0.0
        %1381 = vmatprep.subr.mxu0 0.0
        %1382 = vmatpush1.xpose.msra.mxu0 0.0
        %1383 = vmatprep.subr.mxu0 0.0
        %1384 = vmatpush1.xpose.msra.mxu0 0.0
        %1385 = vmatprep.subr.mxu0 0.0
        %1386 = vmatpush1.xpose.msra.mxu0 0.0
        %1387 = vmatprep.subr.mxu0 0.0
        %1388 = vmatpush1.xpose.msra.mxu0 0.0
        %1389 = vmatprep.subr.mxu0 0.0
        %1390 = vmatpush1.xpose.msra.mxu0 0.0
        %1391 = vmatprep.subr.mxu0 0.0
        %1392 = vmatpush1.xpose.msra.mxu0 0.0
        %1393 = vmatprep.subr.mxu0 0.0
        %1394 = vmatpush1.xpose.msra.mxu0 0.0
        %1395 = vmatprep.subr.mxu0 0.0
        %1396 = vmatpush1.xpose.msra.mxu0 0.0
        %1397 = vmatprep.subr.mxu0 0.0
        %1398 = vmatpush1.xpose.msra.mxu0 0.0
        %1399 = vmatprep.subr.mxu0 0.0
        %1400 = vmatpush1.xpose.msra.mxu0 0.0
        %1401 = vmatprep.subr.mxu0 0.0
        %1402 = vmatpush1.xpose.msra.mxu0 0.0
        %1403 = vmatprep.subr.mxu0 0.0
        %1404 = vmatpush1.xpose.msra.mxu0 0.0
        %1405 = vmatprep.mubr.f32.mxu0 0.0
        %1406 = vmatmul.mubr.f32.gmra.mrb[0].mxu0 %v1333
        %v1407 = vpop.f32.mrb[0].mxu0
        %v1408 = vadd.f32 %v1131, %v1407
        %v1409 = vpop.f32.mrb[0].mxu0
        %1410 = vmatprep.mubr.f32.mxu0 0.0
        %1411 = vmatmul.mubr.f32.gmra.mrb[0].mxu0 %v1335
        %v1412 = vpop.f32.mrb[0].mxu0
        %v1413 = vadd.f32 %v1131, %v1412
        %v1414 = vpop.f32.mrb[0].mxu0
        %1415 = vdwg.mxu0
        %v1416 = vsel %vm1221, %v1408, -inf
        %1417 = vmax.xlane.f32.xlu0 %v1416
        %v1418 = vpop.xlane.xlu0 %1417
        %v1419 = vsel %vm1221, %v1413, -inf
        %1420 = vmax.xlane.f32.xlu0 %v1419
        %v1421 = vpop.xlane.xlu0 %1420
        %v1422 = vsub.f32 %v1408, %v1418
        %v1423 = vsub.f32 %v1413, %v1421
        %v1424 = vmul.f32 %v1422, 1.442695
        %v1425 = vpow.pop %v1424
        %v1426 = vmul.f32 %v1423, 1.442695
        %v1427 = vpow.pop %v1426
        %v1428 = vsel %vm1221, %v1425, 0.0
        %1429 = vadd.xlane.f32.xlu0 %v1428
        %v1430 = vpop.xlane.xlu0 %1429
        %v1431 = vsel %vm1221, %v1427, 0.0
        %1432 = vadd.xlane.f32.xlu0 %v1431
        %v1433 = vpop.xlane.xlu0 %1432
        %v1434 = vrcp.pop %v1430
        %v1435 = vmul.f32 %v1425, %v1434
        %v1436 = vrcp.pop %v1433
        %v1437 = vmul.f32 %v1427, %v1436
        %1440 = vrot.lane.b32.xlu0 %v1119, 120
        %v1441 = vpop.permute.xlu0 %1440
        %1442 = vrot.lane.b32.xlu0 %v1124, 120
        %v1443 = vpop.permute.xlu0 %1442
        %v1447 = vsel %vm1221, %v1435, 0
        %v1450 = vsel %vm1221, %v1437, 0
        %1452 = vmatprep.subr.mxu0 0.0
        %1453 = vmatpush1.msra.mxu0 %v1441
        %1454 = vmatprep.subr.mxu0 0.0
        %1455 = vmatpush1.msra.mxu0 %v1443
        %1456 = vmatprep.subr.mxu0 0.0
        %1457 = vmatpush1.msra.mxu0 0.0
        %1458 = vmatprep.subr.mxu0 0.0
        %1459 = vmatpush1.msra.mxu0 0.0
        %1460 = vmatprep.subr.mxu0 0.0
        %1461 = vmatpush1.msra.mxu0 0.0
        %1462 = vmatprep.subr.mxu0 0.0
        %1463 = vmatpush1.msra.mxu0 0.0
        %1464 = vmatprep.subr.mxu0 0.0
        %1465 = vmatpush1.msra.mxu0 0.0
        %1466 = vmatprep.subr.mxu0 0.0
        %1467 = vmatpush1.msra.mxu0 0.0
        %1468 = vmatprep.subr.mxu0 0.0
        %1469 = vmatpush1.msra.mxu0 0.0
        %1470 = vmatprep.subr.mxu0 0.0
        %1471 = vmatpush1.msra.mxu0 0.0
        %1472 = vmatprep.subr.mxu0 0.0
        %1473 = vmatpush1.msra.mxu0 0.0
        %1474 = vmatprep.subr.mxu0 0.0
        %1475 = vmatpush1.msra.mxu0 0.0
        %1476 = vmatprep.subr.mxu0 0.0
        %1477 = vmatpush1.msra.mxu0 0.0
        %1478 = vmatprep.subr.mxu0 0.0
        %1479 = vmatpush1.msra.mxu0 0.0
        %1480 = vmatprep.subr.mxu0 0.0
        %1481 = vmatpush1.msra.mxu0 0.0
        %1482 = vmatprep.subr.mxu0 0.0
        %1483 = vmatpush1.msra.mxu0 0.0
        %1484 = vmatprep.subr.mxu0 0.0
        %1485 = vmatpush1.msra.mxu0 0.0
        %1486 = vmatprep.subr.mxu0 0.0
        %1487 = vmatpush1.msra.mxu0 0.0
        %1488 = vmatprep.subr.mxu0 0.0
        %1489 = vmatpush1.msra.mxu0 0.0
        %1490 = vmatprep.subr.mxu0 0.0
        %1491 = vmatpush1.msra.mxu0 0.0
        %1492 = vmatprep.subr.mxu0 0.0
        %1493 = vmatpush1.msra.mxu0 0.0
        %1494 = vmatprep.subr.mxu0 0.0
        %1495 = vmatpush1.msra.mxu0 0.0
        %1496 = vmatprep.subr.mxu0 0.0
        %1497 = vmatpush1.msra.mxu0 0.0
        %1498 = vmatprep.subr.mxu0 0.0
        %1499 = vmatpush1.msra.mxu0 0.0
        %1500 = vmatprep.subr.mxu0 0.0
        %1501 = vmatpush1.msra.mxu0 0.0
        %1502 = vmatprep.subr.mxu0 0.0
        %1503 = vmatpush1.msra.mxu0 0.0
        %1504 = vmatprep.subr.mxu0 0.0
        %1505 = vmatpush1.msra.mxu0 0.0
        %1506 = vmatprep.subr.mxu0 0.0
        %1507 = vmatpush1.msra.mxu0 0.0
        %1508 = vmatprep.subr.mxu0 0.0
        %1509 = vmatpush1.msra.mxu0 0.0
        %1510 = vmatprep.subr.mxu0 0.0
        %1511 = vmatpush1.msra.mxu0 0.0
        %1512 = vmatprep.subr.mxu0 0.0
        %1513 = vmatpush1.msra.mxu0 0.0
        %1514 = vmatprep.subr.mxu0 0.0
        %1515 = vmatpush1.msra.mxu0 0.0
        %1516 = vmatprep.mubr.f32.mxu0 0.0
        %1517 = vmatmul.mubr.f32.gmra.mrb[0].mxu0 %v1447
        %v1518 = vpop.f32.mrb[0].mxu0
        %v1519 = vadd.f32 0.0, %v1518
        %v1520 = vpop.f32.mrb[0].mxu0
        %1521 = vmatprep.mubr.f32.mxu0 0.0
        %1522 = vmatmul.mubr.f32.gmra.mrb[0].mxu0 %v1450
        %v1523 = vpop.f32.mrb[0].mxu0
        %v1524 = vadd.f32 0.0, %v1523
        %v1525 = vpop.f32.mrb[0].mxu0
        %1526 = vdwg.mxu0
        %1527 = vrot.lane.b32.xlu0 %v947, 112
        %v1528 = vpop.permute.xlu0 %1527
        %1529 = vrot.lane.b32.xlu0 %v952, 112
        %v1530 = vpop.permute.xlu0 %1529
        %1531 = vrot.lane.b32.xlu0 %v1033, 112
        %v1532 = vpop.permute.xlu0 %1531
        %1533 = vrot.lane.b32.xlu0 %v1038, 112
        %v1534 = vpop.permute.xlu0 %1533
        %v1535 = vsel %vm1133, %v1528, 0
        %v1537 = vsel %vm1133, %v1530, 0
        %v1539 = vsel %vm1133, %v1532, 0
        %v1541 = vsel %vm1133, %v1534, 0
        %1543 = vmatprep.subr.mxu0 0.0
        %1544 = vmatpush1.xpose.msra.mxu0 %v1539
        %1545 = vmatprep.subr.mxu0 0.0
        %1546 = vmatpush1.xpose.msra.mxu0 %v1541
        %1547 = vmatprep.subr.mxu0 0.0
        %1548 = vmatpush1.xpose.msra.mxu0 0.0
        %1549 = vmatprep.subr.mxu0 0.0
        %1550 = vmatpush1.xpose.msra.mxu0 0.0
        %1551 = vmatprep.subr.mxu0 0.0
        %1552 = vmatpush1.xpose.msra.mxu0 0.0
        %1553 = vmatprep.subr.mxu0 0.0
        %1554 = vmatpush1.xpose.msra.mxu0 0.0
        %1555 = vmatprep.subr.mxu0 0.0
        %1556 = vmatpush1.xpose.msra.mxu0 0.0
        %1557 = vmatprep.subr.mxu0 0.0
        %1558 = vmatpush1.xpose.msra.mxu0 0.0
        %1559 = vmatprep.subr.mxu0 0.0
        %1560 = vmatpush1.xpose.msra.mxu0 0.0
        %1561 = vmatprep.subr.mxu0 0.0
        %1562 = vmatpush1.xpose.msra.mxu0 0.0
        %1563 = vmatprep.subr.mxu0 0.0
        %1564 = vmatpush1.xpose.msra.mxu0 0.0
        %1565 = vmatprep.subr.mxu0 0.0
        %1566 = vmatpush1.xpose.msra.mxu0 0.0
        %1567 = vmatprep.subr.mxu0 0.0
        %1568 = vmatpush1.xpose.msra.mxu0 0.0
        %1569 = vmatprep.subr.mxu0 0.0
        %1570 = vmatpush1.xpose.msra.mxu0 0.0
        %1571 = vmatprep.subr.mxu0 0.0
        %1572 = vmatpush1.xpose.msra.mxu0 0.0
        %1573 = vmatprep.subr.mxu0 0.0
        %1574 = vmatpush1.xpose.msra.mxu0 0.0
        %1575 = vmatprep.subr.mxu0 0.0
        %1576 = vmatpush1.xpose.msra.mxu0 0.0
        %1577 = vmatprep.subr.mxu0 0.0
        %1578 = vmatpush1.xpose.msra.mxu0 0.0
        %1579 = vmatprep.subr.mxu0 0.0
        %1580 = vmatpush1.xpose.msra.mxu0 0.0
        %1581 = vmatprep.subr.mxu0 0.0
        %1582 = vmatpush1.xpose.msra.mxu0 0.0
        %1583 = vmatprep.subr.mxu0 0.0
        %1584 = vmatpush1.xpose.msra.mxu0 0.0
        %1585 = vmatprep.subr.mxu0 0.0
        %1586 = vmatpush1.xpose.msra.mxu0 0.0
        %1587 = vmatprep.subr.mxu0 0.0
        %1588 = vmatpush1.xpose.msra.mxu0 0.0
        %1589 = vmatprep.subr.mxu0 0.0
        %1590 = vmatpush1.xpose.msra.mxu0 0.0
        %1591 = vmatprep.subr.mxu0 0.0
        %1592 = vmatpush1.xpose.msra.mxu0 0.0
        %1593 = vmatprep.subr.mxu0 0.0
        %1594 = vmatpush1.xpose.msra.mxu0 0.0
        %1595 = vmatprep.subr.mxu0 0.0
        %1596 = vmatpush1.xpose.msra.mxu0 0.0
        %1597 = vmatprep.subr.mxu0 0.0
        %1598 = vmatpush1.xpose.msra.mxu0 0.0
        %1599 = vmatprep.subr.mxu0 0.0
        %1600 = vmatpush1.xpose.msra.mxu0 0.0
        %1601 = vmatprep.subr.mxu0 0.0
        %1602 = vmatpush1.xpose.msra.mxu0 0.0
        %1603 = vmatprep.subr.mxu0 0.0
        %1604 = vmatpush1.xpose.msra.mxu0 0.0
        %1605 = vmatprep.subr.mxu0 0.0
        %1606 = vmatpush1.xpose.msra.mxu0 0.0
        %1607 = vmatprep.mubr.f32.mxu0 0.0
        %1608 = vmatmul.mubr.f32.gmra.mrb[0].mxu0 %v1535
        %v1609 = vpop.f32.mrb[0].mxu0
        %v1610 = vadd.f32 %v1131, %v1609
        %v1611 = vpop.f32.mrb[0].mxu0
        %1612 = vmatprep.mubr.f32.mxu0 0.0
        %1613 = vmatmul.mubr.f32.gmra.mrb[0].mxu0 %v1537
        %v1614 = vpop.f32.mrb[0].mxu0
        %v1615 = vadd.f32 %v1131, %v1614
        %v1616 = vpop.f32.mrb[0].mxu0
        %1617 = vdwg.mxu0
        %v1618 = vsel %vm1221, %v1610, -inf
        %1619 = vmax.xlane.f32.xlu0 %v1618
        %v1620 = vpop.xlane.xlu0 %1619
        %v1621 = vsel %vm1221, %v1615, -inf
        %1622 = vmax.xlane.f32.xlu0 %v1621
        %v1623 = vpop.xlane.xlu0 %1622
        %v1624 = vsub.f32 %v1610, %v1620
        %v1625 = vsub.f32 %v1615, %v1623
        %v1626 = vmul.f32 %v1624, 1.442695
        %v1627 = vpow.pop %v1626
        %v1628 = vmul.f32 %v1625, 1.442695
        %v1629 = vpow.pop %v1628
        %v1630 = vsel %vm1221, %v1627, 0.0
        %1631 = vadd.xlane.f32.xlu0 %v1630
        %v1632 = vpop.xlane.xlu0 %1631
        %v1633 = vsel %vm1221, %v1629, 0.0
        %1634 = vadd.xlane.f32.xlu0 %v1633
        %v1635 = vpop.xlane.xlu0 %1634
        %v1636 = vrcp.pop %v1632
        %v1637 = vmul.f32 %v1627, %v1636
        %v1638 = vrcp.pop %v1635
        %v1639 = vmul.f32 %v1629, %v1638
        %1640 = vrot.lane.b32.xlu0 %v1119, 112
        %v1641 = vpop.permute.xlu0 %1640
        %1642 = vrot.lane.b32.xlu0 %v1124, 112
        %v1643 = vpop.permute.xlu0 %1642
        %v1647 = vsel %vm1221, %v1637, 0
        %v1650 = vsel %vm1221, %v1639, 0
        %1652 = vmatprep.subr.mxu0 0.0
        %1653 = vmatpush1.msra.mxu0 %v1641
        %1654 = vmatprep.subr.mxu0 0.0
        %1655 = vmatpush1.msra.mxu0 %v1643
        %1656 = vmatprep.subr.mxu0 0.0
        %1657 = vmatpush1.msra.mxu0 0.0
        %1658 = vmatprep.subr.mxu0 0.0
        %1659 = vmatpush1.msra.mxu0 0.0
        %1660 = vmatprep.subr.mxu0 0.0
        %1661 = vmatpush1.msra.mxu0 0.0
        %1662 = vmatprep.subr.mxu0 0.0
        %1663 = vmatpush1.msra.mxu0 0.0
        %1664 = vmatprep.subr.mxu0 0.0
        %1665 = vmatpush1.msra.mxu0 0.0
        %1666 = vmatprep.subr.mxu0 0.0
        %1667 = vmatpush1.msra.mxu0 0.0
        %1668 = vmatprep.subr.mxu0 0.0
        %1669 = vmatpush1.msra.mxu0 0.0
        %1670 = vmatprep.subr.mxu0 0.0
        %1671 = vmatpush1.msra.mxu0 0.0
        %1672 = vmatprep.subr.mxu0 0.0
        %1673 = vmatpush1.msra.mxu0 0.0
        %1674 = vmatprep.subr.mxu0 0.0
        %1675 = vmatpush1.msra.mxu0 0.0
        %1676 = vmatprep.subr.mxu0 0.0
        %1677 = vmatpush1.msra.mxu0 0.0
        %1678 = vmatprep.subr.mxu0 0.0
        %1679 = vmatpush1.msra.mxu0 0.0
        %1680 = vmatprep.subr.mxu0 0.0
        %1681 = vmatpush1.msra.mxu0 0.0
        %1682 = vmatprep.subr.mxu0 0.0
        %1683 = vmatpush1.msra.mxu0 0.0
        %1684 = vmatprep.subr.mxu0 0.0
        %1685 = vmatpush1.msra.mxu0 0.0
        %1686 = vmatprep.subr.mxu0 0.0
        %1687 = vmatpush1.msra.mxu0 0.0
        %1688 = vmatprep.subr.mxu0 0.0
        %1689 = vmatpush1.msra.mxu0 0.0
        %1690 = vmatprep.subr.mxu0 0.0
        %1691 = vmatpush1.msra.mxu0 0.0
        %1692 = vmatprep.subr.mxu0 0.0
        %1693 = vmatpush1.msra.mxu0 0.0
        %1694 = vmatprep.subr.mxu0 0.0
        %1695 = vmatpush1.msra.mxu0 0.0
        %1696 = vmatprep.subr.mxu0 0.0
        %1697 = vmatpush1.msra.mxu0 0.0
        %1698 = vmatprep.subr.mxu0 0.0
        %1699 = vmatpush1.msra.mxu0 0.0
        %1700 = vmatprep.subr.mxu0 0.0
        %1701 = vmatpush1.msra.mxu0 0.0
        %1702 = vmatprep.subr.mxu0 0.0
        %1703 = vmatpush1.msra.mxu0 0.0
        %1704 = vmatprep.subr.mxu0 0.0
        %1705 = vmatpush1.msra.mxu0 0.0
        %1706 = vmatprep.subr.mxu0 0.0
        %1707 = vmatpush1.msra.mxu0 0.0
        %1708 = vmatprep.subr.mxu0 0.0
        %1709 = vmatpush1.msra.mxu0 0.0
        %1710 = vmatprep.subr.mxu0 0.0
        %1711 = vmatpush1.msra.mxu0 0.0
        %1712 = vmatprep.subr.mxu0 0.0
        %1713 = vmatpush1.msra.mxu0 0.0
        %1714 = vmatprep.subr.mxu0 0.0
        %1715 = vmatpush1.msra.mxu0 0.0
        %1716 = vmatprep.mubr.f32.mxu0 0.0
        %1717 = vmatmul.mubr.f32.gmra.mrb[0].mxu0 %v1647
        %v1718 = vpop.f32.mrb[0].mxu0
        %v1719 = vadd.f32 0.0, %v1718
        %v1720 = vpop.f32.mrb[0].mxu0
        %1721 = vmatprep.mubr.f32.mxu0 0.0
        %1722 = vmatmul.mubr.f32.gmra.mrb[0].mxu0 %v1650
        %v1723 = vpop.f32.mrb[0].mxu0
        %v1724 = vadd.f32 0.0, %v1723
        %v1725 = vpop.f32.mrb[0].mxu0
        %1726 = vdwg.mxu0
        %1727 = vrot.lane.b32.xlu0 %v947, 104
        %v1728 = vpop.permute.xlu0 %1727
        %1729 = vrot.lane.b32.xlu0 %v952, 104
        %v1730 = vpop.permute.xlu0 %1729
        %1731 = vrot.lane.b32.xlu0 %v1033, 104
        %v1732 = vpop.permute.xlu0 %1731
        %1733 = vrot.lane.b32.xlu0 %v1038, 104
        %v1734 = vpop.permute.xlu0 %1733
        %v1735 = vsel %vm1133, %v1728, 0
        %v1737 = vsel %vm1133, %v1730, 0
        %v1739 = vsel %vm1133, %v1732, 0
        %v1741 = vsel %vm1133, %v1734, 0
        %1743 = vmatprep.subr.mxu0 0.0
        %1744 = vmatpush1.xpose.msra.mxu0 %v1739
        %1745 = vmatprep.subr.mxu0 0.0
        %1746 = vmatpush1.xpose.msra.mxu0 %v1741
        %1747 = vmatprep.subr.mxu0 0.0
        %1748 = vmatpush1.xpose.msra.mxu0 0.0
        %1749 = vmatprep.subr.mxu0 0.0
        %1750 = vmatpush1.xpose.msra.mxu0 0.0
        %1751 = vmatprep.subr.mxu0 0.0
        %1752 = vmatpush1.xpose.msra.mxu0 0.0
        %1753 = vmatprep.subr.mxu0 0.0
        %1754 = vmatpush1.xpose.msra.mxu0 0.0
        %1755 = vmatprep.subr.mxu0 0.0
        %1756 = vmatpush1.xpose.msra.mxu0 0.0
        %1757 = vmatprep.subr.mxu0 0.0
        %1758 = vmatpush1.xpose.msra.mxu0 0.0
        %1759 = vmatprep.subr.mxu0 0.0
        %1760 = vmatpush1.xpose.msra.mxu0 0.0
        %1761 = vmatprep.subr.mxu0 0.0
        %1762 = vmatpush1.xpose.msra.mxu0 0.0
        %1763 = vmatprep.subr.mxu0 0.0
        %1764 = vmatpush1.xpose.msra.mxu0 0.0
        %1765 = vmatprep.subr.mxu0 0.0
        %1766 = vmatpush1.xpose.msra.mxu0 0.0
        %1767 = vmatprep.subr.mxu0 0.0
        %1768 = vmatpush1.xpose.msra.mxu0 0.0
        %1769 = vmatprep.subr.mxu0 0.0
        %1770 = vmatpush1.xpose.msra.mxu0 0.0
        %1771 = vmatprep.subr.mxu0 0.0
        %1772 = vmatpush1.xpose.msra.mxu0 0.0
        %1773 = vmatprep.subr.mxu0 0.0
        %1774 = vmatpush1.xpose.msra.mxu0 0.0
        %1775 = vmatprep.subr.mxu0 0.0
        %1776 = vmatpush1.xpose.msra.mxu0 0.0
        %1777 = vmatprep.subr.mxu0 0.0
        %1778 = vmatpush1.xpose.msra.mxu0 0.0
        %1779 = vmatprep.subr.mxu0 0.0
        %1780 = vmatpush1.xpose.msra.mxu0 0.0
        %1781 = vmatprep.subr.mxu0 0.0
        %1782 = vmatpush1.xpose.msra.mxu0 0.0
        %1783 = vmatprep.subr.mxu0 0.0
        %1784 = vmatpush1.xpose.msra.mxu0 0.0
        %1785 = vmatprep.subr.mxu0 0.0
        %1786 = vmatpush1.xpose.msra.mxu0 0.0
        %1787 = vmatprep.subr.mxu0 0.0
        %1788 = vmatpush1.xpose.msra.mxu0 0.0
        %1789 = vmatprep.subr.mxu0 0.0
        %1790 = vmatpush1.xpose.msra.mxu0 0.0
        %1791 = vmatprep.subr.mxu0 0.0
        %1792 = vmatpush1.xpose.msra.mxu0 0.0
        %1793 = vmatprep.subr.mxu0 0.0
        %1794 = vmatpush1.xpose.msra.mxu0 0.0
        %1795 = vmatprep.subr.mxu0 0.0
        %1796 = vmatpush1.xpose.msra.mxu0 0.0
        %1797 = vmatprep.subr.mxu0 0.0
        %1798 = vmatpush1.xpose.msra.mxu0 0.0
        %1799 = vmatprep.subr.mxu0 0.0
        %1800 = vmatpush1.xpose.msra.mxu0 0.0
        %1801 = vmatprep.subr.mxu0 0.0
        %1802 = vmatpush1.xpose.msra.mxu0 0.0
        %1803 = vmatprep.subr.mxu0 0.0
        %1804 = vmatpush1.xpose.msra.mxu0 0.0
        %1805 = vmatprep.subr.mxu0 0.0
        %1806 = vmatpush1.xpose.msra.mxu0 0.0
        %1807 = vmatprep.mubr.f32.mxu0 0.0
        %1808 = vmatmul.mubr.f32.gmra.mrb[0].mxu0 %v1735
        %v1809 = vpop.f32.mrb[0].mxu0
        %v1810 = vadd.f32 %v1131, %v1809
        %v1811 = vpop.f32.mrb[0].mxu0
        %1812 = vmatprep.mubr.f32.mxu0 0.0
        %1813 = vmatmul.mubr.f32.gmra.mrb[0].mxu0 %v1737
        %v1814 = vpop.f32.mrb[0].mxu0
        %v1815 = vadd.f32 %v1131, %v1814
        %v1816 = vpop.f32.mrb[0].mxu0
        %1817 = vdwg.mxu0
        %v1818 = vsel %vm1221, %v1810, -inf
        %1819 = vmax.xlane.f32.xlu0 %v1818
        %v1820 = vpop.xlane.xlu0 %1819
        %v1821 = vsel %vm1221, %v1815, -inf
        %1822 = vmax.xlane.f32.xlu0 %v1821
        %v1823 = vpop.xlane.xlu0 %1822
        %v1824 = vsub.f32 %v1810, %v1820
        %v1825 = vsub.f32 %v1815, %v1823
        %v1826 = vmul.f32 %v1824, 1.442695
        %v1827 = vpow.pop %v1826
        %v1828 = vmul.f32 %v1825, 1.442695
        %v1829 = vpow.pop %v1828
        %v1830 = vsel %vm1221, %v1827, 0.0
        %1831 = vadd.xlane.f32.xlu0 %v1830
        %v1832 = vpop.xlane.xlu0 %1831
        %v1833 = vsel %vm1221, %v1829, 0.0
        %1834 = vadd.xlane.f32.xlu0 %v1833
        %v1835 = vpop.xlane.xlu0 %1834
        %v1836 = vrcp.pop %v1832
        %v1837 = vmul.f32 %v1827, %v1836
        %v1838 = vrcp.pop %v1835
        %v1839 = vmul.f32 %v1829, %v1838
        %1840 = vrot.lane.b32.xlu0 %v1119, 104
        %v1841 = vpop.permute.xlu0 %1840
        %1842 = vrot.lane.b32.xlu0 %v1124, 104
        %v1843 = vpop.permute.xlu0 %1842
        %v1847 = vsel %vm1221, %v1837, 0
        %v1850 = vsel %vm1221, %v1839, 0
        %1852 = vmatprep.subr.mxu0 0.0
        %1853 = vmatpush1.msra.mxu0 %v1841
        %1854 = vmatprep.subr.mxu0 0.0
        %1855 = vmatpush1.msra.mxu0 %v1843
        %1856 = vmatprep.subr.mxu0 0.0
        %1857 = vmatpush1.msra.mxu0 0.0
        %1858 = vmatprep.subr.mxu0 0.0
        %1859 = vmatpush1.msra.mxu0 0.0
        %1860 = vmatprep.subr.mxu0 0.0
        %1861 = vmatpush1.msra.mxu0 0.0
        %1862 = vmatprep.subr.mxu0 0.0
        %1863 = vmatpush1.msra.mxu0 0.0
        %1864 = vmatprep.subr.mxu0 0.0
        %1865 = vmatpush1.msra.mxu0 0.0
        %1866 = vmatprep.subr.mxu0 0.0
        %1867 = vmatpush1.msra.mxu0 0.0
        %1868 = vmatprep.subr.mxu0 0.0
        %1869 = vmatpush1.msra.mxu0 0.0
        %1870 = vmatprep.subr.mxu0 0.0
        %1871 = vmatpush1.msra.mxu0 0.0
        %1872 = vmatprep.subr.mxu0 0.0
        %1873 = vmatpush1.msra.mxu0 0.0
        %1874 = vmatprep.subr.mxu0 0.0
        %1875 = vmatpush1.msra.mxu0 0.0
        %1876 = vmatprep.subr.mxu0 0.0
        %1877 = vmatpush1.msra.mxu0 0.0
        %1878 = vmatprep.subr.mxu0 0.0
        %1879 = vmatpush1.msra.mxu0 0.0
        %1880 = vmatprep.subr.mxu0 0.0
        %1881 = vmatpush1.msra.mxu0 0.0
        %1882 = vmatprep.subr.mxu0 0.0
        %1883 = vmatpush1.msra.mxu0 0.0
        %1884 = vmatprep.subr.mxu0 0.0
        %1885 = vmatpush1.msra.mxu0 0.0
        %1886 = vmatprep.subr.mxu0 0.0
        %1887 = vmatpush1.msra.mxu0 0.0
        %1888 = vmatprep.subr.mxu0 0.0
        %1889 = vmatpush1.msra.mxu0 0.0
        %1890 = vmatprep.subr.mxu0 0.0
        %1891 = vmatpush1.msra.mxu0 0.0
        %1892 = vmatprep.subr.mxu0 0.0
        %1893 = vmatpush1.msra.mxu0 0.0
        %1894 = vmatprep.subr.mxu0 0.0
        %1895 = vmatpush1.msra.mxu0 0.0
        %1896 = vmatprep.subr.mxu0 0.0
        %1897 = vmatpush1.msra.mxu0 0.0
        %1898 = vmatprep.subr.mxu0 0.0
        %1899 = vmatpush1.msra.mxu0 0.0
        %1900 = vmatprep.subr.mxu0 0.0
        %1901 = vmatpush1.msra.mxu0 0.0
        %1902 = vmatprep.subr.mxu0 0.0
        %1903 = vmatpush1.msra.mxu0 0.0
        %1904 = vmatprep.subr.mxu0 0.0
        %1905 = vmatpush1.msra.mxu0 0.0
        %1906 = vmatprep.subr.mxu0 0.0
        %1907 = vmatpush1.msra.mxu0 0.0
        %1908 = vmatprep.subr.mxu0 0.0
        %1909 = vmatpush1.msra.mxu0 0.0
        %1910 = vmatprep.subr.mxu0 0.0
        %1911 = vmatpush1.msra.mxu0 0.0
        %1912 = vmatprep.subr.mxu0 0.0
        %1913 = vmatpush1.msra.mxu0 0.0
        %1914 = vmatprep.subr.mxu0 0.0
        %1915 = vmatpush1.msra.mxu0 0.0
        %1916 = vmatprep.mubr.f32.mxu0 0.0
        %1917 = vmatmul.mubr.f32.gmra.mrb[0].mxu0 %v1847
        %v1918 = vpop.f32.mrb[0].mxu0
        %v1919 = vadd.f32 0.0, %v1918
        %v1920 = vpop.f32.mrb[0].mxu0
        %1921 = vmatprep.mubr.f32.mxu0 0.0
        %1922 = vmatmul.mubr.f32.gmra.mrb[0].mxu0 %v1850
        %v1923 = vpop.f32.mrb[0].mxu0
        %v1924 = vadd.f32 0.0, %v1923
        %v1925 = vpop.f32.mrb[0].mxu0
        %1926 = vdwg.mxu0
        %1929 = vrot.lane.b32.xlu0 %v1519, 8
        %v1930 = vpop.permute.xlu0 %1929
        %1931 = vrot.lane.b32.xlu0 %v1524, 8
        %v1932 = vpop.permute.xlu0 %1931
        %1937 = vrot.lane.b32.xlu0 %v1719, 16
        %v1938 = vpop.permute.xlu0 %1937
        %1939 = vrot.lane.b32.xlu0 %v1724, 16
        %v1940 = vpop.permute.xlu0 %1939
        %1945 = vrot.lane.b32.xlu0 %v1919, 24
        %v1946 = vpop.permute.xlu0 %1945
        %1947 = vrot.lane.b32.xlu0 %v1924, 24
        %v1948 = vpop.permute.xlu0 %1947
        %v1951 = vsel %vm1133, %v1317, %v1930
        %v1952 = vsel %vm1133, %v1322, %v1932
        %v1953 = vsel %vm1221, %v1951, %v1938
        %v1954 = vsel %vm1221, %v1952, %v1940
        %vm1955 = vcmask 195584
        %v1956 = vsel %vm1955, %v1953, %v1946
        %v1957 = vsel %vm1955, %v1954, %v1948
        %v1958 = vld [vmem:[#allocation8] sm:$0xff]
        %v1959 = vld [vmem:[#allocation8 + $0x8] sm:$0xff]
        %v1960 = vld [vmem:[#allocation8 + $0x10] sm:$0xff]
        %v1961 = vld [vmem:[#allocation8 + $0x18] sm:$0xff]
        %v1963 = vsel %vm804, %v1956, 0
        %v1966 = vsel %vm804, %v1957, 0
        %1968 = vmatprep.subr.mxu0 0.0
        %1969 = vmatpush1.msra.mxu0 %v1958
        %1970 = vmatprep.subr.mxu0 0.0
        %1971 = vmatpush1.msra.mxu0 %v1959
        %1972 = vmatprep.subr.mxu0 0.0
        %1973 = vmatpush1.msra.mxu0 %v1960
        %1974 = vmatprep.subr.mxu0 0.0
        %1975 = vmatpush1.msra.mxu0 %v1961
        %1976 = vmatprep.subr.mxu0 0.0
        %1977 = vmatpush1.msra.mxu0 0.0
        %1978 = vmatprep.subr.mxu0 0.0
        %1979 = vmatpush1.msra.mxu0 0.0
        %1980 = vmatprep.subr.mxu0 0.0
        %1981 = vmatpush1.msra.mxu0 0.0
        %1982 = vmatprep.subr.mxu0 0.0
        %1983 = vmatpush1.msra.mxu0 0.0
        %1984 = vmatprep.subr.mxu0 0.0
        %1985 = vmatpush1.msra.mxu0 0.0
        %1986 = vmatprep.subr.mxu0 0.0
        %1987 = vmatpush1.msra.mxu0 0.0
        %1988 = vmatprep.subr.mxu0 0.0
        %1989 = vmatpush1.msra.mxu0 0.0
        %1990 = vmatprep.subr.mxu0 0.0
        %1991 = vmatpush1.msra.mxu0 0.0
        %1992 = vmatprep.subr.mxu0 0.0
        %1993 = vmatpush1.msra.mxu0 0.0
        %1994 = vmatprep.subr.mxu0 0.0
        %1995 = vmatpush1.msra.mxu0 0.0
        %1996 = vmatprep.subr.mxu0 0.0
        %1997 = vmatpush1.msra.mxu0 0.0
        %1998 = vmatprep.subr.mxu0 0.0
        %1999 = vmatpush1.msra.mxu0 0.0
        %2000 = vmatprep.subr.mxu0 0.0
        %2001 = vmatpush1.msra.mxu0 0.0
        %2002 = vmatprep.subr.mxu0 0.0
        %2003 = vmatpush1.msra.mxu0 0.0
        %2004 = vmatprep.subr.mxu0 0.0
        %2005 = vmatpush1.msra.mxu0 0.0
        %2006 = vmatprep.subr.mxu0 0.0
        %2007 = vmatpush1.msra.mxu0 0.0
        %2008 = vmatprep.subr.mxu0 0.0
        %2009 = vmatpush1.msra.mxu0 0.0
        %2010 = vmatprep.subr.mxu0 0.0
        %2011 = vmatpush1.msra.mxu0 0.0
        %2012 = vmatprep.subr.mxu0 0.0
        %2013 = vmatpush1.msra.mxu0 0.0
        %2014 = vmatprep.subr.mxu0 0.0
        %2015 = vmatpush1.msra.mxu0 0.0
        %2016 = vmatprep.subr.mxu0 0.0
        %2017 = vmatpush1.msra.mxu0 0.0
        %2018 = vmatprep.subr.mxu0 0.0
        %2019 = vmatpush1.msra.mxu0 0.0
        %2020 = vmatprep.subr.mxu0 0.0
        %2021 = vmatpush1.msra.mxu0 0.0
        %2022 = vmatprep.subr.mxu0 0.0
        %2023 = vmatpush1.msra.mxu0 0.0
        %2024 = vmatprep.subr.mxu0 0.0
        %2025 = vmatpush1.msra.mxu0 0.0
        %2026 = vmatprep.subr.mxu0 0.0
        %2027 = vmatpush1.msra.mxu0 0.0
        %2028 = vmatprep.subr.mxu0 0.0
        %2029 = vmatpush1.msra.mxu0 0.0
        %2030 = vmatprep.subr.mxu0 0.0
        %2031 = vmatpush1.msra.mxu0 0.0
        %2032 = vmatprep.mubr.f32.mxu0 0.0
        %2033 = vmatmul.mubr.f32.gmra.mrb[0].mxu0 %v1963
        %v2034 = vpop.f32.mrb[0].mxu0
        %v2035 = vadd.f32 0.0, %v2034
        %v2036 = vpop.f32.mrb[0].mxu0
        %2037 = vmatprep.mubr.f32.mxu0 0.0
        %2038 = vmatmul.mubr.f32.gmra.mrb[0].mxu0 %v1966
        %v2039 = vpop.f32.mrb[0].mxu0
        %v2040 = vadd.f32 0.0, %v2039
        %v2041 = vpop.f32.mrb[0].mxu0
        %2042 = vdwg.mxu0
        %v2043 = vadd.f32 %v797, %v2035
        %v2044 = vadd.f32 %v798, %v2040
        %v2045 = vld [vmem:[%s11] sm:$0x1]
        %v2047 = vlaneseq
        %v2048 = vshrl.u32 %v2047, 7
        %v2049 = vsub.s32 0, %v2048
        %v2050 = vrot.slane %v2045, %v2049
        %v2052 = vadd.f32 %v2043, %v2050
        %v2053 = vadd.f32 %v2044, %v2050
        %v2054 = vld [vmem:[%s18] sm:$0x1]
        %v2055 = vld [vmem:[%s19] sm:$0x1]
        %v2056 = vsel %vm804, %v2052, 0.0
        %2057 = vadd.xlane.f32.xlu0 %v2056
        %v2058 = vpop.xlane.xlu0 %2057
        %v2059 = vsel %vm804, %v2053, 0.0
        %2060 = vadd.xlane.f32.xlu0 %v2059
        %v2061 = vpop.xlane.xlu0 %2060
        %v2062 = vmul.f32 %v2058, %v811
        %v2063 = vmul.f32 %v2061, %v811
        %v2064 = vsub.f32 %v2052, %v2062
        %v2065 = vsub.f32 %v2053, %v2063
        %v2066 = vmul.f32 %v2064, %v2064
        %v2067 = vmul.f32 %v2065, %v2065
        %v2068 = vsel %vm804, %v2066, 0.0
        %2069 = vadd.xlane.f32.xlu0 %v2068
        %v2070 = vpop.xlane.xlu0 %2069
        %v2071 = vsel %vm804, %v2067, 0.0
        %2072 = vadd.xlane.f32.xlu0 %v2071
        %v2073 = vpop.xlane.xlu0 %2072
        %v2074 = vmul.f32 %v2070, %v824
        %v2075 = vmul.f32 %v2073, %v824
        %v2076 = vrsqrt.pop %v2074
        %v2077 = vmul.f32 %v2074, %v2076
        %vm2078 = vcmp.eq.f32.partialorder %v2074, inf
        %v2079 = vsel %vm2078, %v2074, %v2077
        %vm2080 = vcmp.eq.f32.partialorder %v2074, 0.0
        %v2081 = vand.u32 %v2074, 2147483648
        %v2082 = vsel %vm2080, %v2081, %v2079
        %v2083 = vrsqrt.pop %v2075
        %v2084 = vmul.f32 %v2075, %v2083
        %vm2085 = vcmp.eq.f32.partialorder %v2075, inf
        %v2086 = vsel %vm2085, %v2075, %v2084
        %vm2087 = vcmp.eq.f32.partialorder %v2075, 0.0
        %v2088 = vand.u32 %v2075, 2147483648
        %v2089 = vsel %vm2087, %v2088, %v2086
        %v2091 = vlaneseq
        %v2092 = vshrl.u32 %v2091, 7
        %v2093 = vsub.s32 0, %v2092
        %v2094 = vrot.slane %v2054, %v2093
        %v2096 = vmul.f32 %v2094, %v2064
        %v2097 = vmul.f32 %v2094, %v2065
        %v2098 = vadd.f32 %v2082, 1e-06
        %v2099 = vadd.f32 %v2089, 1e-06
        %v2100 = vrcp.pop %v2098
        %v2101 = vmul.f32 %v2096, %v2100
        %v2102 = vrcp.pop %v2099
        %v2103 = vmul.f32 %v2097, %v2102
        %v2105 = vlaneseq
        %v2106 = vshrl.u32 %v2105, 7
        %v2107 = vsub.s32 0, %v2106
        %v2108 = vrot.slane %v2055, %v2107
        %v2110 = vadd.f32 %v2101, %v2108
        %v2111 = vadd.f32 %v2103, %v2108
        %v2112 = vld [vmem:[#allocation10] sm:$0xff]
        %v2113 = vld [vmem:[#allocation10 + $0x8] sm:$0xff]
        %v2114 = vld [vmem:[#allocation10 + $0x10] sm:$0xff]
        %v2115 = vld [vmem:[#allocation10 + $0x18] sm:$0xff]
        %v2116 = vld [vmem:[%s15] sm:$0x1]
        %v2118 = vlaneseq
        %v2119 = vshrl.u32 %v2118, 7
        %v2120 = vsub.s32 0, %v2119
        %v2121 = vrot.slane %v2116, %v2120
        %v2124 = vsel %vm804, %v2110, 0
        %v2127 = vsel %vm804, %v2111, 0
        %2129 = vmatprep.subr.mxu0 0.0
        %2130 = vmatpush1.msra.mxu0 %v2112
        %2131 = vmatprep.subr.mxu0 0.0
        %2132 = vmatpush1.msra.mxu0 %v2113
        %2133 = vmatprep.subr.mxu0 0.0
        %2134 = vmatpush1.msra.mxu0 %v2114
        %2135 = vmatprep.subr.mxu0 0.0
        %2136 = vmatpush1.msra.mxu0 %v2115
        %2137 = vmatprep.subr.mxu0 0.0
        %2138 = vmatpush1.msra.mxu0 0.0
        %2139 = vmatprep.subr.mxu0 0.0
        %2140 = vmatpush1.msra.mxu0 0.0
        %2141 = vmatprep.subr.mxu0 0.0
        %2142 = vmatpush1.msra.mxu0 0.0
        %2143 = vmatprep.subr.mxu0 0.0
        %2144 = vmatpush1.msra.mxu0 0.0
        %2145 = vmatprep.subr.mxu0 0.0
        %2146 = vmatpush1.msra.mxu0 0.0
        %2147 = vmatprep.subr.mxu0 0.0
        %2148 = vmatpush1.msra.mxu0 0.0
        %2149 = vmatprep.subr.mxu0 0.0
        %2150 = vmatpush1.msra.mxu0 0.0
        %2151 = vmatprep.subr.mxu0 0.0
        %2152 = vmatpush1.msra.mxu0 0.0
        %2153 = vmatprep.subr.mxu0 0.0
        %2154 = vmatpush1.msra.mxu0 0.0
        %2155 = vmatprep.subr.mxu0 0.0
        %2156 = vmatpush1.msra.mxu0 0.0
        %2157 = vmatprep.subr.mxu0 0.0
        %2158 = vmatpush1.msra.mxu0 0.0
        %2159 = vmatprep.subr.mxu0 0.0
        %2160 = vmatpush1.msra.mxu0 0.0
        %2161 = vmatprep.subr.mxu0 0.0
        %2162 = vmatpush1.msra.mxu0 0.0
        %2163 = vmatprep.subr.mxu0 0.0
        %2164 = vmatpush1.msra.mxu0 0.0
        %2165 = vmatprep.subr.mxu0 0.0
        %2166 = vmatpush1.msra.mxu0 0.0
        %2167 = vmatprep.subr.mxu0 0.0
        %2168 = vmatpush1.msra.mxu0 0.0
        %2169 = vmatprep.subr.mxu0 0.0
        %2170 = vmatpush1.msra.mxu0 0.0
        %2171 = vmatprep.subr.mxu0 0.0
        %2172 = vmatpush1.msra.mxu0 0.0
        %2173 = vmatprep.subr.mxu0 0.0
        %2174 = vmatpush1.msra.mxu0 0.0
        %2175 = vmatprep.subr.mxu0 0.0
        %2176 = vmatpush1.msra.mxu0 0.0
        %2177 = vmatprep.subr.mxu0 0.0
        %2178 = vmatpush1.msra.mxu0 0.0
        %2179 = vmatprep.subr.mxu0 0.0
        %2180 = vmatpush1.msra.mxu0 0.0
        %2181 = vmatprep.subr.mxu0 0.0
        %2182 = vmatpush1.msra.mxu0 0.0
        %2183 = vmatprep.subr.mxu0 0.0
        %2184 = vmatpush1.msra.mxu0 0.0
        %2185 = vmatprep.subr.mxu0 0.0
        %2186 = vmatpush1.msra.mxu0 0.0
        %2187 = vmatprep.subr.mxu0 0.0
        %2188 = vmatpush1.msra.mxu0 0.0
        %2189 = vmatprep.subr.mxu0 0.0
        %2190 = vmatpush1.msra.mxu0 0.0
        %2191 = vmatprep.subr.mxu0 0.0
        %2192 = vmatpush1.msra.mxu0 0.0
        %2193 = vmatprep.mubr.f32.mxu0 0.0
        %2194 = vmatmul.mubr.f32.gmra.mrb[0].mxu0 %v2124
        %v2195 = vpop.f32.mrb[0].mxu0
        %v2196 = vadd.f32 %v2121, %v2195
        %v2197 = vpop.f32.mrb[0].mxu0
        %2198 = vmatprep.mubr.f32.mxu0 0.0
        %2199 = vmatmul.mubr.f32.gmra.mrb[0].mxu0 %v2127
        %v2200 = vpop.f32.mrb[0].mxu0
        %v2201 = vadd.f32 %v2121, %v2200
        %v2202 = vpop.f32.mrb[0].mxu0
        %2203 = vdwg.mxu0
        %v2204 = vmax.f32 %v2196, 0.0
        %v2205 = vmax.f32 %v2201, 0.0
        %v2206 = vld [vmem:[%s16] sm:$0xff]
        %v2207 = vld [vmem:[%s16 + $0x8] sm:$0xff]
        %v2208 = vld [vmem:[%s16 + $0x10] sm:$0xff]
        %v2209 = vld [vmem:[%s16 + $0x18] sm:$0xff]
        %v2210 = vld [vmem:[%s16 + $0x20] sm:$0xff]
        %v2211 = vld [vmem:[%s16 + $0x28] sm:$0xff]
        %v2212 = vld [vmem:[%s16 + $0x30] sm:$0xff]
        %v2213 = vld [vmem:[%s16 + $0x38] sm:$0xff]
        %vm2214 = vcmask 523264
        %v2216 = vsel %vm2214, %v2204, 0
        %v2219 = vsel %vm2214, %v2205, 0
        %2221 = vmatprep.subr.mxu0 0.0
        %2222 = vmatpush1.msra.mxu0 %v2206
        %2223 = vmatprep.subr.mxu0 0.0
        %2224 = vmatpush1.msra.mxu0 %v2207
        %2225 = vmatprep.subr.mxu0 0.0
        %2226 = vmatpush1.msra.mxu0 %v2208
        %2227 = vmatprep.subr.mxu0 0.0
        %2228 = vmatpush1.msra.mxu0 %v2209
        %2229 = vmatprep.subr.mxu0 0.0
        %2230 = vmatpush1.msra.mxu0 %v2210
        %2231 = vmatprep.subr.mxu0 0.0
        %2232 = vmatpush1.msra.mxu0 %v2211
        %2233 = vmatprep.subr.mxu0 0.0
        %2234 = vmatpush1.msra.mxu0 %v2212
        %2235 = vmatprep.subr.mxu0 0.0
        %2236 = vmatpush1.msra.mxu0 %v2213
        %2237 = vmatprep.subr.mxu0 0.0
        %2238 = vmatpush1.msra.mxu0 0.0
        %2239 = vmatprep.subr.mxu0 0.0
        %2240 = vmatpush1.msra.mxu0 0.0
        %2241 = vmatprep.subr.mxu0 0.0
        %2242 = vmatpush1.msra.mxu0 0.0
        %2243 = vmatprep.subr.mxu0 0.0
        %2244 = vmatpush1.msra.mxu0 0.0
        %2245 = vmatprep.subr.mxu0 0.0
        %2246 = vmatpush1.msra.mxu0 0.0
        %2247 = vmatprep.subr.mxu0 0.0
        %2248 = vmatpush1.msra.mxu0 0.0
        %2249 = vmatprep.subr.mxu0 0.0
        %2250 = vmatpush1.msra.mxu0 0.0
        %2251 = vmatprep.subr.mxu0 0.0
        %2252 = vmatpush1.msra.mxu0 0.0
        %2253 = vmatprep.subr.mxu0 0.0
        %2254 = vmatpush1.msra.mxu0 0.0
        %2255 = vmatprep.subr.mxu0 0.0
        %2256 = vmatpush1.msra.mxu0 0.0
        %2257 = vmatprep.subr.mxu0 0.0
        %2258 = vmatpush1.msra.mxu0 0.0
        %2259 = vmatprep.subr.mxu0 0.0
        %2260 = vmatpush1.msra.mxu0 0.0
        %2261 = vmatprep.subr.mxu0 0.0
        %2262 = vmatpush1.msra.mxu0 0.0
        %2263 = vmatprep.subr.mxu0 0.0
        %2264 = vmatpush1.msra.mxu0 0.0
        %2265 = vmatprep.subr.mxu0 0.0
        %2266 = vmatpush1.msra.mxu0 0.0
        %2267 = vmatprep.subr.mxu0 0.0
        %2268 = vmatpush1.msra.mxu0 0.0
        %2269 = vmatprep.subr.mxu0 0.0
        %2270 = vmatpush1.msra.mxu0 0.0
        %2271 = vmatprep.subr.mxu0 0.0
        %2272 = vmatpush1.msra.mxu0 0.0
        %2273 = vmatprep.subr.mxu0 0.0
        %2274 = vmatpush1.msra.mxu0 0.0
        %2275 = vmatprep.subr.mxu0 0.0
        %2276 = vmatpush1.msra.mxu0 0.0
        %2277 = vmatprep.subr.mxu0 0.0
        %2278 = vmatpush1.msra.mxu0 0.0
        %2279 = vmatprep.subr.mxu0 0.0
        %2280 = vmatpush1.msra.mxu0 0.0
        %2281 = vmatprep.subr.mxu0 0.0
        %2282 = vmatpush1.msra.mxu0 0.0
        %2283 = vmatprep.subr.mxu0 0.0
        %2284 = vmatpush1.msra.mxu0 0.0
        %2285 = vmatprep.mubr.f32.mxu0 0.0
        %2286 = vmatmul.mubr.f32.gmra.mrb[0].mxu0 %v2216
        %v2287 = vpop.f32.mrb[0].mxu0
        %v2288 = vadd.f32 0.0, %v2287
        %v2289 = vpop.f32.mrb[0].mxu0
        %2290 = vmatprep.mubr.f32.mxu0 0.0
        %2291 = vmatmul.mubr.f32.gmra.mrb[0].mxu0 %v2219
        %v2292 = vpop.f32.mrb[0].mxu0
        %v2293 = vadd.f32 0.0, %v2292
        %v2294 = vpop.f32.mrb[0].mxu0
        %2295 = vdwg.mxu0
        %v2296 = vadd.f32 %v2052, %v2288
        %v2297 = vadd.f32 %v2053, %v2293
        %v2298 = vld [vmem:[%s17] sm:$0x1]
        %v2300 = vlaneseq
        %v2301 = vshrl.u32 %v2300, 7
        %v2302 = vsub.s32 0, %v2301
        %v2303 = vrot.slane %v2298, %v2302
        %v2305 = vadd.f32 %v2296, %v2303
        %v2306 = vadd.f32 %v2297, %v2303
        %s2307 = scalar_lea.vmem %s12, 1
        %v2308 = vld [vmem:[%s2307] sm:$0x1]
        %s2309 = scalar_lea.vmem %s13, 1
        %v2310 = vld [vmem:[%s2309] sm:$0x1]
        %v2311 = vsel %vm804, %v2305, 0.0
        %2312 = vadd.xlane.f32.xlu0 %v2311
        %v2313 = vpop.xlane.xlu0 %2312
        %v2314 = vsel %vm804, %v2306, 0.0
        %2315 = vadd.xlane.f32.xlu0 %v2314
        %v2316 = vpop.xlane.xlu0 %2315
        %v2317 = vmul.f32 %v2313, %v811
        %v2318 = vmul.f32 %v2316, %v811
        %v2319 = vsub.f32 %v2305, %v2317
        %v2320 = vsub.f32 %v2306, %v2318
        %v2321 = vmul.f32 %v2319, %v2319
        %v2322 = vmul.f32 %v2320, %v2320
        %v2323 = vsel %vm804, %v2321, 0.0
        %2324 = vadd.xlane.f32.xlu0 %v2323
        %v2325 = vpop.xlane.xlu0 %2324
        %v2326 = vsel %vm804, %v2322, 0.0
        %2327 = vadd.xlane.f32.xlu0 %v2326
        %v2328 = vpop.xlane.xlu0 %2327
        %v2329 = vmul.f32 %v2325, %v824
        %v2330 = vmul.f32 %v2328, %v824
        %v2331 = vrsqrt.pop %v2329
        %v2332 = vmul.f32 %v2329, %v2331
        %vm2333 = vcmp.eq.f32.partialorder %v2329, inf
        %v2334 = vsel %vm2333, %v2329, %v2332
        %vm2335 = vcmp.eq.f32.partialorder %v2329, 0.0
        %v2336 = vand.u32 %v2329, 2147483648
        %v2337 = vsel %vm2335, %v2336, %v2334
        %v2338 = vrsqrt.pop %v2330
        %v2339 = vmul.f32 %v2330, %v2338
        %vm2340 = vcmp.eq.f32.partialorder %v2330, inf
        %v2341 = vsel %vm2340, %v2330, %v2339
        %vm2342 = vcmp.eq.f32.partialorder %v2330, 0.0
        %v2343 = vand.u32 %v2330, 2147483648
        %v2344 = vsel %vm2342, %v2343, %v2341
        %v2346 = vlaneseq
        %v2347 = vshrl.u32 %v2346, 7
        %v2348 = vsub.s32 0, %v2347
        %v2349 = vrot.slane %v2308, %v2348
        %v2351 = vmul.f32 %v2349, %v2319
        %v2352 = vmul.f32 %v2349, %v2320
        %v2353 = vadd.f32 %v2337, 1e-06
        %v2354 = vadd.f32 %v2344, 1e-06
        %v2355 = vrcp.pop %v2353
        %v2356 = vmul.f32 %v2351, %v2355
        %v2357 = vrcp.pop %v2354
        %v2358 = vmul.f32 %v2352, %v2357
        %v2360 = vlaneseq
        %v2361 = vshrl.u32 %v2360, 7
        %v2362 = vsub.s32 0, %v2361
        %v2363 = vrot.slane %v2310, %v2362
        %v2365 = vadd.f32 %v2356, %v2363
        %v2366 = vadd.f32 %v2358, %v2363
        %s2367 = scalar_lea.vmem %s4, 32
        %v2368 = vld [vmem:[%s2367] sm:$0xff]
        %v2369 = vld [vmem:[%s2367 + $0x8] sm:$0xff]
        %v2370 = vld [vmem:[%s2367 + $0x10] sm:$0xff]
        %v2371 = vld [vmem:[%s2367 + $0x18] sm:$0xff]
        %s2372 = scalar_lea.vmem %s5, 1
        %v2373 = vld [vmem:[%s2372] sm:$0x1]
        %v2375 = vlaneseq
        %v2376 = vshrl.u32 %v2375, 7
        %v2377 = vsub.s32 0, %v2376
        %v2378 = vrot.slane %v2373, %v2377
        %v2381 = vsel %vm804, %v2365, 0
        %v2384 = vsel %vm804, %v2366, 0
        %2386 = vmatprep.subr.mxu0 0.0
        %2387 = vmatpush1.msra.mxu0 %v2368
        %2388 = vmatprep.subr.mxu0 0.0
        %2389 = vmatpush1.msra.mxu0 %v2369
        %2390 = vmatprep.subr.mxu0 0.0
        %2391 = vmatpush1.msra.mxu0 %v2370
        %2392 = vmatprep.subr.mxu0 0.0
        %2393 = vmatpush1.msra.mxu0 %v2371
        %2394 = vmatprep.subr.mxu0 0.0
        %2395 = vmatpush1.msra.mxu0 0.0
        %2396 = vmatprep.subr.mxu0 0.0
        %2397 = vmatpush1.msra.mxu0 0.0
        %2398 = vmatprep.subr.mxu0 0.0
        %2399 = vmatpush1.msra.mxu0 0.0
        %2400 = vmatprep.subr.mxu0 0.0
        %2401 = vmatpush1.msra.mxu0 0.0
        %2402 = vmatprep.subr.mxu0 0.0
        %2403 = vmatpush1.msra.mxu0 0.0
        %2404 = vmatprep.subr.mxu0 0.0
        %2405 = vmatpush1.msra.mxu0 0.0
        %2406 = vmatprep.subr.mxu0 0.0
        %2407 = vmatpush1.msra.mxu0 0.0
        %2408 = vmatprep.subr.mxu0 0.0
        %2409 = vmatpush1.msra.mxu0 0.0
        %2410 = vmatprep.subr.mxu0 0.0
        %2411 = vmatpush1.msra.mxu0 0.0
        %2412 = vmatprep.subr.mxu0 0.0
        %2413 = vmatpush1.msra.mxu0 0.0
        %2414 = vmatprep.subr.mxu0 0.0
        %2415 = vmatpush1.msra.mxu0 0.0
        %2416 = vmatprep.subr.mxu0 0.0
        %2417 = vmatpush1.msra.mxu0 0.0
        %2418 = vmatprep.subr.mxu0 0.0
        %2419 = vmatpush1.msra.mxu0 0.0
        %2420 = vmatprep.subr.mxu0 0.0
        %2421 = vmatpush1.msra.mxu0 0.0
        %2422 = vmatprep.subr.mxu0 0.0
        %2423 = vmatpush1.msra.mxu0 0.0
        %2424 = vmatprep.subr.mxu0 0.0
        %2425 = vmatpush1.msra.mxu0 0.0
        %2426 = vmatprep.subr.mxu0 0.0
        %2427 = vmatpush1.msra.mxu0 0.0
        %2428 = vmatprep.subr.mxu0 0.0
        %2429 = vmatpush1.msra.mxu0 0.0
        %2430 = vmatprep.subr.mxu0 0.0
        %2431 = vmatpush1.msra.mxu0 0.0
        %2432 = vmatprep.subr.mxu0 0.0
        %2433 = vmatpush1.msra.mxu0 0.0
        %2434 = vmatprep.subr.mxu0 0.0
        %2435 = vmatpush1.msra.mxu0 0.0
        %2436 = vmatprep.subr.mxu0 0.0
        %2437 = vmatpush1.msra.mxu0 0.0
        %2438 = vmatprep.subr.mxu0 0.0
        %2439 = vmatpush1.msra.mxu0 0.0
        %2440 = vmatprep.subr.mxu0 0.0
        %2441 = vmatpush1.msra.mxu0 0.0
        %2442 = vmatprep.subr.mxu0 0.0
        %2443 = vmatpush1.msra.mxu0 0.0
        %2444 = vmatprep.subr.mxu0 0.0
        %2445 = vmatpush1.msra.mxu0 0.0
        %2446 = vmatprep.subr.mxu0 0.0
        %2447 = vmatpush1.msra.mxu0 0.0
        %2448 = vmatprep.subr.mxu0 0.0
        %2449 = vmatpush1.msra.mxu0 0.0
        %2450 = vmatprep.mubr.f32.mxu0 0.0
        %2451 = vmatmul.mubr.f32.gmra.mrb[0].mxu0 %v2381
        %v2452 = vpop.f32.mrb[0].mxu0
        %v2453 = vadd.f32 %v2378, %v2452
        %v2454 = vpop.f32.mrb[0].mxu0
        %2455 = vmatprep.mubr.f32.mxu0 0.0
        %2456 = vmatmul.mubr.f32.gmra.mrb[0].mxu0 %v2384
        %v2457 = vpop.f32.mrb[0].mxu0
        %v2458 = vadd.f32 %v2378, %v2457
        %v2459 = vpop.f32.mrb[0].mxu0
        %2460 = vdwg.mxu0
        %s2461 = scalar_lea.vmem %s6, 32
        %v2462 = vld [vmem:[%s2461] sm:$0xff]
        %v2463 = vld [vmem:[%s2461 + $0x8] sm:$0xff]
        %v2464 = vld [vmem:[%s2461 + $0x10] sm:$0xff]
        %v2465 = vld [vmem:[%s2461 + $0x18] sm:$0xff]
        %s2466 = scalar_lea.vmem %s7, 1
        %v2467 = vld [vmem:[%s2466] sm:$0x1]
        %v2469 = vlaneseq
        %v2470 = vshrl.u32 %v2469, 7
        %v2471 = vsub.s32 0, %v2470
        %v2472 = vrot.slane %v2467, %v2471
        %2474 = vmatprep.subr.mxu0 0.0
        %2475 = vmatpush1.msra.mxu0 %v2462
        %2476 = vmatprep.subr.mxu0 0.0
        %2477 = vmatpush1.msra.mxu0 %v2463
        %2478 = vmatprep.subr.mxu0 0.0
        %2479 = vmatpush1.msra.mxu0 %v2464
        %2480 = vmatprep.subr.mxu0 0.0
        %2481 = vmatpush1.msra.mxu0 %v2465
        %2482 = vmatprep.subr.mxu0 0.0
        %2483 = vmatpush1.msra.mxu0 0.0
        %2484 = vmatprep.subr.mxu0 0.0
        %2485 = vmatpush1.msra.mxu0 0.0
        %2486 = vmatprep.subr.mxu0 0.0
        %2487 = vmatpush1.msra.mxu0 0.0
        %2488 = vmatprep.subr.mxu0 0.0
        %2489 = vmatpush1.msra.mxu0 0.0
        %2490 = vmatprep.subr.mxu0 0.0
        %2491 = vmatpush1.msra.mxu0 0.0
        %2492 = vmatprep.subr.mxu0 0.0
        %2493 = vmatpush1.msra.mxu0 0.0
        %2494 = vmatprep.subr.mxu0 0.0
        %2495 = vmatpush1.msra.mxu0 0.0
        %2496 = vmatprep.subr.mxu0 0.0
        %2497 = vmatpush1.msra.mxu0 0.0
        %2498 = vmatprep.subr.mxu0 0.0
        %2499 = vmatpush1.msra.mxu0 0.0
        %2500 = vmatprep.subr.mxu0 0.0
        %2501 = vmatpush1.msra.mxu0 0.0
        %2502 = vmatprep.subr.mxu0 0.0
        %2503 = vmatpush1.msra.mxu0 0.0
        %2504 = vmatprep.subr.mxu0 0.0
        %2505 = vmatpush1.msra.mxu0 0.0
        %2506 = vmatprep.subr.mxu0 0.0
        %2507 = vmatpush1.msra.mxu0 0.0
        %2508 = vmatprep.subr.mxu0 0.0
        %2509 = vmatpush1.msra.mxu0 0.0
        %2510 = vmatprep.subr.mxu0 0.0
        %2511 = vmatpush1.msra.mxu0 0.0
        %2512 = vmatprep.subr.mxu0 0.0
        %2513 = vmatpush1.msra.mxu0 0.0
        %2514 = vmatprep.subr.mxu0 0.0
        %2515 = vmatpush1.msra.mxu0 0.0
        %2516 = vmatprep.subr.mxu0 0.0
        %2517 = vmatpush1.msra.mxu0 0.0
        %2518 = vmatprep.subr.mxu0 0.0
        %2519 = vmatpush1.msra.mxu0 0.0
        %2520 = vmatprep.subr.mxu0 0.0
        %2521 = vmatpush1.msra.mxu0 0.0
        %2522 = vmatprep.subr.mxu0 0.0
        %2523 = vmatpush1.msra.mxu0 0.0
        %2524 = vmatprep.subr.mxu0 0.0
        %2525 = vmatpush1.msra.mxu0 0.0
        %2526 = vmatprep.subr.mxu0 0.0
        %2527 = vmatpush1.msra.mxu0 0.0
        %2528 = vmatprep.subr.mxu0 0.0
        %2529 = vmatpush1.msra.mxu0 0.0
        %2530 = vmatprep.subr.mxu0 0.0
        %2531 = vmatpush1.msra.mxu0 0.0
        %2532 = vmatprep.subr.mxu0 0.0
        %2533 = vmatpush1.msra.mxu0 0.0
        %2534 = vmatprep.subr.mxu0 0.0
        %2535 = vmatpush1.msra.mxu0 0.0
        %2536 = vmatprep.subr.mxu0 0.0
        %2537 = vmatpush1.msra.mxu0 0.0
        %2538 = vmatprep.mubr.f32.mxu0 0.0
        %2539 = vmatmul.mubr.f32.gmra.mrb[0].mxu0 %v2381
        %v2540 = vpop.f32.mrb[0].mxu0
        %v2541 = vadd.f32 %v2472, %v2540
        %v2542 = vpop.f32.mrb[0].mxu0
        %2543 = vmatprep.mubr.f32.mxu0 0.0
        %2544 = vmatmul.mubr.f32.gmra.mrb[0].mxu0 %v2384
        %v2545 = vpop.f32.mrb[0].mxu0
        %v2546 = vadd.f32 %v2472, %v2545
        %v2547 = vpop.f32.mrb[0].mxu0
        %2548 = vdwg.mxu0
        %s2549 = scalar_lea.vmem %s8, 32
        %v2550 = vld [vmem:[%s2549] sm:$0xff]
        %v2551 = vld [vmem:[%s2549 + $0x8] sm:$0xff]
        %v2552 = vld [vmem:[%s2549 + $0x10] sm:$0xff]
        %v2553 = vld [vmem:[%s2549 + $0x18] sm:$0xff]
        %s2554 = scalar_lea.vmem %s9, 1
        %v2555 = vld [vmem:[%s2554] sm:$0x1]
        %v2557 = vlaneseq
        %v2558 = vshrl.u32 %v2557, 7
        %v2559 = vsub.s32 0, %v2558
        %v2560 = vrot.slane %v2555, %v2559
        %2562 = vmatprep.subr.mxu0 0.0
        %2563 = vmatpush1.msra.mxu0 %v2550
        %2564 = vmatprep.subr.mxu0 0.0
        %2565 = vmatpush1.msra.mxu0 %v2551
        %2566 = vmatprep.subr.mxu0 0.0
        %2567 = vmatpush1.msra.mxu0 %v2552
        %2568 = vmatprep.subr.mxu0 0.0
        %2569 = vmatpush1.msra.mxu0 %v2553
        %2570 = vmatprep.subr.mxu0 0.0
        %2571 = vmatpush1.msra.mxu0 0.0
        %2572 = vmatprep.subr.mxu0 0.0
        %2573 = vmatpush1.msra.mxu0 0.0
        %2574 = vmatprep.subr.mxu0 0.0
        %2575 = vmatpush1.msra.mxu0 0.0
        %2576 = vmatprep.subr.mxu0 0.0
        %2577 = vmatpush1.msra.mxu0 0.0
        %2578 = vmatprep.subr.mxu0 0.0
        %2579 = vmatpush1.msra.mxu0 0.0
        %2580 = vmatprep.subr.mxu0 0.0
        %2581 = vmatpush1.msra.mxu0 0.0
        %2582 = vmatprep.subr.mxu0 0.0
        %2583 = vmatpush1.msra.mxu0 0.0
        %2584 = vmatprep.subr.mxu0 0.0
        %2585 = vmatpush1.msra.mxu0 0.0
        %2586 = vmatprep.subr.mxu0 0.0
        %2587 = vmatpush1.msra.mxu0 0.0
        %2588 = vmatprep.subr.mxu0 0.0
        %2589 = vmatpush1.msra.mxu0 0.0
        %2590 = vmatprep.subr.mxu0 0.0
        %2591 = vmatpush1.msra.mxu0 0.0
        %2592 = vmatprep.subr.mxu0 0.0
        %2593 = vmatpush1.msra.mxu0 0.0
        %2594 = vmatprep.subr.mxu0 0.0
        %2595 = vmatpush1.msra.mxu0 0.0
        %2596 = vmatprep.subr.mxu0 0.0
        %2597 = vmatpush1.msra.mxu0 0.0
        %2598 = vmatprep.subr.mxu0 0.0
        %2599 = vmatpush1.msra.mxu0 0.0
        %2600 = vmatprep.subr.mxu0 0.0
        %2601 = vmatpush1.msra.mxu0 0.0
        %2602 = vmatprep.subr.mxu0 0.0
        %2603 = vmatpush1.msra.mxu0 0.0
        %2604 = vmatprep.subr.mxu0 0.0
        %2605 = vmatpush1.msra.mxu0 0.0
        %2606 = vmatprep.subr.mxu0 0.0
        %2607 = vmatpush1.msra.mxu0 0.0
        %2608 = vmatprep.subr.mxu0 0.0
        %2609 = vmatpush1.msra.mxu0 0.0
        %2610 = vmatprep.subr.mxu0 0.0
        %2611 = vmatpush1.msra.mxu0 0.0
        %2612 = vmatprep.subr.mxu0 0.0
        %2613 = vmatpush1.msra.mxu0 0.0
        %2614 = vmatprep.subr.mxu0 0.0
        %2615 = vmatpush1.msra.mxu0 0.0
        %2616 = vmatprep.subr.mxu0 0.0
        %2617 = vmatpush1.msra.mxu0 0.0
        %2618 = vmatprep.subr.mxu0 0.0
        %2619 = vmatpush1.msra.mxu0 0.0
        %2620 = vmatprep.subr.mxu0 0.0
        %2621 = vmatpush1.msra.mxu0 0.0
        %2622 = vmatprep.subr.mxu0 0.0
        %2623 = vmatpush1.msra.mxu0 0.0
        %2624 = vmatprep.subr.mxu0 0.0
        %2625 = vmatpush1.msra.mxu0 0.0
        %2626 = vmatprep.mubr.f32.mxu0 0.0
        %2627 = vmatmul.mubr.f32.gmra.mrb[0].mxu0 %v2381
        %v2628 = vpop.f32.mrb[0].mxu0
        %v2629 = vadd.f32 %v2560, %v2628
        %v2630 = vpop.f32.mrb[0].mxu0
        %2631 = vmatprep.mubr.f32.mxu0 0.0
        %2632 = vmatmul.mubr.f32.gmra.mrb[0].mxu0 %v2384
        %v2633 = vpop.f32.mrb[0].mxu0
        %v2634 = vadd.f32 %v2560, %v2633
        %v2635 = vpop.f32.mrb[0].mxu0
        %2636 = vdwg.mxu0
        %v2638 = vsel %vm1133, %v2453, 0
        %v2641 = vsel %vm1133, %v2458, 0
        %v2644 = vsel %vm1133, %v2541, 0
        %v2647 = vsel %vm1133, %v2546, 0
        %2649 = vmatprep.subr.mxu0 0.0
        %2650 = vmatpush1.xpose.msra.mxu0 %v2644
        %2651 = vmatprep.subr.mxu0 0.0
        %2652 = vmatpush1.xpose.msra.mxu0 %v2647
        %2653 = vmatprep.subr.mxu0 0.0
        %2654 = vmatpush1.xpose.msra.mxu0 0.0
        %2655 = vmatprep.subr.mxu0 0.0
        %2656 = vmatpush1.xpose.msra.mxu0 0.0
        %2657 = vmatprep.subr.mxu0 0.0
        %2658 = vmatpush1.xpose.msra.mxu0 0.0
        %2659 = vmatprep.subr.mxu0 0.0
        %2660 = vmatpush1.xpose.msra.mxu0 0.0
        %2661 = vmatprep.subr.mxu0 0.0
        %2662 = vmatpush1.xpose.msra.mxu0 0.0
        %2663 = vmatprep.subr.mxu0 0.0
        %2664 = vmatpush1.xpose.msra.mxu0 0.0
        %2665 = vmatprep.subr.mxu0 0.0
        %2666 = vmatpush1.xpose.msra.mxu0 0.0
        %2667 = vmatprep.subr.mxu0 0.0
        %2668 = vmatpush1.xpose.msra.mxu0 0.0
        %2669 = vmatprep.subr.mxu0 0.0
        %2670 = vmatpush1.xpose.msra.mxu0 0.0
        %2671 = vmatprep.subr.mxu0 0.0
        %2672 = vmatpush1.xpose.msra.mxu0 0.0
        %2673 = vmatprep.subr.mxu0 0.0
        %2674 = vmatpush1.xpose.msra.mxu0 0.0
        %2675 = vmatprep.subr.mxu0 0.0
        %2676 = vmatpush1.xpose.msra.mxu0 0.0
        %2677 = vmatprep.subr.mxu0 0.0
        %2678 = vmatpush1.xpose.msra.mxu0 0.0
        %2679 = vmatprep.subr.mxu0 0.0
        %2680 = vmatpush1.xpose.msra.mxu0 0.0
        %2681 = vmatprep.subr.mxu0 0.0
        %2682 = vmatpush1.xpose.msra.mxu0 0.0
        %2683 = vmatprep.subr.mxu0 0.0
        %2684 = vmatpush1.xpose.msra.mxu0 0.0
        %2685 = vmatprep.subr.mxu0 0.0
        %2686 = vmatpush1.xpose.msra.mxu0 0.0
        %2687 = vmatprep.subr.mxu0 0.0
        %2688 = vmatpush1.xpose.msra.mxu0 0.0
        %2689 = vmatprep.subr.mxu0 0.0
        %2690 = vmatpush1.xpose.msra.mxu0 0.0
        %2691 = vmatprep.subr.mxu0 0.0
        %2692 = vmatpush1.xpose.msra.mxu0 0.0
        %2693 = vmatprep.subr.mxu0 0.0
        %2694 = vmatpush1.xpose.msra.mxu0 0.0
        %2695 = vmatprep.subr.mxu0 0.0
        %2696 = vmatpush1.xpose.msra.mxu0 0.0
        %2697 = vmatprep.subr.mxu0 0.0
        %2698 = vmatpush1.xpose.msra.mxu0 0.0
        %2699 = vmatprep.subr.mxu0 0.0
        %2700 = vmatpush1.xpose.msra.mxu0 0.0
        %2701 = vmatprep.subr.mxu0 0.0
        %2702 = vmatpush1.xpose.msra.mxu0 0.0
        %2703 = vmatprep.subr.mxu0 0.0
        %2704 = vmatpush1.xpose.msra.mxu0 0.0
        %2705 = vmatprep.subr.mxu0 0.0
        %2706 = vmatpush1.xpose.msra.mxu0 0.0
        %2707 = vmatprep.subr.mxu0 0.0
        %2708 = vmatpush1.xpose.msra.mxu0 0.0
        %2709 = vmatprep.subr.mxu0 0.0
        %2710 = vmatpush1.xpose.msra.mxu0 0.0
        %2711 = vmatprep.subr.mxu0 0.0
        %2712 = vmatpush1.xpose.msra.mxu0 0.0
        %2713 = vmatprep.mubr.f32.mxu0 0.0
        %2714 = vmatmul.mubr.f32.gmra.mrb[0].mxu0 %v2638
        %v2715 = vpop.f32.mrb[0].mxu0
        %v2716 = vadd.f32 %v1131, %v2715
        %v2717 = vpop.f32.mrb[0].mxu0
        %2718 = vmatprep.mubr.f32.mxu0 0.0
        %2719 = vmatmul.mubr.f32.gmra.mrb[0].mxu0 %v2641
        %v2720 = vpop.f32.mrb[0].mxu0
        %v2721 = vadd.f32 %v1131, %v2720
        %v2722 = vpop.f32.mrb[0].mxu0
        %2723 = vdwg.mxu0
        %v2724 = vsel %vm1221, %v2716, -inf
        %2725 = vmax.xlane.f32.xlu0 %v2724
        %v2726 = vpop.xlane.xlu0 %2725
        %v2727 = vsel %vm1221, %v2721, -inf
        %2728 = vmax.xlane.f32.xlu0 %v2727
        %v2729 = vpop.xlane.xlu0 %2728
        %v2730 = vsub.f32 %v2716, %v2726
        %v2731 = vsub.f32 %v2721, %v2729
        %v2732 = vmul.f32 %v2730, 1.442695
        %v2733 = vpow.pop %v2732
        %v2734 = vmul.f32 %v2731, 1.442695
        %v2735 = vpow.pop %v2734
        %v2736 = vsel %vm1221, %v2733, 0.0
        %2737 = vadd.xlane.f32.xlu0 %v2736
        %v2738 = vpop.xlane.xlu0 %2737
        %v2739 = vsel %vm1221, %v2735, 0.0
        %2740 = vadd.xlane.f32.xlu0 %v2739
        %v2741 = vpop.xlane.xlu0 %2740
        %v2742 = vrcp.pop %v2738
        %v2743 = vmul.f32 %v2733, %v2742
        %v2744 = vrcp.pop %v2741
        %v2745 = vmul.f32 %v2735, %v2744
        %v2747 = vsel %vm1221, %v2743, 0
        %v2750 = vsel %vm1221, %v2745, 0
        %2752 = vmatprep.subr.mxu0 0.0
        %2753 = vmatpush1.msra.mxu0 %v2629
        %2754 = vmatprep.subr.mxu0 0.0
        %2755 = vmatpush1.msra.mxu0 %v2634
        %2756 = vmatprep.subr.mxu0 0.0
        %2757 = vmatpush1.msra.mxu0 0.0
        %2758 = vmatprep.subr.mxu0 0.0
        %2759 = vmatpush1.msra.mxu0 0.0
        %2760 = vmatprep.subr.mxu0 0.0
        %2761 = vmatpush1.msra.mxu0 0.0
        %2762 = vmatprep.subr.mxu0 0.0
        %2763 = vmatpush1.msra.mxu0 0.0
        %2764 = vmatprep.subr.mxu0 0.0
        %2765 = vmatpush1.msra.mxu0 0.0
        %2766 = vmatprep.subr.mxu0 0.0
        %2767 = vmatpush1.msra.mxu0 0.0
        %2768 = vmatprep.subr.mxu0 0.0
        %2769 = vmatpush1.msra.mxu0 0.0
        %2770 = vmatprep.subr.mxu0 0.0
        %2771 = vmatpush1.msra.mxu0 0.0
        %2772 = vmatprep.subr.mxu0 0.0
        %2773 = vmatpush1.msra.mxu0 0.0
        %2774 = vmatprep.subr.mxu0 0.0
        %2775 = vmatpush1.msra.mxu0 0.0
        %2776 = vmatprep.subr.mxu0 0.0
        %2777 = vmatpush1.msra.mxu0 0.0
        %2778 = vmatprep.subr.mxu0 0.0
        %2779 = vmatpush1.msra.mxu0 0.0
        %2780 = vmatprep.subr.mxu0 0.0
        %2781 = vmatpush1.msra.mxu0 0.0
        %2782 = vmatprep.subr.mxu0 0.0
        %2783 = vmatpush1.msra.mxu0 0.0
        %2784 = vmatprep.subr.mxu0 0.0
        %2785 = vmatpush1.msra.mxu0 0.0
        %2786 = vmatprep.subr.mxu0 0.0
        %2787 = vmatpush1.msra.mxu0 0.0
        %2788 = vmatprep.subr.mxu0 0.0
        %2789 = vmatpush1.msra.mxu0 0.0
        %2790 = vmatprep.subr.mxu0 0.0
        %2791 = vmatpush1.msra.mxu0 0.0
        %2792 = vmatprep.subr.mxu0 0.0
        %2793 = vmatpush1.msra.mxu0 0.0
        %2794 = vmatprep.subr.mxu0 0.0
        %2795 = vmatpush1.msra.mxu0 0.0
        %2796 = vmatprep.subr.mxu0 0.0
        %2797 = vmatpush1.msra.mxu0 0.0
        %2798 = vmatprep.subr.mxu0 0.0
        %2799 = vmatpush1.msra.mxu0 0.0
        %2800 = vmatprep.subr.mxu0 0.0
        %2801 = vmatpush1.msra.mxu0 0.0
        %2802 = vmatprep.subr.mxu0 0.0
        %2803 = vmatpush1.msra.mxu0 0.0
        %2804 = vmatprep.subr.mxu0 0.0
        %2805 = vmatpush1.msra.mxu0 0.0
        %2806 = vmatprep.subr.mxu0 0.0
        %2807 = vmatpush1.msra.mxu0 0.0
        %2808 = vmatprep.subr.mxu0 0.0
        %2809 = vmatpush1.msra.mxu0 0.0
        %2810 = vmatprep.subr.mxu0 0.0
        %2811 = vmatpush1.msra.mxu0 0.0
        %2812 = vmatprep.subr.mxu0 0.0
        %2813 = vmatpush1.msra.mxu0 0.0
        %2814 = vmatprep.subr.mxu0 0.0
        %2815 = vmatpush1.msra.mxu0 0.0
        %2816 = vmatprep.mubr.f32.mxu0 0.0
        %2817 = vmatmul.mubr.f32.gmra.mrb[0].mxu0 %v2747
        %v2818 = vpop.f32.mrb[0].mxu0
        %v2819 = vadd.f32 0.0, %v2818
        %v2820 = vpop.f32.mrb[0].mxu0
        %2821 = vmatprep.mubr.f32.mxu0 0.0
        %2822 = vmatmul.mubr.f32.gmra.mrb[0].mxu0 %v2750
        %v2823 = vpop.f32.mrb[0].mxu0
        %v2824 = vadd.f32 0.0, %v2823
        %v2825 = vpop.f32.mrb[0].mxu0
        %2826 = vdwg.mxu0
        %2827 = vrot.lane.b32.xlu0 %v2453, 120
        %v2828 = vpop.permute.xlu0 %2827
        %2829 = vrot.lane.b32.xlu0 %v2458, 120
        %v2830 = vpop.permute.xlu0 %2829
        %2831 = vrot.lane.b32.xlu0 %v2541, 120
        %v2832 = vpop.permute.xlu0 %2831
        %2833 = vrot.lane.b32.xlu0 %v2546, 120
        %v2834 = vpop.permute.xlu0 %2833
        %v2835 = vsel %vm1133, %v2828, 0
        %v2837 = vsel %vm1133, %v2830, 0
        %v2839 = vsel %vm1133, %v2832, 0
        %v2841 = vsel %vm1133, %v2834, 0
        %2843 = vmatprep.subr.mxu0 0.0
        %2844 = vmatpush1.xpose.msra.mxu0 %v2839
        %2845 = vmatprep.subr.mxu0 0.0
        %2846 = vmatpush1.xpose.msra.mxu0 %v2841
        %2847 = vmatprep.subr.mxu0 0.0
        %2848 = vmatpush1.xpose.msra.mxu0 0.0
        %2849 = vmatprep.subr.mxu0 0.0
        %2850 = vmatpush1.xpose.msra.mxu0 0.0
        %2851 = vmatprep.subr.mxu0 0.0
        %2852 = vmatpush1.xpose.msra.mxu0 0.0
        %2853 = vmatprep.subr.mxu0 0.0
        %2854 = vmatpush1.xpose.msra.mxu0 0.0
        %2855 = vmatprep.subr.mxu0 0.0
        %2856 = vmatpush1.xpose.msra.mxu0 0.0
        %2857 = vmatprep.subr.mxu0 0.0
        %2858 = vmatpush1.xpose.msra.mxu0 0.0
        %2859 = vmatprep.subr.mxu0 0.0
        %2860 = vmatpush1.xpose.msra.mxu0 0.0
        %2861 = vmatprep.subr.mxu0 0.0
        %2862 = vmatpush1.xpose.msra.mxu0 0.0
        %2863 = vmatprep.subr.mxu0 0.0
        %2864 = vmatpush1.xpose.msra.mxu0 0.0
        %2865 = vmatprep.subr.mxu0 0.0
        %2866 = vmatpush1.xpose.msra.mxu0 0.0
        %2867 = vmatprep.subr.mxu0 0.0
        %2868 = vmatpush1.xpose.msra.mxu0 0.0
        %2869 = vmatprep.subr.mxu0 0.0
        %2870 = vmatpush1.xpose.msra.mxu0 0.0
        %2871 = vmatprep.subr.mxu0 0.0
        %2872 = vmatpush1.xpose.msra.mxu0 0.0
        %2873 = vmatprep.subr.mxu0 0.0
        %2874 = vmatpush1.xpose.msra.mxu0 0.0
        %2875 = vmatprep.subr.mxu0 0.0
        %2876 = vmatpush1.xpose.msra.mxu0 0.0
        %2877 = vmatprep.subr.mxu0 0.0
        %2878 = vmatpush1.xpose.msra.mxu0 0.0
        %2879 = vmatprep.subr.mxu0 0.0
        %2880 = vmatpush1.xpose.msra.mxu0 0.0
        %2881 = vmatprep.subr.mxu0 0.0
        %2882 = vmatpush1.xpose.msra.mxu0 0.0
        %2883 = vmatprep.subr.mxu0 0.0
        %2884 = vmatpush1.xpose.msra.mxu0 0.0
        %2885 = vmatprep.subr.mxu0 0.0
        %2886 = vmatpush1.xpose.msra.mxu0 0.0
        %2887 = vmatprep.subr.mxu0 0.0
        %2888 = vmatpush1.xpose.msra.mxu0 0.0
        %2889 = vmatprep.subr.mxu0 0.0
        %2890 = vmatpush1.xpose.msra.mxu0 0.0
        %2891 = vmatprep.subr.mxu0 0.0
        %2892 = vmatpush1.xpose.msra.mxu0 0.0
        %2893 = vmatprep.subr.mxu0 0.0
        %2894 = vmatpush1.xpose.msra.mxu0 0.0
        %2895 = vmatprep.subr.mxu0 0.0
        %2896 = vmatpush1.xpose.msra.mxu0 0.0
        %2897 = vmatprep.subr.mxu0 0.0
        %2898 = vmatpush1.xpose.msra.mxu0 0.0
        %2899 = vmatprep.subr.mxu0 0.0
        %2900 = vmatpush1.xpose.msra.mxu0 0.0
        %2901 = vmatprep.subr.mxu0 0.0
        %2902 = vmatpush1.xpose.msra.mxu0 0.0
        %2903 = vmatprep.subr.mxu0 0.0
        %2904 = vmatpush1.xpose.msra.mxu0 0.0
        %2905 = vmatprep.subr.mxu0 0.0
        %2906 = vmatpush1.xpose.msra.mxu0 0.0
        %2907 = vmatprep.mubr.f32.mxu0 0.0
        %2908 = vmatmul.mubr.f32.gmra.mrb[0].mxu0 %v2835
        %v2909 = vpop.f32.mrb[0].mxu0
        %v2910 = vadd.f32 %v1131, %v2909
        %v2911 = vpop.f32.mrb[0].mxu0
        %2912 = vmatprep.mubr.f32.mxu0 0.0
        %2913 = vmatmul.mubr.f32.gmra.mrb[0].mxu0 %v2837
        %v2914 = vpop.f32.mrb[0].mxu0
        %v2915 = vadd.f32 %v1131, %v2914
        %v2916 = vpop.f32.mrb[0].mxu0
        %2917 = vdwg.mxu0
        %v2918 = vsel %vm1221, %v2910, -inf
        %2919 = vmax.xlane.f32.xlu0 %v2918
        %v2920 = vpop.xlane.xlu0 %2919
        %v2921 = vsel %vm1221, %v2915, -inf
        %2922 = vmax.xlane.f32.xlu0 %v2921
        %v2923 = vpop.xlane.xlu0 %2922
        %v2924 = vsub.f32 %v2910, %v2920
        %v2925 = vsub.f32 %v2915, %v2923
        %v2926 = vmul.f32 %v2924, 1.442695
        %v2927 = vpow.pop %v2926
        %v2928 = vmul.f32 %v2925, 1.442695
        %v2929 = vpow.pop %v2928
        %v2930 = vsel %vm1221, %v2927, 0.0
        %2931 = vadd.xlane.f32.xlu0 %v2930
        %v2932 = vpop.xlane.xlu0 %2931
        %v2933 = vsel %vm1221, %v2929, 0.0
        %2934 = vadd.xlane.f32.xlu0 %v2933
        %v2935 = vpop.xlane.xlu0 %2934
        %v2936 = vrcp.pop %v2932
        %v2937 = vmul.f32 %v2927, %v2936
        %v2938 = vrcp.pop %v2935
        %v2939 = vmul.f32 %v2929, %v2938
        %2942 = vrot.lane.b32.xlu0 %v2629, 120
        %v2943 = vpop.permute.xlu0 %2942
        %2944 = vrot.lane.b32.xlu0 %v2634, 120
        %v2945 = vpop.permute.xlu0 %2944
        %v2949 = vsel %vm1221, %v2937, 0
        %v2952 = vsel %vm1221, %v2939, 0
        %2954 = vmatprep.subr.mxu0 0.0
        %2955 = vmatpush1.msra.mxu0 %v2943
        %2956 = vmatprep.subr.mxu0 0.0
        %2957 = vmatpush1.msra.mxu0 %v2945
        %2958 = vmatprep.subr.mxu0 0.0
        %2959 = vmatpush1.msra.mxu0 0.0
        %2960 = vmatprep.subr.mxu0 0.0
        %2961 = vmatpush1.msra.mxu0 0.0
        %2962 = vmatprep.subr.mxu0 0.0
        %2963 = vmatpush1.msra.mxu0 0.0
        %2964 = vmatprep.subr.mxu0 0.0
        %2965 = vmatpush1.msra.mxu0 0.0
        %2966 = vmatprep.subr.mxu0 0.0
        %2967 = vmatpush1.msra.mxu0 0.0
        %2968 = vmatprep.subr.mxu0 0.0
        %2969 = vmatpush1.msra.mxu0 0.0
        %2970 = vmatprep.subr.mxu0 0.0
        %2971 = vmatpush1.msra.mxu0 0.0
        %2972 = vmatprep.subr.mxu0 0.0
        %2973 = vmatpush1.msra.mxu0 0.0
        %2974 = vmatprep.subr.mxu0 0.0
        %2975 = vmatpush1.msra.mxu0 0.0
        %2976 = vmatprep.subr.mxu0 0.0
        %2977 = vmatpush1.msra.mxu0 0.0
        %2978 = vmatprep.subr.mxu0 0.0
        %2979 = vmatpush1.msra.mxu0 0.0
        %2980 = vmatprep.subr.mxu0 0.0
        %2981 = vmatpush1.msra.mxu0 0.0
        %2982 = vmatprep.subr.mxu0 0.0
        %2983 = vmatpush1.msra.mxu0 0.0
        %2984 = vmatprep.subr.mxu0 0.0
        %2985 = vmatpush1.msra.mxu0 0.0
        %2986 = vmatprep.subr.mxu0 0.0
        %2987 = vmatpush1.msra.mxu0 0.0
        %2988 = vmatprep.subr.mxu0 0.0
        %2989 = vmatpush1.msra.mxu0 0.0
        %2990 = vmatprep.subr.mxu0 0.0
        %2991 = vmatpush1.msra.mxu0 0.0
        %2992 = vmatprep.subr.mxu0 0.0
        %2993 = vmatpush1.msra.mxu0 0.0
        %2994 = vmatprep.subr.mxu0 0.0
        %2995 = vmatpush1.msra.mxu0 0.0
        %2996 = vmatprep.subr.mxu0 0.0
        %2997 = vmatpush1.msra.mxu0 0.0
        %2998 = vmatprep.subr.mxu0 0.0
        %2999 = vmatpush1.msra.mxu0 0.0
        %3000 = vmatprep.subr.mxu0 0.0
        %3001 = vmatpush1.msra.mxu0 0.0
        %3002 = vmatprep.subr.mxu0 0.0
        %3003 = vmatpush1.msra.mxu0 0.0
        %3004 = vmatprep.subr.mxu0 0.0
        %3005 = vmatpush1.msra.mxu0 0.0
        %3006 = vmatprep.subr.mxu0 0.0
        %3007 = vmatpush1.msra.mxu0 0.0
        %3008 = vmatprep.subr.mxu0 0.0
        %3009 = vmatpush1.msra.mxu0 0.0
        %3010 = vmatprep.subr.mxu0 0.0
        %3011 = vmatpush1.msra.mxu0 0.0
        %3012 = vmatprep.subr.mxu0 0.0
        %3013 = vmatpush1.msra.mxu0 0.0
        %3014 = vmatprep.subr.mxu0 0.0
        %3015 = vmatpush1.msra.mxu0 0.0
        %3016 = vmatprep.subr.mxu0 0.0
        %3017 = vmatpush1.msra.mxu0 0.0
        %3018 = vmatprep.mubr.f32.mxu0 0.0
        %3019 = vmatmul.mubr.f32.gmra.mrb[0].mxu0 %v2949
        %v3020 = vpop.f32.mrb[0].mxu0
        %v3021 = vadd.f32 0.0, %v3020
        %v3022 = vpop.f32.mrb[0].mxu0
        %3023 = vmatprep.mubr.f32.mxu0 0.0
        %3024 = vmatmul.mubr.f32.gmra.mrb[0].mxu0 %v2952
        %v3025 = vpop.f32.mrb[0].mxu0
        %v3026 = vadd.f32 0.0, %v3025
        %v3027 = vpop.f32.mrb[0].mxu0
        %3028 = vdwg.mxu0
        %3029 = vrot.lane.b32.xlu0 %v2453, 112
        %v3030 = vpop.permute.xlu0 %3029
        %3031 = vrot.lane.b32.xlu0 %v2458, 112
        %v3032 = vpop.permute.xlu0 %3031
        %3033 = vrot.lane.b32.xlu0 %v2541, 112
        %v3034 = vpop.permute.xlu0 %3033
        %3035 = vrot.lane.b32.xlu0 %v2546, 112
        %v3036 = vpop.permute.xlu0 %3035
        %v3037 = vsel %vm1133, %v3030, 0
        %v3039 = vsel %vm1133, %v3032, 0
        %v3041 = vsel %vm1133, %v3034, 0
        %v3043 = vsel %vm1133, %v3036, 0
        %3045 = vmatprep.subr.mxu0 0.0
        %3046 = vmatpush1.xpose.msra.mxu0 %v3041
        %3047 = vmatprep.subr.mxu0 0.0
        %3048 = vmatpush1.xpose.msra.mxu0 %v3043
        %3049 = vmatprep.subr.mxu0 0.0
        %3050 = vmatpush1.xpose.msra.mxu0 0.0
        %3051 = vmatprep.subr.mxu0 0.0
        %3052 = vmatpush1.xpose.msra.mxu0 0.0
        %3053 = vmatprep.subr.mxu0 0.0
        %3054 = vmatpush1.xpose.msra.mxu0 0.0
        %3055 = vmatprep.subr.mxu0 0.0
        %3056 = vmatpush1.xpose.msra.mxu0 0.0
        %3057 = vmatprep.subr.mxu0 0.0
        %3058 = vmatpush1.xpose.msra.mxu0 0.0
        %3059 = vmatprep.subr.mxu0 0.0
        %3060 = vmatpush1.xpose.msra.mxu0 0.0
        %3061 = vmatprep.subr.mxu0 0.0
        %3062 = vmatpush1.xpose.msra.mxu0 0.0
        %3063 = vmatprep.subr.mxu0 0.0
        %3064 = vmatpush1.xpose.msra.mxu0 0.0
        %3065 = vmatprep.subr.mxu0 0.0
        %3066 = vmatpush1.xpose.msra.mxu0 0.0
        %3067 = vmatprep.subr.mxu0 0.0
        %3068 = vmatpush1.xpose.msra.mxu0 0.0
        %3069 = vmatprep.subr.mxu0 0.0
        %3070 = vmatpush1.xpose.msra.mxu0 0.0
        %3071 = vmatprep.subr.mxu0 0.0
        %3072 = vmatpush1.xpose.msra.mxu0 0.0
        %3073 = vmatprep.subr.mxu0 0.0
        %3074 = vmatpush1.xpose.msra.mxu0 0.0
        %3075 = vmatprep.subr.mxu0 0.0
        %3076 = vmatpush1.xpose.msra.mxu0 0.0
        %3077 = vmatprep.subr.mxu0 0.0
        %3078 = vmatpush1.xpose.msra.mxu0 0.0
        %3079 = vmatprep.subr.mxu0 0.0
        %3080 = vmatpush1.xpose.msra.mxu0 0.0
        %3081 = vmatprep.subr.mxu0 0.0
        %3082 = vmatpush1.xpose.msra.mxu0 0.0
        %3083 = vmatprep.subr.mxu0 0.0
        %3084 = vmatpush1.xpose.msra.mxu0 0.0
        %3085 = vmatprep.subr.mxu0 0.0
        %3086 = vmatpush1.xpose.msra.mxu0 0.0
        %3087 = vmatprep.subr.mxu0 0.0
        %3088 = vmatpush1.xpose.msra.mxu0 0.0
        %3089 = vmatprep.subr.mxu0 0.0
        %3090 = vmatpush1.xpose.msra.mxu0 0.0
        %3091 = vmatprep.subr.mxu0 0.0
        %3092 = vmatpush1.xpose.msra.mxu0 0.0
        %3093 = vmatprep.subr.mxu0 0.0
        %3094 = vmatpush1.xpose.msra.mxu0 0.0
        %3095 = vmatprep.subr.mxu0 0.0
        %3096 = vmatpush1.xpose.msra.mxu0 0.0
        %3097 = vmatprep.subr.mxu0 0.0
        %3098 = vmatpush1.xpose.msra.mxu0 0.0
        %3099 = vmatprep.subr.mxu0 0.0
        %3100 = vmatpush1.xpose.msra.mxu0 0.0
        %3101 = vmatprep.subr.mxu0 0.0
        %3102 = vmatpush1.xpose.msra.mxu0 0.0
        %3103 = vmatprep.subr.mxu0 0.0
        %3104 = vmatpush1.xpose.msra.mxu0 0.0
        %3105 = vmatprep.subr.mxu0 0.0
        %3106 = vmatpush1.xpose.msra.mxu0 0.0
        %3107 = vmatprep.subr.mxu0 0.0
        %3108 = vmatpush1.xpose.msra.mxu0 0.0
        %3109 = vmatprep.mubr.f32.mxu0 0.0
        %3110 = vmatmul.mubr.f32.gmra.mrb[0].mxu0 %v3037
        %v3111 = vpop.f32.mrb[0].mxu0
        %v3112 = vadd.f32 %v1131, %v3111
        %v3113 = vpop.f32.mrb[0].mxu0
        %3114 = vmatprep.mubr.f32.mxu0 0.0
        %3115 = vmatmul.mubr.f32.gmra.mrb[0].mxu0 %v3039
        %v3116 = vpop.f32.mrb[0].mxu0
        %v3117 = vadd.f32 %v1131, %v3116
        %v3118 = vpop.f32.mrb[0].mxu0
        %3119 = vdwg.mxu0
        %v3120 = vsel %vm1221, %v3112, -inf
        %3121 = vmax.xlane.f32.xlu0 %v3120
        %v3122 = vpop.xlane.xlu0 %3121
        %v3123 = vsel %vm1221, %v3117, -inf
        %3124 = vmax.xlane.f32.xlu0 %v3123
        %v3125 = vpop.xlane.xlu0 %3124
        %v3126 = vsub.f32 %v3112, %v3122
        %v3127 = vsub.f32 %v3117, %v3125
        %v3128 = vmul.f32 %v3126, 1.442695
        %v3129 = vpow.pop %v3128
        %v3130 = vmul.f32 %v3127, 1.442695
        %v3131 = vpow.pop %v3130
        %v3132 = vsel %vm1221, %v3129, 0.0
        %3133 = vadd.xlane.f32.xlu0 %v3132
        %v3134 = vpop.xlane.xlu0 %3133
        %v3135 = vsel %vm1221, %v3131, 0.0
        %3136 = vadd.xlane.f32.xlu0 %v3135
        %v3137 = vpop.xlane.xlu0 %3136
        %v3138 = vrcp.pop %v3134
        %v3139 = vmul.f32 %v3129, %v3138
        %v3140 = vrcp.pop %v3137
        %v3141 = vmul.f32 %v3131, %v3140
        %3142 = vrot.lane.b32.xlu0 %v2629, 112
        %v3143 = vpop.permute.xlu0 %3142
        %3144 = vrot.lane.b32.xlu0 %v2634, 112
        %v3145 = vpop.permute.xlu0 %3144
        %v3149 = vsel %vm1221, %v3139, 0
        %v3152 = vsel %vm1221, %v3141, 0
        %3154 = vmatprep.subr.mxu0 0.0
        %3155 = vmatpush1.msra.mxu0 %v3143
        %3156 = vmatprep.subr.mxu0 0.0
        %3157 = vmatpush1.msra.mxu0 %v3145
        %3158 = vmatprep.subr.mxu0 0.0
        %3159 = vmatpush1.msra.mxu0 0.0
        %3160 = vmatprep.subr.mxu0 0.0
        %3161 = vmatpush1.msra.mxu0 0.0
        %3162 = vmatprep.subr.mxu0 0.0
        %3163 = vmatpush1.msra.mxu0 0.0
        %3164 = vmatprep.subr.mxu0 0.0
        %3165 = vmatpush1.msra.mxu0 0.0
        %3166 = vmatprep.subr.mxu0 0.0
        %3167 = vmatpush1.msra.mxu0 0.0
        %3168 = vmatprep.subr.mxu0 0.0
        %3169 = vmatpush1.msra.mxu0 0.0
        %3170 = vmatprep.subr.mxu0 0.0
        %3171 = vmatpush1.msra.mxu0 0.0
        %3172 = vmatprep.subr.mxu0 0.0
        %3173 = vmatpush1.msra.mxu0 0.0
        %3174 = vmatprep.subr.mxu0 0.0
        %3175 = vmatpush1.msra.mxu0 0.0
        %3176 = vmatprep.subr.mxu0 0.0
        %3177 = vmatpush1.msra.mxu0 0.0
        %3178 = vmatprep.subr.mxu0 0.0
        %3179 = vmatpush1.msra.mxu0 0.0
        %3180 = vmatprep.subr.mxu0 0.0
        %3181 = vmatpush1.msra.mxu0 0.0
        %3182 = vmatprep.subr.mxu0 0.0
        %3183 = vmatpush1.msra.mxu0 0.0
        %3184 = vmatprep.subr.mxu0 0.0
        %3185 = vmatpush1.msra.mxu0 0.0
        %3186 = vmatprep.subr.mxu0 0.0
        %3187 = vmatpush1.msra.mxu0 0.0
        %3188 = vmatprep.subr.mxu0 0.0
        %3189 = vmatpush1.msra.mxu0 0.0
        %3190 = vmatprep.subr.mxu0 0.0
        %3191 = vmatpush1.msra.mxu0 0.0
        %3192 = vmatprep.subr.mxu0 0.0
        %3193 = vmatpush1.msra.mxu0 0.0
        %3194 = vmatprep.subr.mxu0 0.0
        %3195 = vmatpush1.msra.mxu0 0.0
        %3196 = vmatprep.subr.mxu0 0.0
        %3197 = vmatpush1.msra.mxu0 0.0
        %3198 = vmatprep.subr.mxu0 0.0
        %3199 = vmatpush1.msra.mxu0 0.0
        %3200 = vmatprep.subr.mxu0 0.0
        %3201 = vmatpush1.msra.mxu0 0.0
        %3202 = vmatprep.subr.mxu0 0.0
        %3203 = vmatpush1.msra.mxu0 0.0
        %3204 = vmatprep.subr.mxu0 0.0
        %3205 = vmatpush1.msra.mxu0 0.0
        %3206 = vmatprep.subr.mxu0 0.0
        %3207 = vmatpush1.msra.mxu0 0.0
        %3208 = vmatprep.subr.mxu0 0.0
        %3209 = vmatpush1.msra.mxu0 0.0
        %3210 = vmatprep.subr.mxu0 0.0
        %3211 = vmatpush1.msra.mxu0 0.0
        %3212 = vmatprep.subr.mxu0 0.0
        %3213 = vmatpush1.msra.mxu0 0.0
        %3214 = vmatprep.subr.mxu0 0.0
        %3215 = vmatpush1.msra.mxu0 0.0
        %3216 = vmatprep.subr.mxu0 0.0
        %3217 = vmatpush1.msra.mxu0 0.0
        %3218 = vmatprep.mubr.f32.mxu0 0.0
        %3219 = vmatmul.mubr.f32.gmra.mrb[0].mxu0 %v3149
        %v3220 = vpop.f32.mrb[0].mxu0
        %v3221 = vadd.f32 0.0, %v3220
        %v3222 = vpop.f32.mrb[0].mxu0
        %3223 = vmatprep.mubr.f32.mxu0 0.0
        %3224 = vmatmul.mubr.f32.gmra.mrb[0].mxu0 %v3152
        %v3225 = vpop.f32.mrb[0].mxu0
        %v3226 = vadd.f32 0.0, %v3225
        %v3227 = vpop.f32.mrb[0].mxu0
        %3228 = vdwg.mxu0
        %3229 = vrot.lane.b32.xlu0 %v2453, 104
        %v3230 = vpop.permute.xlu0 %3229
        %3231 = vrot.lane.b32.xlu0 %v2458, 104
        %v3232 = vpop.permute.xlu0 %3231
        %3233 = vrot.lane.b32.xlu0 %v2541, 104
        %v3234 = vpop.permute.xlu0 %3233
        %3235 = vrot.lane.b32.xlu0 %v2546, 104
        %v3236 = vpop.permute.xlu0 %3235
        %v3237 = vsel %vm1133, %v3230, 0
        %v3239 = vsel %vm1133, %v3232, 0
        %v3241 = vsel %vm1133, %v3234, 0
        %v3243 = vsel %vm1133, %v3236, 0
        %3245 = vmatprep.subr.mxu0 0.0
        %3246 = vmatpush1.xpose.msra.mxu0 %v3241
        %3247 = vmatprep.subr.mxu0 0.0
        %3248 = vmatpush1.xpose.msra.mxu0 %v3243
        %3249 = vmatprep.subr.mxu0 0.0
        %3250 = vmatpush1.xpose.msra.mxu0 0.0
        %3251 = vmatprep.subr.mxu0 0.0
        %3252 = vmatpush1.xpose.msra.mxu0 0.0
        %3253 = vmatprep.subr.mxu0 0.0
        %3254 = vmatpush1.xpose.msra.mxu0 0.0
        %3255 = vmatprep.subr.mxu0 0.0
        %3256 = vmatpush1.xpose.msra.mxu0 0.0
        %3257 = vmatprep.subr.mxu0 0.0
        %3258 = vmatpush1.xpose.msra.mxu0 0.0
        %3259 = vmatprep.subr.mxu0 0.0
        %3260 = vmatpush1.xpose.msra.mxu0 0.0
        %3261 = vmatprep.subr.mxu0 0.0
        %3262 = vmatpush1.xpose.msra.mxu0 0.0
        %3263 = vmatprep.subr.mxu0 0.0
        %3264 = vmatpush1.xpose.msra.mxu0 0.0
        %3265 = vmatprep.subr.mxu0 0.0
        %3266 = vmatpush1.xpose.msra.mxu0 0.0
        %3267 = vmatprep.subr.mxu0 0.0
        %3268 = vmatpush1.xpose.msra.mxu0 0.0
        %3269 = vmatprep.subr.mxu0 0.0
        %3270 = vmatpush1.xpose.msra.mxu0 0.0
        %3271 = vmatprep.subr.mxu0 0.0
        %3272 = vmatpush1.xpose.msra.mxu0 0.0
        %3273 = vmatprep.subr.mxu0 0.0
        %3274 = vmatpush1.xpose.msra.mxu0 0.0
        %3275 = vmatprep.subr.mxu0 0.0
        %3276 = vmatpush1.xpose.msra.mxu0 0.0
        %3277 = vmatprep.subr.mxu0 0.0
        %3278 = vmatpush1.xpose.msra.mxu0 0.0
        %3279 = vmatprep.subr.mxu0 0.0
        %3280 = vmatpush1.xpose.msra.mxu0 0.0
        %3281 = vmatprep.subr.mxu0 0.0
        %3282 = vmatpush1.xpose.msra.mxu0 0.0
        %3283 = vmatprep.subr.mxu0 0.0
        %3284 = vmatpush1.xpose.msra.mxu0 0.0
        %3285 = vmatprep.subr.mxu0 0.0
        %3286 = vmatpush1.xpose.msra.mxu0 0.0
        %3287 = vmatprep.subr.mxu0 0.0
        %3288 = vmatpush1.xpose.msra.mxu0 0.0
        %3289 = vmatprep.subr.mxu0 0.0
        %3290 = vmatpush1.xpose.msra.mxu0 0.0
        %3291 = vmatprep.subr.mxu0 0.0
        %3292 = vmatpush1.xpose.msra.mxu0 0.0
        %3293 = vmatprep.subr.mxu0 0.0
        %3294 = vmatpush1.xpose.msra.mxu0 0.0
        %3295 = vmatprep.subr.mxu0 0.0
        %3296 = vmatpush1.xpose.msra.mxu0 0.0
        %3297 = vmatprep.subr.mxu0 0.0
        %3298 = vmatpush1.xpose.msra.mxu0 0.0
        %3299 = vmatprep.subr.mxu0 0.0
        %3300 = vmatpush1.xpose.msra.mxu0 0.0
        %3301 = vmatprep.subr.mxu0 0.0
        %3302 = vmatpush1.xpose.msra.mxu0 0.0
        %3303 = vmatprep.subr.mxu0 0.0
        %3304 = vmatpush1.xpose.msra.mxu0 0.0
        %3305 = vmatprep.subr.mxu0 0.0
        %3306 = vmatpush1.xpose.msra.mxu0 0.0
        %3307 = vmatprep.subr.mxu0 0.0
        %3308 = vmatpush1.xpose.msra.mxu0 0.0
        %3309 = vmatprep.mubr.f32.mxu0 0.0
        %3310 = vmatmul.mubr.f32.gmra.mrb[0].mxu0 %v3237
        %v3311 = vpop.f32.mrb[0].mxu0
        %v3312 = vadd.f32 %v1131, %v3311
        %v3313 = vpop.f32.mrb[0].mxu0
        %3314 = vmatprep.mubr.f32.mxu0 0.0
        %3315 = vmatmul.mubr.f32.gmra.mrb[0].mxu0 %v3239
        %v3316 = vpop.f32.mrb[0].mxu0
        %v3317 = vadd.f32 %v1131, %v3316
        %v3318 = vpop.f32.mrb[0].mxu0
        %3319 = vdwg.mxu0
        %v3320 = vsel %vm1221, %v3312, -inf
        %3321 = vmax.xlane.f32.xlu0 %v3320
        %v3322 = vpop.xlane.xlu0 %3321
        %v3323 = vsel %vm1221, %v3317, -inf
        %3324 = vmax.xlane.f32.xlu0 %v3323
        %v3325 = vpop.xlane.xlu0 %3324
        %v3326 = vsub.f32 %v3312, %v3322
        %v3327 = vsub.f32 %v3317, %v3325
        %v3328 = vmul.f32 %v3326, 1.442695
        %v3329 = vpow.pop %v3328
        %v3330 = vmul.f32 %v3327, 1.442695
        %v3331 = vpow.pop %v3330
        %v3332 = vsel %vm1221, %v3329, 0.0
        %3333 = vadd.xlane.f32.xlu0 %v3332
        %v3334 = vpop.xlane.xlu0 %3333
        %v3335 = vsel %vm1221, %v3331, 0.0
        %3336 = vadd.xlane.f32.xlu0 %v3335
        %v3337 = vpop.xlane.xlu0 %3336
        %v3338 = vrcp.pop %v3334
        %v3339 = vmul.f32 %v3329, %v3338
        %v3340 = vrcp.pop %v3337
        %v3341 = vmul.f32 %v3331, %v3340
        %3342 = vrot.lane.b32.xlu0 %v2629, 104
        %v3343 = vpop.permute.xlu0 %3342
        %3344 = vrot.lane.b32.xlu0 %v2634, 104
        %v3345 = vpop.permute.xlu0 %3344
        %v3349 = vsel %vm1221, %v3339, 0
        %v3352 = vsel %vm1221, %v3341, 0
        %3354 = vmatprep.subr.mxu0 0.0
        %3355 = vmatpush1.msra.mxu0 %v3343
        %3356 = vmatprep.subr.mxu0 0.0
        %3357 = vmatpush1.msra.mxu0 %v3345
        %3358 = vmatprep.subr.mxu0 0.0
        %3359 = vmatpush1.msra.mxu0 0.0
        %3360 = vmatprep.subr.mxu0 0.0
        %3361 = vmatpush1.msra.mxu0 0.0
        %3362 = vmatprep.subr.mxu0 0.0
        %3363 = vmatpush1.msra.mxu0 0.0
        %3364 = vmatprep.subr.mxu0 0.0
        %3365 = vmatpush1.msra.mxu0 0.0
        %3366 = vmatprep.subr.mxu0 0.0
        %3367 = vmatpush1.msra.mxu0 0.0
        %3368 = vmatprep.subr.mxu0 0.0
        %3369 = vmatpush1.msra.mxu0 0.0
        %3370 = vmatprep.subr.mxu0 0.0
        %3371 = vmatpush1.msra.mxu0 0.0
        %3372 = vmatprep.subr.mxu0 0.0
        %3373 = vmatpush1.msra.mxu0 0.0
        %3374 = vmatprep.subr.mxu0 0.0
        %3375 = vmatpush1.msra.mxu0 0.0
        %3376 = vmatprep.subr.mxu0 0.0
        %3377 = vmatpush1.msra.mxu0 0.0
        %3378 = vmatprep.subr.mxu0 0.0
        %3379 = vmatpush1.msra.mxu0 0.0
        %3380 = vmatprep.subr.mxu0 0.0
        %3381 = vmatpush1.msra.mxu0 0.0
        %3382 = vmatprep.subr.mxu0 0.0
        %3383 = vmatpush1.msra.mxu0 0.0
        %3384 = vmatprep.subr.mxu0 0.0
        %3385 = vmatpush1.msra.mxu0 0.0
        %3386 = vmatprep.subr.mxu0 0.0
        %3387 = vmatpush1.msra.mxu0 0.0
        %3388 = vmatprep.subr.mxu0 0.0
        %3389 = vmatpush1.msra.mxu0 0.0
        %3390 = vmatprep.subr.mxu0 0.0
        %3391 = vmatpush1.msra.mxu0 0.0
        %3392 = vmatprep.subr.mxu0 0.0
        %3393 = vmatpush1.msra.mxu0 0.0
        %3394 = vmatprep.subr.mxu0 0.0
        %3395 = vmatpush1.msra.mxu0 0.0
        %3396 = vmatprep.subr.mxu0 0.0
        %3397 = vmatpush1.msra.mxu0 0.0
        %3398 = vmatprep.subr.mxu0 0.0
        %3399 = vmatpush1.msra.mxu0 0.0
        %3400 = vmatprep.subr.mxu0 0.0
        %3401 = vmatpush1.msra.mxu0 0.0
        %3402 = vmatprep.subr.mxu0 0.0
        %3403 = vmatpush1.msra.mxu0 0.0
        %3404 = vmatprep.subr.mxu0 0.0
        %3405 = vmatpush1.msra.mxu0 0.0
        %3406 = vmatprep.subr.mxu0 0.0
        %3407 = vmatpush1.msra.mxu0 0.0
        %3408 = vmatprep.subr.mxu0 0.0
        %3409 = vmatpush1.msra.mxu0 0.0
        %3410 = vmatprep.subr.mxu0 0.0
        %3411 = vmatpush1.msra.mxu0 0.0
        %3412 = vmatprep.subr.mxu0 0.0
        %3413 = vmatpush1.msra.mxu0 0.0
        %3414 = vmatprep.subr.mxu0 0.0
        %3415 = vmatpush1.msra.mxu0 0.0
        %3416 = vmatprep.subr.mxu0 0.0
        %3417 = vmatpush1.msra.mxu0 0.0
        %3418 = vmatprep.mubr.f32.mxu0 0.0
        %3419 = vmatmul.mubr.f32.gmra.mrb[0].mxu0 %v3349
        %v3420 = vpop.f32.mrb[0].mxu0
        %v3421 = vadd.f32 0.0, %v3420
        %v3422 = vpop.f32.mrb[0].mxu0
        %3423 = vmatprep.mubr.f32.mxu0 0.0
        %3424 = vmatmul.mubr.f32.gmra.mrb[0].mxu0 %v3352
        %v3425 = vpop.f32.mrb[0].mxu0
        %v3426 = vadd.f32 0.0, %v3425
        %v3427 = vpop.f32.mrb[0].mxu0
        %3428 = vdwg.mxu0
        %3431 = vrot.lane.b32.xlu0 %v3021, 8
        %v3432 = vpop.permute.xlu0 %3431
        %3433 = vrot.lane.b32.xlu0 %v3026, 8
        %v3434 = vpop.permute.xlu0 %3433
        %3439 = vrot.lane.b32.xlu0 %v3221, 16
        %v3440 = vpop.permute.xlu0 %3439
        %3441 = vrot.lane.b32.xlu0 %v3226, 16
        %v3442 = vpop.permute.xlu0 %3441
        %3447 = vrot.lane.b32.xlu0 %v3421, 24
        %v3448 = vpop.permute.xlu0 %3447
        %3449 = vrot.lane.b32.xlu0 %v3426, 24
        %v3450 = vpop.permute.xlu0 %3449
        %v3453 = vsel %vm1133, %v2819, %v3432
        %v3454 = vsel %vm1133, %v2824, %v3434
        %v3455 = vsel %vm1221, %v3453, %v3440
        %v3456 = vsel %vm1221, %v3454, %v3442
        %v3457 = vsel %vm1955, %v3455, %v3448
        %v3458 = vsel %vm1955, %v3456, %v3450
        %s3459 = scalar_lea.vmem [#allocation8], 32
        %v3460 = vld [vmem:[%s3459] sm:$0xff]
        %v3461 = vld [vmem:[%s3459 + $0x8] sm:$0xff]
        %v3462 = vld [vmem:[%s3459 + $0x10] sm:$0xff]
        %v3463 = vld [vmem:[%s3459 + $0x18] sm:$0xff]
        %v3465 = vsel %vm804, %v3457, 0
        %v3468 = vsel %vm804, %v3458, 0
        %3470 = vmatprep.subr.mxu0 0.0
        %3471 = vmatpush1.msra.mxu0 %v3460
        %3472 = vmatprep.subr.mxu0 0.0
        %3473 = vmatpush1.msra.mxu0 %v3461
        %3474 = vmatprep.subr.mxu0 0.0
        %3475 = vmatpush1.msra.mxu0 %v3462
        %3476 = vmatprep.subr.mxu0 0.0
        %3477 = vmatpush1.msra.mxu0 %v3463
        %3478 = vmatprep.subr.mxu0 0.0
        %3479 = vmatpush1.msra.mxu0 0.0
        %3480 = vmatprep.subr.mxu0 0.0
        %3481 = vmatpush1.msra.mxu0 0.0
        %3482 = vmatprep.subr.mxu0 0.0
        %3483 = vmatpush1.msra.mxu0 0.0
        %3484 = vmatprep.subr.mxu0 0.0
        %3485 = vmatpush1.msra.mxu0 0.0
        %3486 = vmatprep.subr.mxu0 0.0
        %3487 = vmatpush1.msra.mxu0 0.0
        %3488 = vmatprep.subr.mxu0 0.0
        %3489 = vmatpush1.msra.mxu0 0.0
        %3490 = vmatprep.subr.mxu0 0.0
        %3491 = vmatpush1.msra.mxu0 0.0
        %3492 = vmatprep.subr.mxu0 0.0
        %3493 = vmatpush1.msra.mxu0 0.0
        %3494 = vmatprep.subr.mxu0 0.0
        %3495 = vmatpush1.msra.mxu0 0.0
        %3496 = vmatprep.subr.mxu0 0.0
        %3497 = vmatpush1.msra.mxu0 0.0
        %3498 = vmatprep.subr.mxu0 0.0
        %3499 = vmatpush1.msra.mxu0 0.0
        %3500 = vmatprep.subr.mxu0 0.0
        %3501 = vmatpush1.msra.mxu0 0.0
        %3502 = vmatprep.subr.mxu0 0.0
        %3503 = vmatpush1.msra.mxu0 0.0
        %3504 = vmatprep.subr.mxu0 0.0
        %3505 = vmatpush1.msra.mxu0 0.0
        %3506 = vmatprep.subr.mxu0 0.0
        %3507 = vmatpush1.msra.mxu0 0.0
        %3508 = vmatprep.subr.mxu0 0.0
        %3509 = vmatpush1.msra.mxu0 0.0
        %3510 = vmatprep.subr.mxu0 0.0
        %3511 = vmatpush1.msra.mxu0 0.0
        %3512 = vmatprep.subr.mxu0 0.0
        %3513 = vmatpush1.msra.mxu0 0.0
        %3514 = vmatprep.subr.mxu0 0.0
        %3515 = vmatpush1.msra.mxu0 0.0
        %3516 = vmatprep.subr.mxu0 0.0
        %3517 = vmatpush1.msra.mxu0 0.0
        %3518 = vmatprep.subr.mxu0 0.0
        %3519 = vmatpush1.msra.mxu0 0.0
        %3520 = vmatprep.subr.mxu0 0.0
        %3521 = vmatpush1.msra.mxu0 0.0
        %3522 = vmatprep.subr.mxu0 0.0
        %3523 = vmatpush1.msra.mxu0 0.0
        %3524 = vmatprep.subr.mxu0 0.0
        %3525 = vmatpush1.msra.mxu0 0.0
        %3526 = vmatprep.subr.mxu0 0.0
        %3527 = vmatpush1.msra.mxu0 0.0
        %3528 = vmatprep.subr.mxu0 0.0
        %3529 = vmatpush1.msra.mxu0 0.0
        %3530 = vmatprep.subr.mxu0 0.0
        %3531 = vmatpush1.msra.mxu0 0.0
        %3532 = vmatprep.subr.mxu0 0.0
        %3533 = vmatpush1.msra.mxu0 0.0
        %3534 = vmatprep.mubr.f32.mxu0 0.0
        %3535 = vmatmul.mubr.f32.gmra.mrb[0].mxu0 %v3465
        %v3536 = vpop.f32.mrb[0].mxu0
        %v3537 = vadd.f32 0.0, %v3536
        %v3538 = vpop.f32.mrb[0].mxu0
        %3539 = vmatprep.mubr.f32.mxu0 0.0
        %3540 = vmatmul.mubr.f32.gmra.mrb[0].mxu0 %v3468
        %v3541 = vpop.f32.mrb[0].mxu0
        %v3542 = vadd.f32 0.0, %v3541
        %v3543 = vpop.f32.mrb[0].mxu0
        %3544 = vdwg.mxu0
        %v3545 = vadd.f32 %v2305, %v3537
        %v3546 = vadd.f32 %v2306, %v3542
        %s3547 = scalar_lea.vmem %s11, 1
        %v3548 = vld [vmem:[%s3547] sm:$0x1]
        %v3550 = vlaneseq
        %v3551 = vshrl.u32 %v3550, 7
        %v3552 = vsub.s32 0, %v3551
        %v3553 = vrot.slane %v3548, %v3552
        %v3555 = vadd.f32 %v3545, %v3553
        %v3556 = vadd.f32 %v3546, %v3553
        %s3557 = scalar_lea.vmem %s18, 1
        %v3558 = vld [vmem:[%s3557] sm:$0x1]
        %s3559 = scalar_lea.vmem %s19, 1
        %v3560 = vld [vmem:[%s3559] sm:$0x1]
        %v3561 = vsel %vm804, %v3555, 0.0
        %3562 = vadd.xlane.f32.xlu0 %v3561
        %v3563 = vpop.xlane.xlu0 %3562
        %v3564 = vsel %vm804, %v3556, 0.0
        %3565 = vadd.xlane.f32.xlu0 %v3564
        %v3566 = vpop.xlane.xlu0 %3565
        %v3567 = vmul.f32 %v3563, %v811
        %v3568 = vmul.f32 %v3566, %v811
        %v3569 = vsub.f32 %v3555, %v3567
        %v3570 = vsub.f32 %v3556, %v3568
        %v3571 = vmul.f32 %v3569, %v3569
        %v3572 = vmul.f32 %v3570, %v3570
        %v3573 = vsel %vm804, %v3571, 0.0
        %3574 = vadd.xlane.f32.xlu0 %v3573
        %v3575 = vpop.xlane.xlu0 %3574
        %v3576 = vsel %vm804, %v3572, 0.0
        %3577 = vadd.xlane.f32.xlu0 %v3576
        %v3578 = vpop.xlane.xlu0 %3577
        %v3579 = vmul.f32 %v3575, %v824
        %v3580 = vmul.f32 %v3578, %v824
        %v3581 = vrsqrt.pop %v3579
        %v3582 = vmul.f32 %v3579, %v3581
        %vm3583 = vcmp.eq.f32.partialorder %v3579, inf
        %v3584 = vsel %vm3583, %v3579, %v3582
        %vm3585 = vcmp.eq.f32.partialorder %v3579, 0.0
        %v3586 = vand.u32 %v3579, 2147483648
        %v3587 = vsel %vm3585, %v3586, %v3584
        %v3588 = vrsqrt.pop %v3580
        %v3589 = vmul.f32 %v3580, %v3588
        %vm3590 = vcmp.eq.f32.partialorder %v3580, inf
        %v3591 = vsel %vm3590, %v3580, %v3589
        %vm3592 = vcmp.eq.f32.partialorder %v3580, 0.0
        %v3593 = vand.u32 %v3580, 2147483648
        %v3594 = vsel %vm3592, %v3593, %v3591
        %v3596 = vlaneseq
        %v3597 = vshrl.u32 %v3596, 7
        %v3598 = vsub.s32 0, %v3597
        %v3599 = vrot.slane %v3558, %v3598
        %v3601 = vmul.f32 %v3599, %v3569
        %v3602 = vmul.f32 %v3599, %v3570
        %v3603 = vadd.f32 %v3587, 1e-06
        %v3604 = vadd.f32 %v3594, 1e-06
        %v3605 = vrcp.pop %v3603
        %v3606 = vmul.f32 %v3601, %v3605
        %v3607 = vrcp.pop %v3604
        %v3608 = vmul.f32 %v3602, %v3607
        %v3610 = vlaneseq
        %v3611 = vshrl.u32 %v3610, 7
        %v3612 = vsub.s32 0, %v3611
        %v3613 = vrot.slane %v3560, %v3612
        %v3615 = vadd.f32 %v3606, %v3613
        %v3616 = vadd.f32 %v3608, %v3613
        %s3617 = scalar_lea.vmem [#allocation10], 32
        %v3618 = vld [vmem:[%s3617] sm:$0xff]
        %v3619 = vld [vmem:[%s3617 + $0x8] sm:$0xff]
        %v3620 = vld [vmem:[%s3617 + $0x10] sm:$0xff]
        %v3621 = vld [vmem:[%s3617 + $0x18] sm:$0xff]
        %s3622 = scalar_lea.vmem %s15, 1
        %v3623 = vld [vmem:[%s3622] sm:$0x1]
        %v3625 = vlaneseq
        %v3626 = vshrl.u32 %v3625, 7
        %v3627 = vsub.s32 0, %v3626
        %v3628 = vrot.slane %v3623, %v3627
        %v3631 = vsel %vm804, %v3615, 0
        %v3634 = vsel %vm804, %v3616, 0
        %3636 = vmatprep.subr.mxu0 0.0
        %3637 = vmatpush1.msra.mxu0 %v3618
        %3638 = vmatprep.subr.mxu0 0.0
        %3639 = vmatpush1.msra.mxu0 %v3619
        %3640 = vmatprep.subr.mxu0 0.0
        %3641 = vmatpush1.msra.mxu0 %v3620
        %3642 = vmatprep.subr.mxu0 0.0
        %3643 = vmatpush1.msra.mxu0 %v3621
        %3644 = vmatprep.subr.mxu0 0.0
        %3645 = vmatpush1.msra.mxu0 0.0
        %3646 = vmatprep.subr.mxu0 0.0
        %3647 = vmatpush1.msra.mxu0 0.0
        %3648 = vmatprep.subr.mxu0 0.0
        %3649 = vmatpush1.msra.mxu0 0.0
        %3650 = vmatprep.subr.mxu0 0.0
        %3651 = vmatpush1.msra.mxu0 0.0
        %3652 = vmatprep.subr.mxu0 0.0
        %3653 = vmatpush1.msra.mxu0 0.0
        %3654 = vmatprep.subr.mxu0 0.0
        %3655 = vmatpush1.msra.mxu0 0.0
        %3656 = vmatprep.subr.mxu0 0.0
        %3657 = vmatpush1.msra.mxu0 0.0
        %3658 = vmatprep.subr.mxu0 0.0
        %3659 = vmatpush1.msra.mxu0 0.0
        %3660 = vmatprep.subr.mxu0 0.0
        %3661 = vmatpush1.msra.mxu0 0.0
        %3662 = vmatprep.subr.mxu0 0.0
        %3663 = vmatpush1.msra.mxu0 0.0
        %3664 = vmatprep.subr.mxu0 0.0
        %3665 = vmatpush1.msra.mxu0 0.0
        %3666 = vmatprep.subr.mxu0 0.0
        %3667 = vmatpush1.msra.mxu0 0.0
        %3668 = vmatprep.subr.mxu0 0.0
        %3669 = vmatpush1.msra.mxu0 0.0
        %3670 = vmatprep.subr.mxu0 0.0
        %3671 = vmatpush1.msra.mxu0 0.0
        %3672 = vmatprep.subr.mxu0 0.0
        %3673 = vmatpush1.msra.mxu0 0.0
        %3674 = vmatprep.subr.mxu0 0.0
        %3675 = vmatpush1.msra.mxu0 0.0
        %3676 = vmatprep.subr.mxu0 0.0
        %3677 = vmatpush1.msra.mxu0 0.0
        %3678 = vmatprep.subr.mxu0 0.0
        %3679 = vmatpush1.msra.mxu0 0.0
        %3680 = vmatprep.subr.mxu0 0.0
        %3681 = vmatpush1.msra.mxu0 0.0
        %3682 = vmatprep.subr.mxu0 0.0
        %3683 = vmatpush1.msra.mxu0 0.0
        %3684 = vmatprep.subr.mxu0 0.0
        %3685 = vmatpush1.msra.mxu0 0.0
        %3686 = vmatprep.subr.mxu0 0.0
        %3687 = vmatpush1.msra.mxu0 0.0
        %3688 = vmatprep.subr.mxu0 0.0
        %3689 = vmatpush1.msra.mxu0 0.0
        %3690 = vmatprep.subr.mxu0 0.0
        %3691 = vmatpush1.msra.mxu0 0.0
        %3692 = vmatprep.subr.mxu0 0.0
        %3693 = vmatpush1.msra.mxu0 0.0
        %3694 = vmatprep.subr.mxu0 0.0
        %3695 = vmatpush1.msra.mxu0 0.0
        %3696 = vmatprep.subr.mxu0 0.0
        %3697 = vmatpush1.msra.mxu0 0.0
        %3698 = vmatprep.subr.mxu0 0.0
        %3699 = vmatpush1.msra.mxu0 0.0
        %3700 = vmatprep.mubr.f32.mxu0 0.0
        %3701 = vmatmul.mubr.f32.gmra.mrb[0].mxu0 %v3631
        %v3702 = vpop.f32.mrb[0].mxu0
        %v3703 = vadd.f32 %v3628, %v3702
        %v3704 = vpop.f32.mrb[0].mxu0
        %3705 = vmatprep.mubr.f32.mxu0 0.0
        %3706 = vmatmul.mubr.f32.gmra.mrb[0].mxu0 %v3634
        %v3707 = vpop.f32.mrb[0].mxu0
        %v3708 = vadd.f32 %v3628, %v3707
        %v3709 = vpop.f32.mrb[0].mxu0
        %3710 = vdwg.mxu0
        %v3711 = vmax.f32 %v3703, 0.0
        %v3712 = vmax.f32 %v3708, 0.0
        %s3713 = scalar_lea.vmem %s16, 64
        %v3714 = vld [vmem:[%s3713] sm:$0xff]
        %v3715 = vld [vmem:[%s3713 + $0x8] sm:$0xff]
        %v3716 = vld [vmem:[%s3713 + $0x10] sm:$0xff]
        %v3717 = vld [vmem:[%s3713 + $0x18] sm:$0xff]
        %v3718 = vld [vmem:[%s3713 + $0x20] sm:$0xff]
        %v3719 = vld [vmem:[%s3713 + $0x28] sm:$0xff]
        %v3720 = vld [vmem:[%s3713 + $0x30] sm:$0xff]
        %v3721 = vld [vmem:[%s3713 + $0x38] sm:$0xff]
        %v3723 = vsel %vm2214, %v3711, 0
        %v3726 = vsel %vm2214, %v3712, 0
        %3728 = vmatprep.subr.mxu0 0.0
        %3729 = vmatpush1.msra.mxu0 %v3714
        %3730 = vmatprep.subr.mxu0 0.0
        %3731 = vmatpush1.msra.mxu0 %v3715
        %3732 = vmatprep.subr.mxu0 0.0
        %3733 = vmatpush1.msra.mxu0 %v3716
        %3734 = vmatprep.subr.mxu0 0.0
        %3735 = vmatpush1.msra.mxu0 %v3717
        %3736 = vmatprep.subr.mxu0 0.0
        %3737 = vmatpush1.msra.mxu0 %v3718
        %3738 = vmatprep.subr.mxu0 0.0
        %3739 = vmatpush1.msra.mxu0 %v3719
        %3740 = vmatprep.subr.mxu0 0.0
        %3741 = vmatpush1.msra.mxu0 %v3720
        %3742 = vmatprep.subr.mxu0 0.0
        %3743 = vmatpush1.msra.mxu0 %v3721
        %3744 = vmatprep.subr.mxu0 0.0
        %3745 = vmatpush1.msra.mxu0 0.0
        %3746 = vmatprep.subr.mxu0 0.0
        %3747 = vmatpush1.msra.mxu0 0.0
        %3748 = vmatprep.subr.mxu0 0.0
        %3749 = vmatpush1.msra.mxu0 0.0
        %3750 = vmatprep.subr.mxu0 0.0
        %3751 = vmatpush1.msra.mxu0 0.0
        %3752 = vmatprep.subr.mxu0 0.0
        %3753 = vmatpush1.msra.mxu0 0.0
        %3754 = vmatprep.subr.mxu0 0.0
        %3755 = vmatpush1.msra.mxu0 0.0
        %3756 = vmatprep.subr.mxu0 0.0
        %3757 = vmatpush1.msra.mxu0 0.0
        %3758 = vmatprep.subr.mxu0 0.0
        %3759 = vmatpush1.msra.mxu0 0.0
        %3760 = vmatprep.subr.mxu0 0.0
        %3761 = vmatpush1.msra.mxu0 0.0
        %3762 = vmatprep.subr.mxu0 0.0
        %3763 = vmatpush1.msra.mxu0 0.0
        %3764 = vmatprep.subr.mxu0 0.0
        %3765 = vmatpush1.msra.mxu0 0.0
        %3766 = vmatprep.subr.mxu0 0.0
        %3767 = vmatpush1.msra.mxu0 0.0
        %3768 = vmatprep.subr.mxu0 0.0
        %3769 = vmatpush1.msra.mxu0 0.0
        %3770 = vmatprep.subr.mxu0 0.0
        %3771 = vmatpush1.msra.mxu0 0.0
        %3772 = vmatprep.subr.mxu0 0.0
        %3773 = vmatpush1.msra.mxu0 0.0
        %3774 = vmatprep.subr.mxu0 0.0
        %3775 = vmatpush1.msra.mxu0 0.0
        %3776 = vmatprep.subr.mxu0 0.0
        %3777 = vmatpush1.msra.mxu0 0.0
        %3778 = vmatprep.subr.mxu0 0.0
        %3779 = vmatpush1.msra.mxu0 0.0
        %3780 = vmatprep.subr.mxu0 0.0
        %3781 = vmatpush1.msra.mxu0 0.0
        %3782 = vmatprep.subr.mxu0 0.0
        %3783 = vmatpush1.msra.mxu0 0.0
        %3784 = vmatprep.subr.mxu0 0.0
        %3785 = vmatpush1.msra.mxu0 0.0
        %3786 = vmatprep.subr.mxu0 0.0
        %3787 = vmatpush1.msra.mxu0 0.0
        %3788 = vmatprep.subr.mxu0 0.0
        %3789 = vmatpush1.msra.mxu0 0.0
        %3790 = vmatprep.subr.mxu0 0.0
        %3791 = vmatpush1.msra.mxu0 0.0
        %3792 = vmatprep.mubr.f32.mxu0 0.0
        %3793 = vmatmul.mubr.f32.gmra.mrb[0].mxu0 %v3723
        %v3794 = vpop.f32.mrb[0].mxu0
        %v3795 = vadd.f32 0.0, %v3794
        %v3796 = vpop.f32.mrb[0].mxu0
        %3797 = vmatprep.mubr.f32.mxu0 0.0
        %3798 = vmatmul.mubr.f32.gmra.mrb[0].mxu0 %v3726
        %v3799 = vpop.f32.mrb[0].mxu0
        %v3800 = vadd.f32 0.0, %v3799
        %v3801 = vpop.f32.mrb[0].mxu0
        %3802 = vdwg.mxu0
        %v3803 = vadd.f32 %v3555, %v3795
        %v3804 = vadd.f32 %v3556, %v3800
        %s3805 = scalar_lea.vmem %s17, 1
        %v3806 = vld [vmem:[%s3805] sm:$0x1]
        %v3808 = vlaneseq
        %v3809 = vshrl.u32 %v3808, 7
        %v3810 = vsub.s32 0, %v3809
        %v3811 = vrot.slane %v3806, %v3810
        %v3813 = vadd.f32 %v3803, %v3811
        %v3814 = vadd.f32 %v3804, %v3811
        %v3815 = vld [vmem:[%s20] sm:$0x1]
        %v3816 = vld [vmem:[%s21] sm:$0x1]
        %v3817 = vsel %vm804, %v3813, 0.0
        %3818 = vadd.xlane.f32.xlu0 %v3817
        %v3819 = vpop.xlane.xlu0 %3818
        %v3820 = vsel %vm804, %v3814, 0.0
        %3821 = vadd.xlane.f32.xlu0 %v3820
        %v3822 = vpop.xlane.xlu0 %3821
        %v3823 = vmul.f32 %v3819, %v811
        %v3824 = vmul.f32 %v3822, %v811
        %v3825 = vsub.f32 %v3813, %v3823
        %v3826 = vsub.f32 %v3814, %v3824
        %v3827 = vmul.f32 %v3825, %v3825
        %v3828 = vmul.f32 %v3826, %v3826
        %v3829 = vsel %vm804, %v3827, 0.0
        %3830 = vadd.xlane.f32.xlu0 %v3829
        %v3831 = vpop.xlane.xlu0 %3830
        %v3832 = vsel %vm804, %v3828, 0.0
        %3833 = vadd.xlane.f32.xlu0 %v3832
        %v3834 = vpop.xlane.xlu0 %3833
        %v3835 = vmul.f32 %v3831, %v824
        %v3836 = vmul.f32 %v3834, %v824
        %v3837 = vrsqrt.pop %v3835
        %v3838 = vmul.f32 %v3835, %v3837
        %vm3839 = vcmp.eq.f32.partialorder %v3835, inf
        %v3840 = vsel %vm3839, %v3835, %v3838
        %vm3841 = vcmp.eq.f32.partialorder %v3835, 0.0
        %v3842 = vand.u32 %v3835, 2147483648
        %v3843 = vsel %vm3841, %v3842, %v3840
        %v3844 = vrsqrt.pop %v3836
        %v3845 = vmul.f32 %v3836, %v3844
        %vm3846 = vcmp.eq.f32.partialorder %v3836, inf
        %v3847 = vsel %vm3846, %v3836, %v3845
        %vm3848 = vcmp.eq.f32.partialorder %v3836, 0.0
        %v3849 = vand.u32 %v3836, 2147483648
        %v3850 = vsel %vm3848, %v3849, %v3847
        %v3852 = vlaneseq
        %v3853 = vshrl.u32 %v3852, 7
        %v3854 = vsub.s32 0, %v3853
        %v3855 = vrot.slane %v3815, %v3854
        %v3857 = vmul.f32 %v3855, %v3825
        %v3858 = vmul.f32 %v3855, %v3826
        %v3859 = vadd.f32 %v3843, 1e-06
        %v3860 = vadd.f32 %v3850, 1e-06
        %v3861 = vrcp.pop %v3859
        %v3862 = vmul.f32 %v3857, %v3861
        %v3863 = vrcp.pop %v3860
        %v3864 = vmul.f32 %v3858, %v3863
        %v3866 = vlaneseq
        %v3867 = vshrl.u32 %v3866, 7
        %v3868 = vsub.s32 0, %v3867
        %v3869 = vrot.slane %v3816, %v3868
        %v3871 = vadd.f32 %v3862, %v3869
        %v3872 = vadd.f32 %v3864, %v3869
        %3873 = vst.msk [vmem:[%s789] sm:$0xff] %vm804, %v3871
        %3874 = vst.msk [vmem:[%s789 + $0x8] sm:$0xff] %vm804, %v3872
        %s3875 = sand.u32 %s528, 1
        %s3876 = scalar_lea.sflag [#allocation4], %s3875
        %s3877 = sand.u32 %s528, 1
        %s3878 = smul.addr %s3877, 16
        %s3879 = scalar_lea.vmem [#allocation11], %s3878
        // Predicated region
        $region129: #{tpu_custom_call.1} parent=107 // pred_check
          %p3880 = pneg %p538
        $region130: #{tpu_custom_call.1} parent=107 // pred_check_branch
          %3882 = sbr.rel (%p3880) target = $region132
        $region131: #{tpu_custom_call.1} parent=107 // pred_region
          %s3884 = ssub.s32 256, 256
          %3885 = vsyncadd %s3876, %s3884
          %s3886 = smul.addr %s43, 2
          %s3887 = smul.addr %s3886, 128
          %s3888 = scalar_lea.hbm %s22, %s3887
          %s3889 = sshll.u32 %s3879, 4
          %s3890 = int_to_ptr.vmem [resolvable:$true] %s3889
          %3895 = dma.vmem_to_hbm [thread:$0]  %s3890, 256, %s3888, %s3876, 128, 128, 8
        $region132: #{tpu_custom_call.1} parent=107 // pred_fallthru
          _
      $region108: #{tpu_custom_call.1} parent=5 // pred_fallthru
        _
      %p3896 = scmp.le.s32.totalorder 2, %s38
      // Predicated region
      $region133: #{tpu_custom_call.1} parent=5 // pred_check
        %p3897 = pneg %p3896
      $region134: #{tpu_custom_call.1} parent=5 // pred_check_branch
        %3899 = sbr.rel (%p3897) target = $region136
      $region135: #{tpu_custom_call.1} parent=5 // pred_region
        %s3900 = ssub.s32 %s38, 2
        // Predicated region
        $region137: #{tpu_custom_call.1} parent=135 // pred_check
          %p3901 = pneg %p544
        $region138: #{tpu_custom_call.1} parent=135 // pred_check_branch
          %3903 = sbr.rel (%p3901) target = $region140
        $region139: #{tpu_custom_call.1} parent=135 // pred_region
          %s3904 = sand.u32 %s529, 1
          %s3905 = scalar_lea.sflag [#allocation4], %s3904
          %s3906 = sand.u32 %s529, 1
          %s3907 = smul.addr %s3906, 16
          %s3908 = scalar_lea.vmem [#allocation11], %s3907
          %3909 = dma.done %s3905, 256
        $region140: #{tpu_custom_call.1} parent=135 // pred_fallthru
          _
      $region136: #{tpu_custom_call.1} parent=5 // pred_fallthru
        _
    $region6: #{tpu_custom_call.1} parent=1 // loop_footer
      %s42 = sadd.s32 1, %s38
    $region7: #{tpu_custom_call.1} parent=1 // loop_footer_branch
      %37 = sbr.rel target = $region3
    $region8: #{tpu_custom_call.1} parent=1 // loop_exit
      _
    %3910 = vsyncpa [#allocation3], 1
    %s3911 = scalar_lea.sflag [#allocation3], 1
    %3912 = vsyncpa %s3911, 1
    %3913 = vsyncpa [#allocation6], 1
    %s3914 = scalar_lea.sflag [#allocation6], 1
    %3915 = vsyncpa %s3914, 1
    %3916 = vsyncpa [#allocation9], 1
    %3917 = vsyncpa [#allocation4], 1
    %s3918 = scalar_lea.sflag [#allocation4], 1
    %3919 = vsyncpa %s3918, 1

</llo_original>
